<compile_context>
chip_gen: v7x
topology: tpu7x:2x2x1
jax: 0.10.0
libtpu: 0.0.40
codegen_flags: <defaults>
</compile_context>

<pallas_src>
import functools

import jax
import jax.numpy as jnp
from jax import lax
from jax.experimental import pallas as pl
from jax.experimental.pallas import tpu as pltpu

# Model hyper-parameters (small, consistent with the module's shapes).
B = 2      # batch
T = 8      # target sequence length (x)
S = 8      # source sequence length (memory)
D = 32     # model size ("size" in MyDecoderLayer)
H = 4      # attention heads
DK = D // H
DFF = 64   # feed-forward hidden size
EPS = 1e-6  # Annotated-Transformer LayerNorm eps


def _tensorcores_per_chip() -> int:
    """2 TensorCores/chip on v7x, 1 on v5e/v6e (default to 1 if unknown)."""
    try:
        kind = jax.devices()[0].device_kind.lower()
    except Exception:
        return 1
    return 2 if "v7" in kind else 1


def _layer_norm_ref(x, a, b):
    """Annotated-Transformer LayerNorm: a*(x-mean)/(std+eps)+b, unbiased std (pure JAX)."""
    mean = jnp.mean(x, axis=-1, keepdims=True)
    var = jnp.sum((x - mean) ** 2, axis=-1, keepdims=True) / (x.shape[-1] - 1)
    std = jnp.sqrt(var)
    return a * (x - mean) / (std + EPS) + b


def _layer_norm_in_kernel(x, a, b):
    """Same LayerNorm, with the divide moved onto the EUP via approx reciprocal."""
    mean = jnp.mean(x, axis=-1, keepdims=True)
    var = jnp.sum((x - mean) ** 2, axis=-1, keepdims=True) / (x.shape[-1] - 1)
    inv = pl.reciprocal(jnp.sqrt(var) + EPS, approx=True)
    return a * (x - mean) * inv + b


def decoder_layer_kernel(
    x_ref, m_ref, bias_ref,
    ln1a_ref, ln1b_ref,
    wq_ref, bq_ref, wk_ref, bk_ref, wv_ref, bv_ref, wo_ref, bo_ref,
    ln2a_ref, ln2b_ref,
    w1_ref, b1_ref, w2_ref, b2_ref,
    o_ref,
    *, nb,
):
    """Processes `nb` batch elements per grid step.

    x_ref:    (nb*T, D) f32     m_ref: (nb*S, D) f32     bias_ref: (nb, 1, S) f32 additive mask
    wq/wk/wv: (H, D, DK) bf16   wo: (H, DK, D) bf16      bq/bk/bv: (H, DK) f32
    """
    f32 = jnp.float32
    bf16 = jnp.bfloat16

    x = x_ref[...]                                     # (nb*T, D) f32
    m = m_ref[...]                                     # (nb*S, D) f32

    # ---- Sublayer 0: x + src_attn(LN(x), m, m, mask) ----
    y = _layer_norm_in_kernel(x, ln1a_ref[...], ln1b_ref[...])
    y_b = y.astype(bf16)
    m_b = m.astype(bf16)

    scale = f32(1.0 / (DK ** 0.5))
    attn = [jnp.zeros((T, D), f32) for _ in range(nb)]

    for h in range(H):  # static head loop, per-head weights indexed on the leading axis
        qh_all = jnp.dot(y_b, wq_ref[h], preferred_element_type=f32) + bq_ref[h]  # (nb*T, DK)
        kh_all = jnp.dot(m_b, wk_ref[h], preferred_element_type=f32) + bk_ref[h]  # (nb*S, DK)
        vh_all = jnp.dot(m_b, wv_ref[h], preferred_element_type=f32) + bv_ref[h]  # (nb*S, DK)
        for b in range(nb):  # static batch loop (row slices, 8-aligned)
            qh = qh_all[b * T:(b + 1) * T].astype(bf16)       # (T, DK)
            kh = kh_all[b * S:(b + 1) * S].astype(bf16)       # (S, DK)
            vh = vh_all[b * S:(b + 1) * S].astype(bf16)       # (S, DK)
            # q @ k^T without materializing a transpose: contract last dim with last dim.
            scores = lax.dot_general(
                qh, kh, (((1,), (1,)), ((), ())),
                preferred_element_type=f32) * scale            # (T, S)
            scores = scores + bias_ref[b]                      # additive mask, (1,S) bcast
            smax = jnp.max(scores, axis=-1, keepdims=True)
            e = jnp.exp(scores - smax)
            p = e * pl.reciprocal(jnp.sum(e, axis=-1, keepdims=True), approx=True)
            ctx = jnp.dot(p.astype(bf16), vh, preferred_element_type=f32)          # (T, DK)
            attn[b] = attn[b] + jnp.dot(ctx.astype(bf16), wo_ref[h],
                                        preferred_element_type=f32)                # (T, D)

    bo = bo_ref[...]                                   # (1, D)
    x2_list = [x[b * T:(b + 1) * T] + attn[b] + bo for b in range(nb)]
    x2 = x2_list[0] if nb == 1 else jnp.concatenate(x2_list, axis=0)   # (nb*T, D)

    # ---- Sublayer 1: x2 + feed_forward(LN(x2)) ----
    y2 = _layer_norm_in_kernel(x2, ln2a_ref[...], ln2b_ref[...]).astype(bf16)
    h1 = jnp.dot(y2, w1_ref[...], preferred_element_type=f32) + b1_ref[...]
    h1 = jnp.maximum(h1, 0.0).astype(bf16)             # ReLU
    ff = jnp.dot(h1, w2_ref[...], preferred_element_type=f32) + b2_ref[...]

    o_ref[...] = x2 + ff


def decoder_layer(x, memory, src_mask, params):
    (ln1a, ln1b, wq, bq, wk, bk, wv, bv, wo, bo,
     ln2a, ln2b, w1, b1, w2, b2) = params

    bf16 = jnp.bfloat16
    # Per-head weight layout (head axis leading) so the kernel never lane-slices.
    wq3 = wq.reshape(D, H, DK).transpose(1, 0, 2).astype(bf16)   # (H, D, DK)
    wk3 = wk.reshape(D, H, DK).transpose(1, 0, 2).astype(bf16)   # (H, D, DK)
    wv3 = wv.reshape(D, H, DK).transpose(1, 0, 2).astype(bf16)   # (H, D, DK)
    wo3 = wo.reshape(H, DK, D).astype(bf16)                      # (H, DK, D)
    bq3 = bq.reshape(H, DK)                                      # f32
    bk3 = bk.reshape(H, DK)
    bv3 = bv.reshape(H, DK)
    w1b = w1.astype(bf16)
    w2b = w2.astype(bf16)

    # Additive float mask: 0 where attend, -1e9 where masked.
    mask_bias = (src_mask.astype(jnp.float32) - 1.0) * 1e9       # (B, 1, S)

    # Flatten batch into rows so LN / projections / FFN run on one (nb*T, D) slab.
    x2d = x.reshape(B * T, D)
    m2d = memory.reshape(B * S, D)

    # Grid choice: collapse on 1-TC chips (v5e/v6e), keep grid=(B,) parallel on 2-TC v7x.
    nb = 1 if _tensorcores_per_chip() >= 2 else B
    steps = B // nb

    def full(a):
        return pl.BlockSpec(a.shape, lambda g, _nd=a.ndim: (0,) * _nd)

    in_specs = [
        pl.BlockSpec((nb * T, D), lambda g: (g, 0)),     # x slab
        pl.BlockSpec((nb * S, D), lambda g: (g, 0)),     # memory slab
        pl.BlockSpec((nb, 1, S), lambda g: (g, 0, 0)),   # additive mask
        full(ln1a), full(ln1b),
        full(wq3), full(bq3), full(wk3), full(bk3), full(wv3), full(bv3),
        full(wo3), full(bo),
        full(ln2a), full(ln2b),
        full(w1b), full(b1), full(w2b), full(b2),
    ]

    out2d = pl.pallas_call(
        functools.partial(decoder_layer_kernel, nb=nb),
        out_shape=jax.ShapeDtypeStruct((B * T, D), jnp.float32),
        grid_spec=pltpu.PrefetchScalarGridSpec(
            num_scalar_prefetch=0,
            grid=(steps,),
            in_specs=in_specs,
            out_specs=pl.BlockSpec((nb * T, D), lambda g: (g, 0)),
        ),
        compiler_params=pltpu.CompilerParams(
            dimension_semantics=("parallel",)),
    )(x2d, m2d, mask_bias, ln1a, ln1b, wq3, bq3, wk3, bk3, wv3, bv3, wo3, bo,
      ln2a, ln2b, w1b, b1, w2b, b2)

    return out2d.reshape(B, T, D)


def decoder_layer_ref(x, memory, src_mask, params):
    """Pure-JAX f32 reference for verification (original weight layout)."""
    (ln1a, ln1b, wq, bq, wk, bk, wv, bv, wo, bo,
     ln2a, ln2b, w1, b1, w2, b2) = params

    y = _layer_norm_ref(x, ln1a, ln1b)
    q = y @ wq + bq
    k = memory @ wk + bk
    v = memory @ wv + bv
    qh = q.reshape(B, T, H, DK).transpose(0, 2, 1, 3)   # (B,H,T,DK)
    kh = k.reshape(B, S, H, DK).transpose(0, 2, 1, 3)
    vh = v.reshape(B, S, H, DK).transpose(0, 2, 1, 3)
    scores = jnp.einsum("bhtd,bhsd->bhts", qh, kh) / (DK ** 0.5)
    scores = jnp.where(src_mask[:, None, :, :] == 0, -1e9, scores)
    p = jax.nn.softmax(scores, axis=-1)
    ah = jnp.einsum("bhts,bhsd->bhtd", p, vh)
    attn = ah.transpose(0, 2, 1, 3).reshape(B, T, D) @ wo + bo
    x2 = x + attn
    y2 = _layer_norm_ref(x2, ln2a, ln2b)
    ff = jnp.maximum(y2 @ w1 + b1, 0.0) @ w2 + b2
    return x2 + ff


def make_params(key):
    ks = jax.random.split(key, 10)
    std = 0.1
    ln1a = jnp.ones((1, D), jnp.float32)
    ln1b = jnp.zeros((1, D), jnp.float32)
    ln2a = jnp.ones((1, D), jnp.float32)
    ln2b = jnp.zeros((1, D), jnp.float32)
    wq = std * jax.random.normal(ks[0], (D, D), jnp.float32)
    wk = std * jax.random.normal(ks[1], (D, D), jnp.float32)
    wv = std * jax.random.normal(ks[2], (D, D), jnp.float32)
    wo = std * jax.random.normal(ks[3], (D, D), jnp.float32)
    bq = std * jax.random.normal(ks[4], (1, D), jnp.float32)
    bk = std * jax.random.normal(ks[5], (1, D), jnp.float32)
    bv = std * jax.random.normal(ks[6], (1, D), jnp.float32)
    bo = std * jax.random.normal(ks[7], (1, D), jnp.float32)
    w1 = std * jax.random.normal(ks[8], (D, DFF), jnp.float32)
    b1 = jnp.zeros((1, DFF), jnp.float32)
    w2 = std * jax.random.normal(ks[9], (DFF, D), jnp.float32)
    b2 = jnp.zeros((1, D), jnp.float32)
    return (ln1a, ln1b, wq, bq, wk, bk, wv, bv, wo, bo,
            ln2a, ln2b, w1, b1, w2, b2)


if __name__ == "__main__":
    key = jax.random.PRNGKey(0)
    kx, km, kmask, kp = jax.random.split(key, 4)

    x = jax.random.normal(kx, (B, T, D), jnp.float32)
    memory = jax.random.normal(km, (B, S, D), jnp.float32)
    # mask: 1 = attend, 0 = masked; keep at least the first position valid.
    src_mask = (jax.random.uniform(kmask, (B, 1, S)) > 0.25).astype(jnp.int32)
    src_mask = src_mask.at[:, :, 0].set(1)

    params = make_params(kp)

    out = decoder_layer(x, memory, src_mask, params)
    out = jax.block_until_ready(out)

    ref = decoder_layer_ref(x, memory, src_mask, params)
    assert out.shape == (B, T, D)
    # Tolerance covers bf16 matmul operands (f32 accumulation) + approx reciprocals.
    assert jnp.allclose(out, ref, rtol=1e-2, atol=1e-2), "mismatch vs JAX reference"

    print("KERNEL_OK")
</pallas_src>

<mosaic_0001>
module attributes {stable_mosaic.version = 11 : i64} {
  func.func @decoder_layer_kernel(%arg0: i32, %arg1: memref<16x32xf32, #tpu.memory_space<vmem>>, %arg2: memref<16x32xf32, #tpu.memory_space<vmem>>, %arg3: memref<2x1x8xf32, #tpu.memory_space<vmem>>, %arg4: memref<1x32xf32, #tpu.memory_space<vmem>>, %arg5: memref<1x32xf32, #tpu.memory_space<vmem>>, %arg6: memref<4x32x8xbf16, #tpu.memory_space<vmem>>, %arg7: memref<4x8xf32, #tpu.memory_space<vmem>>, %arg8: memref<4x32x8xbf16, #tpu.memory_space<vmem>>, %arg9: memref<4x8xf32, #tpu.memory_space<vmem>>, %arg10: memref<4x32x8xbf16, #tpu.memory_space<vmem>>, %arg11: memref<4x8xf32, #tpu.memory_space<vmem>>, %arg12: memref<4x8x32xbf16, #tpu.memory_space<vmem>>, %arg13: memref<1x32xf32, #tpu.memory_space<vmem>>, %arg14: memref<1x32xf32, #tpu.memory_space<vmem>>, %arg15: memref<1x32xf32, #tpu.memory_space<vmem>>, %arg16: memref<32x64xbf16, #tpu.memory_space<vmem>>, %arg17: memref<1x64xf32, #tpu.memory_space<vmem>>, %arg18: memref<64x32xbf16, #tpu.memory_space<vmem>>, %arg19: memref<1x32xf32, #tpu.memory_space<vmem>>, %arg20: memref<16x32xf32, #tpu.memory_space<vmem>>) attributes {dimension_semantics = [#tpu.dimension_semantics<parallel>], iteration_bounds = array<i64: 1>, scalar_prefetch = 0 : i64, scratch_operands = 0 : i64, tpu.core_type = #tpu.core_type<tc>, window_params = [{transform_indices = @transform_0, window_bounds = array<i64: 16, 32>}, {transform_indices = @transform_1, window_bounds = array<i64: 16, 32>}, {transform_indices = @transform_2, window_bounds = array<i64: 2, 1, 8>}, {pipeline_mode = #tpu.pipeline_mode<synchronous>, transform_indices = @transform_3, window_bounds = array<i64: 1, 32>}, {pipeline_mode = #tpu.pipeline_mode<synchronous>, transform_indices = @transform_4, window_bounds = array<i64: 1, 32>}, {pipeline_mode = #tpu.pipeline_mode<synchronous>, transform_indices = @transform_5, window_bounds = array<i64: 4, 32, 8>}, {pipeline_mode = #tpu.pipeline_mode<synchronous>, transform_indices = @transform_6, window_bounds = array<i64: 4, 8>}, {pipeline_mode = #tpu.pipeline_mode<synchronous>, transform_indices = @transform_7, window_bounds = array<i64: 4, 32, 8>}, {pipeline_mode = #tpu.pipeline_mode<synchronous>, transform_indices = @transform_8, window_bounds = array<i64: 4, 8>}, {pipeline_mode = #tpu.pipeline_mode<synchronous>, transform_indices = @transform_9, window_bounds = array<i64: 4, 32, 8>}, {pipeline_mode = #tpu.pipeline_mode<synchronous>, transform_indices = @transform_10, window_bounds = array<i64: 4, 8>}, {pipeline_mode = #tpu.pipeline_mode<synchronous>, transform_indices = @transform_11, window_bounds = array<i64: 4, 8, 32>}, {pipeline_mode = #tpu.pipeline_mode<synchronous>, transform_indices = @transform_12, window_bounds = array<i64: 1, 32>}, {pipeline_mode = #tpu.pipeline_mode<synchronous>, transform_indices = @transform_13, window_bounds = array<i64: 1, 32>}, {pipeline_mode = #tpu.pipeline_mode<synchronous>, transform_indices = @transform_14, window_bounds = array<i64: 1, 32>}, {pipeline_mode = #tpu.pipeline_mode<synchronous>, transform_indices = @transform_15, window_bounds = array<i64: 32, 64>}, {pipeline_mode = #tpu.pipeline_mode<synchronous>, transform_indices = @transform_16, window_bounds = array<i64: 1, 64>}, {pipeline_mode = #tpu.pipeline_mode<synchronous>, transform_indices = @transform_17, window_bounds = array<i64: 64, 32>}, {pipeline_mode = #tpu.pipeline_mode<synchronous>, transform_indices = @transform_18, window_bounds = array<i64: 1, 32>}, {transform_indices = @transform_19, window_bounds = array<i64: 16, 32>}]} {
    %c0 = arith.constant 0 : index
    %c0_0 = arith.constant 0 : index
    %0 = vector.load %arg1[%c0, %c0_0] : memref<16x32xf32, #tpu.memory_space<vmem>>, vector<16x32xf32>
    %c0_1 = arith.constant 0 : index
    %c0_2 = arith.constant 0 : index
    %1 = vector.load %arg2[%c0_1, %c0_2] : memref<16x32xf32, #tpu.memory_space<vmem>>, vector<16x32xf32>
    %c0_3 = arith.constant 0 : index
    %c0_4 = arith.constant 0 : index
    %2 = vector.load %arg4[%c0_3, %c0_4] : memref<1x32xf32, #tpu.memory_space<vmem>>, vector<1x32xf32>
    %c0_5 = arith.constant 0 : index
    %c0_6 = arith.constant 0 : index
    %3 = vector.load %arg5[%c0_5, %c0_6] : memref<1x32xf32, #tpu.memory_space<vmem>>, vector<1x32xf32>
    %cst = arith.constant dense<0.000000e+00> : vector<16xf32>
    %4 = vector.multi_reduction <add>, %0, %cst [1] : vector<16x32xf32> to vector<16xf32>
    %5 = vector.shape_cast %4 : vector<16xf32> to vector<16x1xf32>
    %cst_7 = arith.constant 3.200000e+01 : f32
    %6 = vector.broadcast %cst_7 : f32 to vector<16x1xf32>
    %7 = arith.divf %5, %6 : vector<16x1xf32>
    %8 = vector.broadcast %7 : vector<16x1xf32> to vector<16x32xf32>
    %9 = arith.subf %0, %8 : vector<16x32xf32>
    %10 = arith.mulf %9, %9 : vector<16x32xf32>
    %cst_8 = arith.constant dense<0.000000e+00> : vector<16xf32>
    %11 = vector.multi_reduction <add>, %10, %cst_8 [1] : vector<16x32xf32> to vector<16xf32>
    %12 = vector.shape_cast %11 : vector<16xf32> to vector<16x1xf32>
    %cst_9 = arith.constant 3.100000e+01 : f32
    %13 = vector.broadcast %cst_9 : f32 to vector<16x1xf32>
    %14 = arith.divf %12, %13 : vector<16x1xf32>
    %15 = math.sqrt %14 : vector<16x1xf32>
    %cst_10 = arith.constant 9.99999997E-7 : f32
    %16 = vector.broadcast %cst_10 : f32 to vector<16x1xf32>
    %17 = arith.addf %15, %16 : vector<16x1xf32>
    %18 = tpu.reciprocal %17 {approx = true} : vector<16x1xf32> -> vector<16x1xf32>
    %19 = vector.broadcast %7 : vector<16x1xf32> to vector<16x32xf32>
    %20 = arith.subf %0, %19 : vector<16x32xf32>
    %21 = vector.broadcast %2 : vector<1x32xf32> to vector<16x32xf32>
    %22 = arith.mulf %21, %20 : vector<16x32xf32>
    %23 = vector.broadcast %18 : vector<16x1xf32> to vector<16x32xf32>
    %24 = arith.mulf %22, %23 : vector<16x32xf32>
    %25 = vector.broadcast %3 : vector<1x32xf32> to vector<16x32xf32>
    %26 = arith.addf %24, %25 : vector<16x32xf32>
    %27 = arith.truncf %26 : vector<16x32xf32> to vector<16x32xbf16>
    %28 = arith.truncf %1 : vector<16x32xf32> to vector<16x32xbf16>
    %cst_11 = arith.constant 0.000000e+00 : f32
    %29 = vector.broadcast %cst_11 : f32 to vector<8x32xf32>
    %cst_12 = arith.constant 0.000000e+00 : f32
    %30 = vector.broadcast %cst_12 : f32 to vector<8x32xf32>
    %c0_13 = arith.constant 0 : index
    %c0_14 = arith.constant 0 : index
    %c0_15 = arith.constant 0 : index
    %31 = vector.load %arg6[%c0_13, %c0_14, %c0_15] : memref<4x32x8xbf16, #tpu.memory_space<vmem>>, vector<1x32x8xbf16>
    %32 = vector.shape_cast %31 : vector<1x32x8xbf16> to vector<32x8xbf16>
    %cst_16 = arith.constant dense<0.000000e+00> : vector<16x8xf32>
    %33 = tpu.matmul %27, %32, %cst_16 {dimension_numbers = #tpu.dot_dimension_numbers<[1], [0], [0], [1], [0, 0, 1, 1], [], []>} : vector<16x32xbf16>, vector<32x8xbf16>, vector<16x8xf32> -> vector<16x8xf32>
    %c0_17 = arith.constant 0 : index
    %c0_18 = arith.constant 0 : index
    %34 = vector.load %arg7[%c0_17, %c0_18] : memref<4x8xf32, #tpu.memory_space<vmem>>, vector<1x8xf32>
    %35 = vector.shape_cast %34 : vector<1x8xf32> to vector<8xf32>
    %36 = vector.shape_cast %35 : vector<8xf32> to vector<1x8xf32>
    %37 = vector.broadcast %36 : vector<1x8xf32> to vector<16x8xf32>
    %38 = arith.addf %33, %37 : vector<16x8xf32>
    %c0_19 = arith.constant 0 : index
    %c0_20 = arith.constant 0 : index
    %c0_21 = arith.constant 0 : index
    %39 = vector.load %arg8[%c0_19, %c0_20, %c0_21] : memref<4x32x8xbf16, #tpu.memory_space<vmem>>, vector<1x32x8xbf16>
    %40 = vector.shape_cast %39 : vector<1x32x8xbf16> to vector<32x8xbf16>
    %cst_22 = arith.constant dense<0.000000e+00> : vector<16x8xf32>
    %41 = tpu.matmul %28, %40, %cst_22 {dimension_numbers = #tpu.dot_dimension_numbers<[1], [0], [0], [1], [0, 0, 1, 1], [], []>} : vector<16x32xbf16>, vector<32x8xbf16>, vector<16x8xf32> -> vector<16x8xf32>
    %c0_23 = arith.constant 0 : index
    %c0_24 = arith.constant 0 : index
    %42 = vector.load %arg9[%c0_23, %c0_24] : memref<4x8xf32, #tpu.memory_space<vmem>>, vector<1x8xf32>
    %43 = vector.shape_cast %42 : vector<1x8xf32> to vector<8xf32>
    %44 = vector.shape_cast %43 : vector<8xf32> to vector<1x8xf32>
    %45 = vector.broadcast %44 : vector<1x8xf32> to vector<16x8xf32>
    %46 = arith.addf %41, %45 : vector<16x8xf32>
    %c0_25 = arith.constant 0 : index
    %c0_26 = arith.constant 0 : index
    %c0_27 = arith.constant 0 : index
    %47 = vector.load %arg10[%c0_25, %c0_26, %c0_27] : memref<4x32x8xbf16, #tpu.memory_space<vmem>>, vector<1x32x8xbf16>
    %48 = vector.shape_cast %47 : vector<1x32x8xbf16> to vector<32x8xbf16>
    %cst_28 = arith.constant dense<0.000000e+00> : vector<16x8xf32>
    %49 = tpu.matmul %28, %48, %cst_28 {dimension_numbers = #tpu.dot_dimension_numbers<[1], [0], [0], [1], [0, 0, 1, 1], [], []>} : vector<16x32xbf16>, vector<32x8xbf16>, vector<16x8xf32> -> vector<16x8xf32>
    %c0_29 = arith.constant 0 : index
    %c0_30 = arith.constant 0 : index
    %50 = vector.load %arg11[%c0_29, %c0_30] : memref<4x8xf32, #tpu.memory_space<vmem>>, vector<1x8xf32>
    %51 = vector.shape_cast %50 : vector<1x8xf32> to vector<8xf32>
    %52 = vector.shape_cast %51 : vector<8xf32> to vector<1x8xf32>
    %53 = vector.broadcast %52 : vector<1x8xf32> to vector<16x8xf32>
    %54 = arith.addf %49, %53 : vector<16x8xf32>
    %55 = vector.extract_strided_slice %38 {offsets = [0, 0], sizes = [8, 8], strides = [1, 1]} : vector<16x8xf32> to vector<8x8xf32>
    %56 = arith.truncf %55 : vector<8x8xf32> to vector<8x8xbf16>
    %57 = vector.extract_strided_slice %46 {offsets = [0, 0], sizes = [8, 8], strides = [1, 1]} : vector<16x8xf32> to vector<8x8xf32>
    %58 = arith.truncf %57 : vector<8x8xf32> to vector<8x8xbf16>
    %59 = vector.extract_strided_slice %54 {offsets = [0, 0], sizes = [8, 8], strides = [1, 1]} : vector<16x8xf32> to vector<8x8xf32>
    %60 = arith.truncf %59 : vector<8x8xf32> to vector<8x8xbf16>
    %cst_31 = arith.constant dense<0.000000e+00> : vector<8x8xf32>
    %61 = tpu.matmul %56, %58, %cst_31 {dimension_numbers = #tpu.dot_dimension_numbers<[1], [1], [0], [0], [0, 0, 1, 0], [], []>} : vector<8x8xbf16>, vector<8x8xbf16>, vector<8x8xf32> -> vector<8x8xf32>
    %cst_32 = arith.constant 0.353553385 : f32
    %62 = vector.broadcast %cst_32 : f32 to vector<8x8xf32>
    %63 = arith.mulf %61, %62 : vector<8x8xf32>
    %c0_33 = arith.constant 0 : index
    %c0_34 = arith.constant 0 : index
    %c0_35 = arith.constant 0 : index
    %64 = vector.load %arg3[%c0_33, %c0_34, %c0_35] : memref<2x1x8xf32, #tpu.memory_space<vmem>>, vector<1x1x8xf32>
    %65 = vector.shape_cast %64 : vector<1x1x8xf32> to vector<1x8xf32>
    %66 = vector.broadcast %65 : vector<1x8xf32> to vector<8x8xf32>
    %67 = arith.addf %63, %66 : vector<8x8xf32>
    %cst_36 = arith.constant dense<0xFF800000> : vector<8xf32>
    %68 = vector.multi_reduction <maximumf>, %67, %cst_36 [1] : vector<8x8xf32> to vector<8xf32>
    %69 = vector.shape_cast %68 : vector<8xf32> to vector<8x1xf32>
    %70 = vector.broadcast %69 : vector<8x1xf32> to vector<8x8xf32>
    %71 = arith.subf %67, %70 : vector<8x8xf32>
    %72 = math.exp %71 : vector<8x8xf32>
    %cst_37 = arith.constant dense<0.000000e+00> : vector<8xf32>
    %73 = vector.multi_reduction <add>, %72, %cst_37 [1] : vector<8x8xf32> to vector<8xf32>
    %74 = vector.shape_cast %73 : vector<8xf32> to vector<8x1xf32>
    %75 = tpu.reciprocal %74 {approx = true} : vector<8x1xf32> -> vector<8x1xf32>
    %76 = vector.broadcast %75 : vector<8x1xf32> to vector<8x8xf32>
    %77 = arith.mulf %72, %76 : vector<8x8xf32>
    %78 = arith.truncf %77 : vector<8x8xf32> to vector<8x8xbf16>
    %cst_38 = arith.constant dense<0.000000e+00> : vector<8x8xf32>
    %79 = tpu.matmul %78, %60, %cst_38 {dimension_numbers = #tpu.dot_dimension_numbers<[1], [0], [0], [1], [0, 0, 1, 1], [], []>} : vector<8x8xbf16>, vector<8x8xbf16>, vector<8x8xf32> -> vector<8x8xf32>
    %80 = arith.truncf %79 : vector<8x8xf32> to vector<8x8xbf16>
    %c0_39 = arith.constant 0 : index
    %c0_40 = arith.constant 0 : index
    %c0_41 = arith.constant 0 : index
    %81 = vector.load %arg12[%c0_39, %c0_40, %c0_41] : memref<4x8x32xbf16, #tpu.memory_space<vmem>>, vector<1x8x32xbf16>
    %82 = vector.shape_cast %81 : vector<1x8x32xbf16> to vector<8x32xbf16>
    %cst_42 = arith.constant dense<0.000000e+00> : vector<8x32xf32>
    %83 = tpu.matmul %80, %82, %cst_42 {dimension_numbers = #tpu.dot_dimension_numbers<[1], [0], [0], [1], [0, 0, 1, 1], [], []>} : vector<8x8xbf16>, vector<8x32xbf16>, vector<8x32xf32> -> vector<8x32xf32>
    %84 = arith.addf %29, %83 : vector<8x32xf32>
    %85 = vector.extract_strided_slice %38 {offsets = [8, 0], sizes = [8, 8], strides = [1, 1]} : vector<16x8xf32> to vector<8x8xf32>
    %86 = arith.truncf %85 : vector<8x8xf32> to vector<8x8xbf16>
    %87 = vector.extract_strided_slice %46 {offsets = [8, 0], sizes = [8, 8], strides = [1, 1]} : vector<16x8xf32> to vector<8x8xf32>
    %88 = arith.truncf %87 : vector<8x8xf32> to vector<8x8xbf16>
    %89 = vector.extract_strided_slice %54 {offsets = [8, 0], sizes = [8, 8], strides = [1, 1]} : vector<16x8xf32> to vector<8x8xf32>
    %90 = arith.truncf %89 : vector<8x8xf32> to vector<8x8xbf16>
    %cst_43 = arith.constant dense<0.000000e+00> : vector<8x8xf32>
    %91 = tpu.matmul %86, %88, %cst_43 {dimension_numbers = #tpu.dot_dimension_numbers<[1], [1], [0], [0], [0, 0, 1, 0], [], []>} : vector<8x8xbf16>, vector<8x8xbf16>, vector<8x8xf32> -> vector<8x8xf32>
    %cst_44 = arith.constant 0.353553385 : f32
    %92 = vector.broadcast %cst_44 : f32 to vector<8x8xf32>
    %93 = arith.mulf %91, %92 : vector<8x8xf32>
    %c1 = arith.constant 1 : index
    %c0_45 = arith.constant 0 : index
    %c0_46 = arith.constant 0 : index
    %94 = vector.load %arg3[%c1, %c0_45, %c0_46] : memref<2x1x8xf32, #tpu.memory_space<vmem>>, vector<1x1x8xf32>
    %95 = vector.shape_cast %94 : vector<1x1x8xf32> to vector<1x8xf32>
    %96 = vector.broadcast %95 : vector<1x8xf32> to vector<8x8xf32>
    %97 = arith.addf %93, %96 : vector<8x8xf32>
    %cst_47 = arith.constant dense<0xFF800000> : vector<8xf32>
    %98 = vector.multi_reduction <maximumf>, %97, %cst_47 [1] : vector<8x8xf32> to vector<8xf32>
    %99 = vector.shape_cast %98 : vector<8xf32> to vector<8x1xf32>
    %100 = vector.broadcast %99 : vector<8x1xf32> to vector<8x8xf32>
    %101 = arith.subf %97, %100 : vector<8x8xf32>
    %102 = math.exp %101 : vector<8x8xf32>
    %cst_48 = arith.constant dense<0.000000e+00> : vector<8xf32>
    %103 = vector.multi_reduction <add>, %102, %cst_48 [1] : vector<8x8xf32> to vector<8xf32>
    %104 = vector.shape_cast %103 : vector<8xf32> to vector<8x1xf32>
    %105 = tpu.reciprocal %104 {approx = true} : vector<8x1xf32> -> vector<8x1xf32>
    %106 = vector.broadcast %105 : vector<8x1xf32> to vector<8x8xf32>
    %107 = arith.mulf %102, %106 : vector<8x8xf32>
    %108 = arith.truncf %107 : vector<8x8xf32> to vector<8x8xbf16>
    %cst_49 = arith.constant dense<0.000000e+00> : vector<8x8xf32>
    %109 = tpu.matmul %108, %90, %cst_49 {dimension_numbers = #tpu.dot_dimension_numbers<[1], [0], [0], [1], [0, 0, 1, 1], [], []>} : vector<8x8xbf16>, vector<8x8xbf16>, vector<8x8xf32> -> vector<8x8xf32>
    %110 = arith.truncf %109 : vector<8x8xf32> to vector<8x8xbf16>
    %c0_50 = arith.constant 0 : index
    %c0_51 = arith.constant 0 : index
    %c0_52 = arith.constant 0 : index
    %111 = vector.load %arg12[%c0_50, %c0_51, %c0_52] : memref<4x8x32xbf16, #tpu.memory_space<vmem>>, vector<1x8x32xbf16>
    %112 = vector.shape_cast %111 : vector<1x8x32xbf16> to vector<8x32xbf16>
    %cst_53 = arith.constant dense<0.000000e+00> : vector<8x32xf32>
    %113 = tpu.matmul %110, %112, %cst_53 {dimension_numbers = #tpu.dot_dimension_numbers<[1], [0], [0], [1], [0, 0, 1, 1], [], []>} : vector<8x8xbf16>, vector<8x32xbf16>, vector<8x32xf32> -> vector<8x32xf32>
    %114 = arith.addf %30, %113 : vector<8x32xf32>
    %c1_54 = arith.constant 1 : index
    %c0_55 = arith.constant 0 : index
    %c0_56 = arith.constant 0 : index
    %115 = vector.load %arg6[%c1_54, %c0_55, %c0_56] : memref<4x32x8xbf16, #tpu.memory_space<vmem>>, vector<1x32x8xbf16>
    %116 = vector.shape_cast %115 : vector<1x32x8xbf16> to vector<32x8xbf16>
    %cst_57 = arith.constant dense<0.000000e+00> : vector<16x8xf32>
    %117 = tpu.matmul %27, %116, %cst_57 {dimension_numbers = #tpu.dot_dimension_numbers<[1], [0], [0], [1], [0, 0, 1, 1], [], []>} : vector<16x32xbf16>, vector<32x8xbf16>, vector<16x8xf32> -> vector<16x8xf32>
    %c1_58 = arith.constant 1 : index
    %c0_59 = arith.constant 0 : index
    %118 = vector.load %arg7[%c1_58, %c0_59] : memref<4x8xf32, #tpu.memory_space<vmem>>, vector<1x8xf32>
    %119 = vector.shape_cast %118 : vector<1x8xf32> to vector<8xf32>
    %120 = vector.shape_cast %119 : vector<8xf32> to vector<1x8xf32>
    %121 = vector.broadcast %120 : vector<1x8xf32> to vector<16x8xf32>
    %122 = arith.addf %117, %121 : vector<16x8xf32>
    %c1_60 = arith.constant 1 : index
    %c0_61 = arith.constant 0 : index
    %c0_62 = arith.constant 0 : index
    %123 = vector.load %arg8[%c1_60, %c0_61, %c0_62] : memref<4x32x8xbf16, #tpu.memory_space<vmem>>, vector<1x32x8xbf16>
    %124 = vector.shape_cast %123 : vector<1x32x8xbf16> to vector<32x8xbf16>
    %cst_63 = arith.constant dense<0.000000e+00> : vector<16x8xf32>
    %125 = tpu.matmul %28, %124, %cst_63 {dimension_numbers = #tpu.dot_dimension_numbers<[1], [0], [0], [1], [0, 0, 1, 1], [], []>} : vector<16x32xbf16>, vector<32x8xbf16>, vector<16x8xf32> -> vector<16x8xf32>
    %c1_64 = arith.constant 1 : index
    %c0_65 = arith.constant 0 : index
    %126 = vector.load %arg9[%c1_64, %c0_65] : memref<4x8xf32, #tpu.memory_space<vmem>>, vector<1x8xf32>
    %127 = vector.shape_cast %126 : vector<1x8xf32> to vector<8xf32>
    %128 = vector.shape_cast %127 : vector<8xf32> to vector<1x8xf32>
    %129 = vector.broadcast %128 : vector<1x8xf32> to vector<16x8xf32>
    %130 = arith.addf %125, %129 : vector<16x8xf32>
    %c1_66 = arith.constant 1 : index
    %c0_67 = arith.constant 0 : index
    %c0_68 = arith.constant 0 : index
    %131 = vector.load %arg10[%c1_66, %c0_67, %c0_68] : memref<4x32x8xbf16, #tpu.memory_space<vmem>>, vector<1x32x8xbf16>
    %132 = vector.shape_cast %131 : vector<1x32x8xbf16> to vector<32x8xbf16>
    %cst_69 = arith.constant dense<0.000000e+00> : vector<16x8xf32>
    %133 = tpu.matmul %28, %132, %cst_69 {dimension_numbers = #tpu.dot_dimension_numbers<[1], [0], [0], [1], [0, 0, 1, 1], [], []>} : vector<16x32xbf16>, vector<32x8xbf16>, vector<16x8xf32> -> vector<16x8xf32>
    %c1_70 = arith.constant 1 : index
    %c0_71 = arith.constant 0 : index
    %134 = vector.load %arg11[%c1_70, %c0_71] : memref<4x8xf32, #tpu.memory_space<vmem>>, vector<1x8xf32>
    %135 = vector.shape_cast %134 : vector<1x8xf32> to vector<8xf32>
    %136 = vector.shape_cast %135 : vector<8xf32> to vector<1x8xf32>
    %137 = vector.broadcast %136 : vector<1x8xf32> to vector<16x8xf32>
    %138 = arith.addf %133, %137 : vector<16x8xf32>
    %139 = vector.extract_strided_slice %122 {offsets = [0, 0], sizes = [8, 8], strides = [1, 1]} : vector<16x8xf32> to vector<8x8xf32>
    %140 = arith.truncf %139 : vector<8x8xf32> to vector<8x8xbf16>
    %141 = vector.extract_strided_slice %130 {offsets = [0, 0], sizes = [8, 8], strides = [1, 1]} : vector<16x8xf32> to vector<8x8xf32>
    %142 = arith.truncf %141 : vector<8x8xf32> to vector<8x8xbf16>
    %143 = vector.extract_strided_slice %138 {offsets = [0, 0], sizes = [8, 8], strides = [1, 1]} : vector<16x8xf32> to vector<8x8xf32>
    %144 = arith.truncf %143 : vector<8x8xf32> to vector<8x8xbf16>
    %cst_72 = arith.constant dense<0.000000e+00> : vector<8x8xf32>
    %145 = tpu.matmul %140, %142, %cst_72 {dimension_numbers = #tpu.dot_dimension_numbers<[1], [1], [0], [0], [0, 0, 1, 0], [], []>} : vector<8x8xbf16>, vector<8x8xbf16>, vector<8x8xf32> -> vector<8x8xf32>
    %cst_73 = arith.constant 0.353553385 : f32
    %146 = vector.broadcast %cst_73 : f32 to vector<8x8xf32>
    %147 = arith.mulf %145, %146 : vector<8x8xf32>
    %c0_74 = arith.constant 0 : index
    %c0_75 = arith.constant 0 : index
    %c0_76 = arith.constant 0 : index
    %148 = vector.load %arg3[%c0_74, %c0_75, %c0_76] : memref<2x1x8xf32, #tpu.memory_space<vmem>>, vector<1x1x8xf32>
    %149 = vector.shape_cast %148 : vector<1x1x8xf32> to vector<1x8xf32>
    %150 = vector.broadcast %149 : vector<1x8xf32> to vector<8x8xf32>
    %151 = arith.addf %147, %150 : vector<8x8xf32>
    %cst_77 = arith.constant dense<0xFF800000> : vector<8xf32>
    %152 = vector.multi_reduction <maximumf>, %151, %cst_77 [1] : vector<8x8xf32> to vector<8xf32>
    %153 = vector.shape_cast %152 : vector<8xf32> to vector<8x1xf32>
    %154 = vector.broadcast %153 : vector<8x1xf32> to vector<8x8xf32>
    %155 = arith.subf %151, %154 : vector<8x8xf32>
    %156 = math.exp %155 : vector<8x8xf32>
    %cst_78 = arith.constant dense<0.000000e+00> : vector<8xf32>
    %157 = vector.multi_reduction <add>, %156, %cst_78 [1] : vector<8x8xf32> to vector<8xf32>
    %158 = vector.shape_cast %157 : vector<8xf32> to vector<8x1xf32>
    %159 = tpu.reciprocal %158 {approx = true} : vector<8x1xf32> -> vector<8x1xf32>
    %160 = vector.broadcast %159 : vector<8x1xf32> to vector<8x8xf32>
    %161 = arith.mulf %156, %160 : vector<8x8xf32>
    %162 = arith.truncf %161 : vector<8x8xf32> to vector<8x8xbf16>
    %cst_79 = arith.constant dense<0.000000e+00> : vector<8x8xf32>
    %163 = tpu.matmul %162, %144, %cst_79 {dimension_numbers = #tpu.dot_dimension_numbers<[1], [0], [0], [1], [0, 0, 1, 1], [], []>} : vector<8x8xbf16>, vector<8x8xbf16>, vector<8x8xf32> -> vector<8x8xf32>
    %164 = arith.truncf %163 : vector<8x8xf32> to vector<8x8xbf16>
    %c1_80 = arith.constant 1 : index
    %c0_81 = arith.constant 0 : index
    %c0_82 = arith.constant 0 : index
    %165 = vector.load %arg12[%c1_80, %c0_81, %c0_82] : memref<4x8x32xbf16, #tpu.memory_space<vmem>>, vector<1x8x32xbf16>
    %166 = vector.shape_cast %165 : vector<1x8x32xbf16> to vector<8x32xbf16>
    %cst_83 = arith.constant dense<0.000000e+00> : vector<8x32xf32>
    %167 = tpu.matmul %164, %166, %cst_83 {dimension_numbers = #tpu.dot_dimension_numbers<[1], [0], [0], [1], [0, 0, 1, 1], [], []>} : vector<8x8xbf16>, vector<8x32xbf16>, vector<8x32xf32> -> vector<8x32xf32>
    %168 = arith.addf %84, %167 : vector<8x32xf32>
    %169 = vector.extract_strided_slice %122 {offsets = [8, 0], sizes = [8, 8], strides = [1, 1]} : vector<16x8xf32> to vector<8x8xf32>
    %170 = arith.truncf %169 : vector<8x8xf32> to vector<8x8xbf16>
    %171 = vector.extract_strided_slice %130 {offsets = [8, 0], sizes = [8, 8], strides = [1, 1]} : vector<16x8xf32> to vector<8x8xf32>
    %172 = arith.truncf %171 : vector<8x8xf32> to vector<8x8xbf16>
    %173 = vector.extract_strided_slice %138 {offsets = [8, 0], sizes = [8, 8], strides = [1, 1]} : vector<16x8xf32> to vector<8x8xf32>
    %174 = arith.truncf %173 : vector<8x8xf32> to vector<8x8xbf16>
    %cst_84 = arith.constant dense<0.000000e+00> : vector<8x8xf32>
    %175 = tpu.matmul %170, %172, %cst_84 {dimension_numbers = #tpu.dot_dimension_numbers<[1], [1], [0], [0], [0, 0, 1, 0], [], []>} : vector<8x8xbf16>, vector<8x8xbf16>, vector<8x8xf32> -> vector<8x8xf32>
    %cst_85 = arith.constant 0.353553385 : f32
    %176 = vector.broadcast %cst_85 : f32 to vector<8x8xf32>
    %177 = arith.mulf %175, %176 : vector<8x8xf32>
    %c1_86 = arith.constant 1 : index
    %c0_87 = arith.constant 0 : index
    %c0_88 = arith.constant 0 : index
    %178 = vector.load %arg3[%c1_86, %c0_87, %c0_88] : memref<2x1x8xf32, #tpu.memory_space<vmem>>, vector<1x1x8xf32>
    %179 = vector.shape_cast %178 : vector<1x1x8xf32> to vector<1x8xf32>
    %180 = vector.broadcast %179 : vector<1x8xf32> to vector<8x8xf32>
    %181 = arith.addf %177, %180 : vector<8x8xf32>
    %cst_89 = arith.constant dense<0xFF800000> : vector<8xf32>
    %182 = vector.multi_reduction <maximumf>, %181, %cst_89 [1] : vector<8x8xf32> to vector<8xf32>
    %183 = vector.shape_cast %182 : vector<8xf32> to vector<8x1xf32>
    %184 = vector.broadcast %183 : vector<8x1xf32> to vector<8x8xf32>
    %185 = arith.subf %181, %184 : vector<8x8xf32>
    %186 = math.exp %185 : vector<8x8xf32>
    %cst_90 = arith.constant dense<0.000000e+00> : vector<8xf32>
    %187 = vector.multi_reduction <add>, %186, %cst_90 [1] : vector<8x8xf32> to vector<8xf32>
    %188 = vector.shape_cast %187 : vector<8xf32> to vector<8x1xf32>
    %189 = tpu.reciprocal %188 {approx = true} : vector<8x1xf32> -> vector<8x1xf32>
    %190 = vector.broadcast %189 : vector<8x1xf32> to vector<8x8xf32>
    %191 = arith.mulf %186, %190 : vector<8x8xf32>
    %192 = arith.truncf %191 : vector<8x8xf32> to vector<8x8xbf16>
    %cst_91 = arith.constant dense<0.000000e+00> : vector<8x8xf32>
    %193 = tpu.matmul %192, %174, %cst_91 {dimension_numbers = #tpu.dot_dimension_numbers<[1], [0], [0], [1], [0, 0, 1, 1], [], []>} : vector<8x8xbf16>, vector<8x8xbf16>, vector<8x8xf32> -> vector<8x8xf32>
    %194 = arith.truncf %193 : vector<8x8xf32> to vector<8x8xbf16>
    %c1_92 = arith.constant 1 : index
    %c0_93 = arith.constant 0 : index
    %c0_94 = arith.constant 0 : index
    %195 = vector.load %arg12[%c1_92, %c0_93, %c0_94] : memref<4x8x32xbf16, #tpu.memory_space<vmem>>, vector<1x8x32xbf16>
    %196 = vector.shape_cast %195 : vector<1x8x32xbf16> to vector<8x32xbf16>
    %cst_95 = arith.constant dense<0.000000e+00> : vector<8x32xf32>
    %197 = tpu.matmul %194, %196, %cst_95 {dimension_numbers = #tpu.dot_dimension_numbers<[1], [0], [0], [1], [0, 0, 1, 1], [], []>} : vector<8x8xbf16>, vector<8x32xbf16>, vector<8x32xf32> -> vector<8x32xf32>
    %198 = arith.addf %114, %197 : vector<8x32xf32>
    %c2 = arith.constant 2 : index
    %c0_96 = arith.constant 0 : index
    %c0_97 = arith.constant 0 : index
    %199 = vector.load %arg6[%c2, %c0_96, %c0_97] : memref<4x32x8xbf16, #tpu.memory_space<vmem>>, vector<1x32x8xbf16>
    %200 = vector.shape_cast %199 : vector<1x32x8xbf16> to vector<32x8xbf16>
    %cst_98 = arith.constant dense<0.000000e+00> : vector<16x8xf32>
    %201 = tpu.matmul %27, %200, %cst_98 {dimension_numbers = #tpu.dot_dimension_numbers<[1], [0], [0], [1], [0, 0, 1, 1], [], []>} : vector<16x32xbf16>, vector<32x8xbf16>, vector<16x8xf32> -> vector<16x8xf32>
    %c2_99 = arith.constant 2 : index
    %c0_100 = arith.constant 0 : index
    %202 = vector.load %arg7[%c2_99, %c0_100] : memref<4x8xf32, #tpu.memory_space<vmem>>, vector<1x8xf32>
    %203 = vector.shape_cast %202 : vector<1x8xf32> to vector<8xf32>
    %204 = vector.shape_cast %203 : vector<8xf32> to vector<1x8xf32>
    %205 = vector.broadcast %204 : vector<1x8xf32> to vector<16x8xf32>
    %206 = arith.addf %201, %205 : vector<16x8xf32>
    %c2_101 = arith.constant 2 : index
    %c0_102 = arith.constant 0 : index
    %c0_103 = arith.constant 0 : index
    %207 = vector.load %arg8[%c2_101, %c0_102, %c0_103] : memref<4x32x8xbf16, #tpu.memory_space<vmem>>, vector<1x32x8xbf16>
    %208 = vector.shape_cast %207 : vector<1x32x8xbf16> to vector<32x8xbf16>
    %cst_104 = arith.constant dense<0.000000e+00> : vector<16x8xf32>
    %209 = tpu.matmul %28, %208, %cst_104 {dimension_numbers = #tpu.dot_dimension_numbers<[1], [0], [0], [1], [0, 0, 1, 1], [], []>} : vector<16x32xbf16>, vector<32x8xbf16>, vector<16x8xf32> -> vector<16x8xf32>
    %c2_105 = arith.constant 2 : index
    %c0_106 = arith.constant 0 : index
    %210 = vector.load %arg9[%c2_105, %c0_106] : memref<4x8xf32, #tpu.memory_space<vmem>>, vector<1x8xf32>
    %211 = vector.shape_cast %210 : vector<1x8xf32> to vector<8xf32>
    %212 = vector.shape_cast %211 : vector<8xf32> to vector<1x8xf32>
    %213 = vector.broadcast %212 : vector<1x8xf32> to vector<16x8xf32>
    %214 = arith.addf %209, %213 : vector<16x8xf32>
    %c2_107 = arith.constant 2 : index
    %c0_108 = arith.constant 0 : index
    %c0_109 = arith.constant 0 : index
    %215 = vector.load %arg10[%c2_107, %c0_108, %c0_109] : memref<4x32x8xbf16, #tpu.memory_space<vmem>>, vector<1x32x8xbf16>
    %216 = vector.shape_cast %215 : vector<1x32x8xbf16> to vector<32x8xbf16>
    %cst_110 = arith.constant dense<0.000000e+00> : vector<16x8xf32>
    %217 = tpu.matmul %28, %216, %cst_110 {dimension_numbers = #tpu.dot_dimension_numbers<[1], [0], [0], [1], [0, 0, 1, 1], [], []>} : vector<16x32xbf16>, vector<32x8xbf16>, vector<16x8xf32> -> vector<16x8xf32>
    %c2_111 = arith.constant 2 : index
    %c0_112 = arith.constant 0 : index
    %218 = vector.load %arg11[%c2_111, %c0_112] : memref<4x8xf32, #tpu.memory_space<vmem>>, vector<1x8xf32>
    %219 = vector.shape_cast %218 : vector<1x8xf32> to vector<8xf32>
    %220 = vector.shape_cast %219 : vector<8xf32> to vector<1x8xf32>
    %221 = vector.broadcast %220 : vector<1x8xf32> to vector<16x8xf32>
    %222 = arith.addf %217, %221 : vector<16x8xf32>
    %223 = vector.extract_strided_slice %206 {offsets = [0, 0], sizes = [8, 8], strides = [1, 1]} : vector<16x8xf32> to vector<8x8xf32>
    %224 = arith.truncf %223 : vector<8x8xf32> to vector<8x8xbf16>
    %225 = vector.extract_strided_slice %214 {offsets = [0, 0], sizes = [8, 8], strides = [1, 1]} : vector<16x8xf32> to vector<8x8xf32>
    %226 = arith.truncf %225 : vector<8x8xf32> to vector<8x8xbf16>
    %227 = vector.extract_strided_slice %222 {offsets = [0, 0], sizes = [8, 8], strides = [1, 1]} : vector<16x8xf32> to vector<8x8xf32>
    %228 = arith.truncf %227 : vector<8x8xf32> to vector<8x8xbf16>
    %cst_113 = arith.constant dense<0.000000e+00> : vector<8x8xf32>
    %229 = tpu.matmul %224, %226, %cst_113 {dimension_numbers = #tpu.dot_dimension_numbers<[1], [1], [0], [0], [0, 0, 1, 0], [], []>} : vector<8x8xbf16>, vector<8x8xbf16>, vector<8x8xf32> -> vector<8x8xf32>
    %cst_114 = arith.constant 0.353553385 : f32
    %230 = vector.broadcast %cst_114 : f32 to vector<8x8xf32>
    %231 = arith.mulf %229, %230 : vector<8x8xf32>
    %c0_115 = arith.constant 0 : index
    %c0_116 = arith.constant 0 : index
    %c0_117 = arith.constant 0 : index
    %232 = vector.load %arg3[%c0_115, %c0_116, %c0_117] : memref<2x1x8xf32, #tpu.memory_space<vmem>>, vector<1x1x8xf32>
    %233 = vector.shape_cast %232 : vector<1x1x8xf32> to vector<1x8xf32>
    %234 = vector.broadcast %233 : vector<1x8xf32> to vector<8x8xf32>
    %235 = arith.addf %231, %234 : vector<8x8xf32>
    %cst_118 = arith.constant dense<0xFF800000> : vector<8xf32>
    %236 = vector.multi_reduction <maximumf>, %235, %cst_118 [1] : vector<8x8xf32> to vector<8xf32>
    %237 = vector.shape_cast %236 : vector<8xf32> to vector<8x1xf32>
    %238 = vector.broadcast %237 : vector<8x1xf32> to vector<8x8xf32>
    %239 = arith.subf %235, %238 : vector<8x8xf32>
    %240 = math.exp %239 : vector<8x8xf32>
    %cst_119 = arith.constant dense<0.000000e+00> : vector<8xf32>
    %241 = vector.multi_reduction <add>, %240, %cst_119 [1] : vector<8x8xf32> to vector<8xf32>
    %242 = vector.shape_cast %241 : vector<8xf32> to vector<8x1xf32>
    %243 = tpu.reciprocal %242 {approx = true} : vector<8x1xf32> -> vector<8x1xf32>
    %244 = vector.broadcast %243 : vector<8x1xf32> to vector<8x8xf32>
    %245 = arith.mulf %240, %244 : vector<8x8xf32>
    %246 = arith.truncf %245 : vector<8x8xf32> to vector<8x8xbf16>
    %cst_120 = arith.constant dense<0.000000e+00> : vector<8x8xf32>
    %247 = tpu.matmul %246, %228, %cst_120 {dimension_numbers = #tpu.dot_dimension_numbers<[1], [0], [0], [1], [0, 0, 1, 1], [], []>} : vector<8x8xbf16>, vector<8x8xbf16>, vector<8x8xf32> -> vector<8x8xf32>
    %248 = arith.truncf %247 : vector<8x8xf32> to vector<8x8xbf16>
    %c2_121 = arith.constant 2 : index
    %c0_122 = arith.constant 0 : index
    %c0_123 = arith.constant 0 : index
    %249 = vector.load %arg12[%c2_121, %c0_122, %c0_123] : memref<4x8x32xbf16, #tpu.memory_space<vmem>>, vector<1x8x32xbf16>
    %250 = vector.shape_cast %249 : vector<1x8x32xbf16> to vector<8x32xbf16>
    %cst_124 = arith.constant dense<0.000000e+00> : vector<8x32xf32>
    %251 = tpu.matmul %248, %250, %cst_124 {dimension_numbers = #tpu.dot_dimension_numbers<[1], [0], [0], [1], [0, 0, 1, 1], [], []>} : vector<8x8xbf16>, vector<8x32xbf16>, vector<8x32xf32> -> vector<8x32xf32>
    %252 = arith.addf %168, %251 : vector<8x32xf32>
    %253 = vector.extract_strided_slice %206 {offsets = [8, 0], sizes = [8, 8], strides = [1, 1]} : vector<16x8xf32> to vector<8x8xf32>
    %254 = arith.truncf %253 : vector<8x8xf32> to vector<8x8xbf16>
    %255 = vector.extract_strided_slice %214 {offsets = [8, 0], sizes = [8, 8], strides = [1, 1]} : vector<16x8xf32> to vector<8x8xf32>
    %256 = arith.truncf %255 : vector<8x8xf32> to vector<8x8xbf16>
    %257 = vector.extract_strided_slice %222 {offsets = [8, 0], sizes = [8, 8], strides = [1, 1]} : vector<16x8xf32> to vector<8x8xf32>
    %258 = arith.truncf %257 : vector<8x8xf32> to vector<8x8xbf16>
    %cst_125 = arith.constant dense<0.000000e+00> : vector<8x8xf32>
    %259 = tpu.matmul %254, %256, %cst_125 {dimension_numbers = #tpu.dot_dimension_numbers<[1], [1], [0], [0], [0, 0, 1, 0], [], []>} : vector<8x8xbf16>, vector<8x8xbf16>, vector<8x8xf32> -> vector<8x8xf32>
    %cst_126 = arith.constant 0.353553385 : f32
    %260 = vector.broadcast %cst_126 : f32 to vector<8x8xf32>
    %261 = arith.mulf %259, %260 : vector<8x8xf32>
    %c1_127 = arith.constant 1 : index
    %c0_128 = arith.constant 0 : index
    %c0_129 = arith.constant 0 : index
    %262 = vector.load %arg3[%c1_127, %c0_128, %c0_129] : memref<2x1x8xf32, #tpu.memory_space<vmem>>, vector<1x1x8xf32>
    %263 = vector.shape_cast %262 : vector<1x1x8xf32> to vector<1x8xf32>
    %264 = vector.broadcast %263 : vector<1x8xf32> to vector<8x8xf32>
    %265 = arith.addf %261, %264 : vector<8x8xf32>
    %cst_130 = arith.constant dense<0xFF800000> : vector<8xf32>
    %266 = vector.multi_reduction <maximumf>, %265, %cst_130 [1] : vector<8x8xf32> to vector<8xf32>
    %267 = vector.shape_cast %266 : vector<8xf32> to vector<8x1xf32>
    %268 = vector.broadcast %267 : vector<8x1xf32> to vector<8x8xf32>
    %269 = arith.subf %265, %268 : vector<8x8xf32>
    %270 = math.exp %269 : vector<8x8xf32>
    %cst_131 = arith.constant dense<0.000000e+00> : vector<8xf32>
    %271 = vector.multi_reduction <add>, %270, %cst_131 [1] : vector<8x8xf32> to vector<8xf32>
    %272 = vector.shape_cast %271 : vector<8xf32> to vector<8x1xf32>
    %273 = tpu.reciprocal %272 {approx = true} : vector<8x1xf32> -> vector<8x1xf32>
    %274 = vector.broadcast %273 : vector<8x1xf32> to vector<8x8xf32>
    %275 = arith.mulf %270, %274 : vector<8x8xf32>
    %276 = arith.truncf %275 : vector<8x8xf32> to vector<8x8xbf16>
    %cst_132 = arith.constant dense<0.000000e+00> : vector<8x8xf32>
    %277 = tpu.matmul %276, %258, %cst_132 {dimension_numbers = #tpu.dot_dimension_numbers<[1], [0], [0], [1], [0, 0, 1, 1], [], []>} : vector<8x8xbf16>, vector<8x8xbf16>, vector<8x8xf32> -> vector<8x8xf32>
    %278 = arith.truncf %277 : vector<8x8xf32> to vector<8x8xbf16>
    %c2_133 = arith.constant 2 : index
    %c0_134 = arith.constant 0 : index
    %c0_135 = arith.constant 0 : index
    %279 = vector.load %arg12[%c2_133, %c0_134, %c0_135] : memref<4x8x32xbf16, #tpu.memory_space<vmem>>, vector<1x8x32xbf16>
    %280 = vector.shape_cast %279 : vector<1x8x32xbf16> to vector<8x32xbf16>
    %cst_136 = arith.constant dense<0.000000e+00> : vector<8x32xf32>
    %281 = tpu.matmul %278, %280, %cst_136 {dimension_numbers = #tpu.dot_dimension_numbers<[1], [0], [0], [1], [0, 0, 1, 1], [], []>} : vector<8x8xbf16>, vector<8x32xbf16>, vector<8x32xf32> -> vector<8x32xf32>
    %282 = arith.addf %198, %281 : vector<8x32xf32>
    %c3 = arith.constant 3 : index
    %c0_137 = arith.constant 0 : index
    %c0_138 = arith.constant 0 : index
    %283 = vector.load %arg6[%c3, %c0_137, %c0_138] : memref<4x32x8xbf16, #tpu.memory_space<vmem>>, vector<1x32x8xbf16>
    %284 = vector.shape_cast %283 : vector<1x32x8xbf16> to vector<32x8xbf16>
    %cst_139 = arith.constant dense<0.000000e+00> : vector<16x8xf32>
    %285 = tpu.matmul %27, %284, %cst_139 {dimension_numbers = #tpu.dot_dimension_numbers<[1], [0], [0], [1], [0, 0, 1, 1], [], []>} : vector<16x32xbf16>, vector<32x8xbf16>, vector<16x8xf32> -> vector<16x8xf32>
    %c3_140 = arith.constant 3 : index
    %c0_141 = arith.constant 0 : index
    %286 = vector.load %arg7[%c3_140, %c0_141] : memref<4x8xf32, #tpu.memory_space<vmem>>, vector<1x8xf32>
    %287 = vector.shape_cast %286 : vector<1x8xf32> to vector<8xf32>
    %288 = vector.shape_cast %287 : vector<8xf32> to vector<1x8xf32>
    %289 = vector.broadcast %288 : vector<1x8xf32> to vector<16x8xf32>
    %290 = arith.addf %285, %289 : vector<16x8xf32>
    %c3_142 = arith.constant 3 : index
    %c0_143 = arith.constant 0 : index
    %c0_144 = arith.constant 0 : index
    %291 = vector.load %arg8[%c3_142, %c0_143, %c0_144] : memref<4x32x8xbf16, #tpu.memory_space<vmem>>, vector<1x32x8xbf16>
    %292 = vector.shape_cast %291 : vector<1x32x8xbf16> to vector<32x8xbf16>
    %cst_145 = arith.constant dense<0.000000e+00> : vector<16x8xf32>
    %293 = tpu.matmul %28, %292, %cst_145 {dimension_numbers = #tpu.dot_dimension_numbers<[1], [0], [0], [1], [0, 0, 1, 1], [], []>} : vector<16x32xbf16>, vector<32x8xbf16>, vector<16x8xf32> -> vector<16x8xf32>
    %c3_146 = arith.constant 3 : index
    %c0_147 = arith.constant 0 : index
    %294 = vector.load %arg9[%c3_146, %c0_147] : memref<4x8xf32, #tpu.memory_space<vmem>>, vector<1x8xf32>
    %295 = vector.shape_cast %294 : vector<1x8xf32> to vector<8xf32>
    %296 = vector.shape_cast %295 : vector<8xf32> to vector<1x8xf32>
    %297 = vector.broadcast %296 : vector<1x8xf32> to vector<16x8xf32>
    %298 = arith.addf %293, %297 : vector<16x8xf32>
    %c3_148 = arith.constant 3 : index
    %c0_149 = arith.constant 0 : index
    %c0_150 = arith.constant 0 : index
    %299 = vector.load %arg10[%c3_148, %c0_149, %c0_150] : memref<4x32x8xbf16, #tpu.memory_space<vmem>>, vector<1x32x8xbf16>
    %300 = vector.shape_cast %299 : vector<1x32x8xbf16> to vector<32x8xbf16>
    %cst_151 = arith.constant dense<0.000000e+00> : vector<16x8xf32>
    %301 = tpu.matmul %28, %300, %cst_151 {dimension_numbers = #tpu.dot_dimension_numbers<[1], [0], [0], [1], [0, 0, 1, 1], [], []>} : vector<16x32xbf16>, vector<32x8xbf16>, vector<16x8xf32> -> vector<16x8xf32>
    %c3_152 = arith.constant 3 : index
    %c0_153 = arith.constant 0 : index
    %302 = vector.load %arg11[%c3_152, %c0_153] : memref<4x8xf32, #tpu.memory_space<vmem>>, vector<1x8xf32>
    %303 = vector.shape_cast %302 : vector<1x8xf32> to vector<8xf32>
    %304 = vector.shape_cast %303 : vector<8xf32> to vector<1x8xf32>
    %305 = vector.broadcast %304 : vector<1x8xf32> to vector<16x8xf32>
    %306 = arith.addf %301, %305 : vector<16x8xf32>
    %307 = vector.extract_strided_slice %290 {offsets = [0, 0], sizes = [8, 8], strides = [1, 1]} : vector<16x8xf32> to vector<8x8xf32>
    %308 = arith.truncf %307 : vector<8x8xf32> to vector<8x8xbf16>
    %309 = vector.extract_strided_slice %298 {offsets = [0, 0], sizes = [8, 8], strides = [1, 1]} : vector<16x8xf32> to vector<8x8xf32>
    %310 = arith.truncf %309 : vector<8x8xf32> to vector<8x8xbf16>
    %311 = vector.extract_strided_slice %306 {offsets = [0, 0], sizes = [8, 8], strides = [1, 1]} : vector<16x8xf32> to vector<8x8xf32>
    %312 = arith.truncf %311 : vector<8x8xf32> to vector<8x8xbf16>
    %cst_154 = arith.constant dense<0.000000e+00> : vector<8x8xf32>
    %313 = tpu.matmul %308, %310, %cst_154 {dimension_numbers = #tpu.dot_dimension_numbers<[1], [1], [0], [0], [0, 0, 1, 0], [], []>} : vector<8x8xbf16>, vector<8x8xbf16>, vector<8x8xf32> -> vector<8x8xf32>
    %cst_155 = arith.constant 0.353553385 : f32
    %314 = vector.broadcast %cst_155 : f32 to vector<8x8xf32>
    %315 = arith.mulf %313, %314 : vector<8x8xf32>
    %c0_156 = arith.constant 0 : index
    %c0_157 = arith.constant 0 : index
    %c0_158 = arith.constant 0 : index
    %316 = vector.load %arg3[%c0_156, %c0_157, %c0_158] : memref<2x1x8xf32, #tpu.memory_space<vmem>>, vector<1x1x8xf32>
    %317 = vector.shape_cast %316 : vector<1x1x8xf32> to vector<1x8xf32>
    %318 = vector.broadcast %317 : vector<1x8xf32> to vector<8x8xf32>
    %319 = arith.addf %315, %318 : vector<8x8xf32>
    %cst_159 = arith.constant dense<0xFF800000> : vector<8xf32>
    %320 = vector.multi_reduction <maximumf>, %319, %cst_159 [1] : vector<8x8xf32> to vector<8xf32>
    %321 = vector.shape_cast %320 : vector<8xf32> to vector<8x1xf32>
    %322 = vector.broadcast %321 : vector<8x1xf32> to vector<8x8xf32>
    %323 = arith.subf %319, %322 : vector<8x8xf32>
    %324 = math.exp %323 : vector<8x8xf32>
    %cst_160 = arith.constant dense<0.000000e+00> : vector<8xf32>
    %325 = vector.multi_reduction <add>, %324, %cst_160 [1] : vector<8x8xf32> to vector<8xf32>
    %326 = vector.shape_cast %325 : vector<8xf32> to vector<8x1xf32>
    %327 = tpu.reciprocal %326 {approx = true} : vector<8x1xf32> -> vector<8x1xf32>
    %328 = vector.broadcast %327 : vector<8x1xf32> to vector<8x8xf32>
    %329 = arith.mulf %324, %328 : vector<8x8xf32>
    %330 = arith.truncf %329 : vector<8x8xf32> to vector<8x8xbf16>
    %cst_161 = arith.constant dense<0.000000e+00> : vector<8x8xf32>
    %331 = tpu.matmul %330, %312, %cst_161 {dimension_numbers = #tpu.dot_dimension_numbers<[1], [0], [0], [1], [0, 0, 1, 1], [], []>} : vector<8x8xbf16>, vector<8x8xbf16>, vector<8x8xf32> -> vector<8x8xf32>
    %332 = arith.truncf %331 : vector<8x8xf32> to vector<8x8xbf16>
    %c3_162 = arith.constant 3 : index
    %c0_163 = arith.constant 0 : index
    %c0_164 = arith.constant 0 : index
    %333 = vector.load %arg12[%c3_162, %c0_163, %c0_164] : memref<4x8x32xbf16, #tpu.memory_space<vmem>>, vector<1x8x32xbf16>
    %334 = vector.shape_cast %333 : vector<1x8x32xbf16> to vector<8x32xbf16>
    %cst_165 = arith.constant dense<0.000000e+00> : vector<8x32xf32>
    %335 = tpu.matmul %332, %334, %cst_165 {dimension_numbers = #tpu.dot_dimension_numbers<[1], [0], [0], [1], [0, 0, 1, 1], [], []>} : vector<8x8xbf16>, vector<8x32xbf16>, vector<8x32xf32> -> vector<8x32xf32>
    %336 = arith.addf %252, %335 : vector<8x32xf32>
    %337 = vector.extract_strided_slice %290 {offsets = [8, 0], sizes = [8, 8], strides = [1, 1]} : vector<16x8xf32> to vector<8x8xf32>
    %338 = arith.truncf %337 : vector<8x8xf32> to vector<8x8xbf16>
    %339 = vector.extract_strided_slice %298 {offsets = [8, 0], sizes = [8, 8], strides = [1, 1]} : vector<16x8xf32> to vector<8x8xf32>
    %340 = arith.truncf %339 : vector<8x8xf32> to vector<8x8xbf16>
    %341 = vector.extract_strided_slice %306 {offsets = [8, 0], sizes = [8, 8], strides = [1, 1]} : vector<16x8xf32> to vector<8x8xf32>
    %342 = arith.truncf %341 : vector<8x8xf32> to vector<8x8xbf16>
    %cst_166 = arith.constant dense<0.000000e+00> : vector<8x8xf32>
    %343 = tpu.matmul %338, %340, %cst_166 {dimension_numbers = #tpu.dot_dimension_numbers<[1], [1], [0], [0], [0, 0, 1, 0], [], []>} : vector<8x8xbf16>, vector<8x8xbf16>, vector<8x8xf32> -> vector<8x8xf32>
    %cst_167 = arith.constant 0.353553385 : f32
    %344 = vector.broadcast %cst_167 : f32 to vector<8x8xf32>
    %345 = arith.mulf %343, %344 : vector<8x8xf32>
    %c1_168 = arith.constant 1 : index
    %c0_169 = arith.constant 0 : index
    %c0_170 = arith.constant 0 : index
    %346 = vector.load %arg3[%c1_168, %c0_169, %c0_170] : memref<2x1x8xf32, #tpu.memory_space<vmem>>, vector<1x1x8xf32>
    %347 = vector.shape_cast %346 : vector<1x1x8xf32> to vector<1x8xf32>
    %348 = vector.broadcast %347 : vector<1x8xf32> to vector<8x8xf32>
    %349 = arith.addf %345, %348 : vector<8x8xf32>
    %cst_171 = arith.constant dense<0xFF800000> : vector<8xf32>
    %350 = vector.multi_reduction <maximumf>, %349, %cst_171 [1] : vector<8x8xf32> to vector<8xf32>
    %351 = vector.shape_cast %350 : vector<8xf32> to vector<8x1xf32>
    %352 = vector.broadcast %351 : vector<8x1xf32> to vector<8x8xf32>
    %353 = arith.subf %349, %352 : vector<8x8xf32>
    %354 = math.exp %353 : vector<8x8xf32>
    %cst_172 = arith.constant dense<0.000000e+00> : vector<8xf32>
    %355 = vector.multi_reduction <add>, %354, %cst_172 [1] : vector<8x8xf32> to vector<8xf32>
    %356 = vector.shape_cast %355 : vector<8xf32> to vector<8x1xf32>
    %357 = tpu.reciprocal %356 {approx = true} : vector<8x1xf32> -> vector<8x1xf32>
    %358 = vector.broadcast %357 : vector<8x1xf32> to vector<8x8xf32>
    %359 = arith.mulf %354, %358 : vector<8x8xf32>
    %360 = arith.truncf %359 : vector<8x8xf32> to vector<8x8xbf16>
    %cst_173 = arith.constant dense<0.000000e+00> : vector<8x8xf32>
    %361 = tpu.matmul %360, %342, %cst_173 {dimension_numbers = #tpu.dot_dimension_numbers<[1], [0], [0], [1], [0, 0, 1, 1], [], []>} : vector<8x8xbf16>, vector<8x8xbf16>, vector<8x8xf32> -> vector<8x8xf32>
    %362 = arith.truncf %361 : vector<8x8xf32> to vector<8x8xbf16>
    %c3_174 = arith.constant 3 : index
    %c0_175 = arith.constant 0 : index
    %c0_176 = arith.constant 0 : index
    %363 = vector.load %arg12[%c3_174, %c0_175, %c0_176] : memref<4x8x32xbf16, #tpu.memory_space<vmem>>, vector<1x8x32xbf16>
    %364 = vector.shape_cast %363 : vector<1x8x32xbf16> to vector<8x32xbf16>
    %cst_177 = arith.constant dense<0.000000e+00> : vector<8x32xf32>
    %365 = tpu.matmul %362, %364, %cst_177 {dimension_numbers = #tpu.dot_dimension_numbers<[1], [0], [0], [1], [0, 0, 1, 1], [], []>} : vector<8x8xbf16>, vector<8x32xbf16>, vector<8x32xf32> -> vector<8x32xf32>
    %366 = arith.addf %282, %365 : vector<8x32xf32>
    %c0_178 = arith.constant 0 : index
    %c0_179 = arith.constant 0 : index
    %367 = vector.load %arg13[%c0_178, %c0_179] : memref<1x32xf32, #tpu.memory_space<vmem>>, vector<1x32xf32>
    %368 = vector.extract_strided_slice %0 {offsets = [0, 0], sizes = [8, 32], strides = [1, 1]} : vector<16x32xf32> to vector<8x32xf32>
    %369 = arith.addf %368, %336 : vector<8x32xf32>
    %370 = vector.broadcast %367 : vector<1x32xf32> to vector<8x32xf32>
    %371 = arith.addf %369, %370 : vector<8x32xf32>
    %372 = vector.extract_strided_slice %0 {offsets = [8, 0], sizes = [8, 32], strides = [1, 1]} : vector<16x32xf32> to vector<8x32xf32>
    %373 = arith.addf %372, %366 : vector<8x32xf32>
    %374 = vector.broadcast %367 : vector<1x32xf32> to vector<8x32xf32>
    %375 = arith.addf %373, %374 : vector<8x32xf32>
    %376 = tpu.concatenate %371, %375 in 0 : vector<8x32xf32>, vector<8x32xf32> -> vector<16x32xf32>
    %c0_180 = arith.constant 0 : index
    %c0_181 = arith.constant 0 : index
    %377 = vector.load %arg14[%c0_180, %c0_181] : memref<1x32xf32, #tpu.memory_space<vmem>>, vector<1x32xf32>
    %c0_182 = arith.constant 0 : index
    %c0_183 = arith.constant 0 : index
    %378 = vector.load %arg15[%c0_182, %c0_183] : memref<1x32xf32, #tpu.memory_space<vmem>>, vector<1x32xf32>
    %cst_184 = arith.constant dense<0.000000e+00> : vector<16xf32>
    %379 = vector.multi_reduction <add>, %376, %cst_184 [1] : vector<16x32xf32> to vector<16xf32>
    %380 = vector.shape_cast %379 : vector<16xf32> to vector<16x1xf32>
    %cst_185 = arith.constant 3.200000e+01 : f32
    %381 = vector.broadcast %cst_185 : f32 to vector<16x1xf32>
    %382 = arith.divf %380, %381 : vector<16x1xf32>
    %383 = vector.broadcast %382 : vector<16x1xf32> to vector<16x32xf32>
    %384 = arith.subf %376, %383 : vector<16x32xf32>
    %385 = arith.mulf %384, %384 : vector<16x32xf32>
    %cst_186 = arith.constant dense<0.000000e+00> : vector<16xf32>
    %386 = vector.multi_reduction <add>, %385, %cst_186 [1] : vector<16x32xf32> to vector<16xf32>
    %387 = vector.shape_cast %386 : vector<16xf32> to vector<16x1xf32>
    %cst_187 = arith.constant 3.100000e+01 : f32
    %388 = vector.broadcast %cst_187 : f32 to vector<16x1xf32>
    %389 = arith.divf %387, %388 : vector<16x1xf32>
    %390 = math.sqrt %389 : vector<16x1xf32>
    %cst_188 = arith.constant 9.99999997E-7 : f32
    %391 = vector.broadcast %cst_188 : f32 to vector<16x1xf32>
    %392 = arith.addf %390, %391 : vector<16x1xf32>
    %393 = tpu.reciprocal %392 {approx = true} : vector<16x1xf32> -> vector<16x1xf32>
    %394 = vector.broadcast %382 : vector<16x1xf32> to vector<16x32xf32>
    %395 = arith.subf %376, %394 : vector<16x32xf32>
    %396 = vector.broadcast %377 : vector<1x32xf32> to vector<16x32xf32>
    %397 = arith.mulf %396, %395 : vector<16x32xf32>
    %398 = vector.broadcast %393 : vector<16x1xf32> to vector<16x32xf32>
    %399 = arith.mulf %397, %398 : vector<16x32xf32>
    %400 = vector.broadcast %378 : vector<1x32xf32> to vector<16x32xf32>
    %401 = arith.addf %399, %400 : vector<16x32xf32>
    %402 = arith.truncf %401 : vector<16x32xf32> to vector<16x32xbf16>
    %c0_189 = arith.constant 0 : index
    %c0_190 = arith.constant 0 : index
    %403 = vector.load %arg16[%c0_189, %c0_190] : memref<32x64xbf16, #tpu.memory_space<vmem>>, vector<32x64xbf16>
    %cst_191 = arith.constant dense<0.000000e+00> : vector<16x64xf32>
    %404 = tpu.matmul %402, %403, %cst_191 {dimension_numbers = #tpu.dot_dimension_numbers<[1], [0], [0], [1], [0, 0, 1, 1], [], []>} : vector<16x32xbf16>, vector<32x64xbf16>, vector<16x64xf32> -> vector<16x64xf32>
    %c0_192 = arith.constant 0 : index
    %c0_193 = arith.constant 0 : index
    %405 = vector.load %arg17[%c0_192, %c0_193] : memref<1x64xf32, #tpu.memory_space<vmem>>, vector<1x64xf32>
    %406 = vector.broadcast %405 : vector<1x64xf32> to vector<16x64xf32>
    %407 = arith.addf %404, %406 : vector<16x64xf32>
    %cst_194 = arith.constant 0.000000e+00 : f32
    %408 = vector.broadcast %cst_194 : f32 to vector<16x64xf32>
    %409 = arith.maximumf %407, %408 : vector<16x64xf32>
    %410 = arith.truncf %409 : vector<16x64xf32> to vector<16x64xbf16>
    %c0_195 = arith.constant 0 : index
    %c0_196 = arith.constant 0 : index
    %411 = vector.load %arg18[%c0_195, %c0_196] : memref<64x32xbf16, #tpu.memory_space<vmem>>, vector<64x32xbf16>
    %cst_197 = arith.constant dense<0.000000e+00> : vector<16x32xf32>
    %412 = tpu.matmul %410, %411, %cst_197 {dimension_numbers = #tpu.dot_dimension_numbers<[1], [0], [0], [1], [0, 0, 1, 1], [], []>} : vector<16x64xbf16>, vector<64x32xbf16>, vector<16x32xf32> -> vector<16x32xf32>
    %c0_198 = arith.constant 0 : index
    %c0_199 = arith.constant 0 : index
    %413 = vector.load %arg19[%c0_198, %c0_199] : memref<1x32xf32, #tpu.memory_space<vmem>>, vector<1x32xf32>
    %414 = vector.broadcast %413 : vector<1x32xf32> to vector<16x32xf32>
    %415 = arith.addf %412, %414 : vector<16x32xf32>
    %416 = arith.addf %376, %415 : vector<16x32xf32>
    %c0_200 = arith.constant 0 : index
    %c0_201 = arith.constant 0 : index
    %417 = vector.load %arg20[%c0_200, %c0_201] : memref<16x32xf32, #tpu.memory_space<vmem>>, vector<16x32xf32>
    tpu.vector_store %arg20[%c0_200, %c0_201], %416 {strides = array<i32>} : memref<16x32xf32, #tpu.memory_space<vmem>>, vector<16x32xf32>,
    return
  }
  func.func @transform_0(%arg0: i32) -> (i32, i32) {
    %c0_i32 = arith.constant 0 : i32
    %c0_i32_0 = arith.constant 0 : i32
    return %arg0, %c0_i32 : i32, i32
  }
  func.func @transform_1(%arg0: i32) -> (i32, i32) {
    %c0_i32 = arith.constant 0 : i32
    %c0_i32_0 = arith.constant 0 : i32
    return %arg0, %c0_i32 : i32, i32
  }
  func.func @transform_2(%arg0: i32) -> (i32, i32, i32) {
    %c0_i32 = arith.constant 0 : i32
    %c0_i32_0 = arith.constant 0 : i32
    %c0_i32_1 = arith.constant 0 : i32
    return %arg0, %c0_i32, %c0_i32_0 : i32, i32, i32
  }
  func.func @transform_3(%arg0: i32) -> (i32, i32) {
    %c0_i32 = arith.constant 0 : i32
    %c0_i32_0 = arith.constant 0 : i32
    %c0_i32_1 = arith.constant 0 : i32
    return %c0_i32, %c0_i32_0 : i32, i32
  }
  func.func @transform_4(%arg0: i32) -> (i32, i32) {
    %c0_i32 = arith.constant 0 : i32
    %c0_i32_0 = arith.constant 0 : i32
    %c0_i32_1 = arith.constant 0 : i32
    return %c0_i32, %c0_i32_0 : i32, i32
  }
  func.func @transform_5(%arg0: i32) -> (i32, i32, i32) {
    %c0_i32 = arith.constant 0 : i32
    %c0_i32_0 = arith.constant 0 : i32
    %c0_i32_1 = arith.constant 0 : i32
    %c0_i32_2 = arith.constant 0 : i32
    return %c0_i32, %c0_i32_0, %c0_i32_1 : i32, i32, i32
  }
  func.func @transform_6(%arg0: i32) -> (i32, i32) {
    %c0_i32 = arith.constant 0 : i32
    %c0_i32_0 = arith.constant 0 : i32
    %c0_i32_1 = arith.constant 0 : i32
    return %c0_i32, %c0_i32_0 : i32, i32
  }
  func.func @transform_7(%arg0: i32) -> (i32, i32, i32) {
    %c0_i32 = arith.constant 0 : i32
    %c0_i32_0 = arith.constant 0 : i32
    %c0_i32_1 = arith.constant 0 : i32
    %c0_i32_2 = arith.constant 0 : i32
    return %c0_i32, %c0_i32_0, %c0_i32_1 : i32, i32, i32
  }
  func.func @transform_8(%arg0: i32) -> (i32, i32) {
    %c0_i32 = arith.constant 0 : i32
    %c0_i32_0 = arith.constant 0 : i32
    %c0_i32_1 = arith.constant 0 : i32
    return %c0_i32, %c0_i32_0 : i32, i32
  }
  func.func @transform_9(%arg0: i32) -> (i32, i32, i32) {
    %c0_i32 = arith.constant 0 : i32
    %c0_i32_0 = arith.constant 0 : i32
    %c0_i32_1 = arith.constant 0 : i32
    %c0_i32_2 = arith.constant 0 : i32
    return %c0_i32, %c0_i32_0, %c0_i32_1 : i32, i32, i32
  }
  func.func @transform_10(%arg0: i32) -> (i32, i32) {
    %c0_i32 = arith.constant 0 : i32
    %c0_i32_0 = arith.constant 0 : i32
    %c0_i32_1 = arith.constant 0 : i32
    return %c0_i32, %c0_i32_0 : i32, i32
  }
  func.func @transform_11(%arg0: i32) -> (i32, i32, i32) {
    %c0_i32 = arith.constant 0 : i32
    %c0_i32_0 = arith.constant 0 : i32
    %c0_i32_1 = arith.constant 0 : i32
    %c0_i32_2 = arith.constant 0 : i32
    return %c0_i32, %c0_i32_0, %c0_i32_1 : i32, i32, i32
  }
  func.func @transform_12(%arg0: i32) -> (i32, i32) {
    %c0_i32 = arith.constant 0 : i32
    %c0_i32_0 = arith.constant 0 : i32
    %c0_i32_1 = arith.constant 0 : i32
    return %c0_i32, %c0_i32_0 : i32, i32
  }
  func.func @transform_13(%arg0: i32) -> (i32, i32) {
    %c0_i32 = arith.constant 0 : i32
    %c0_i32_0 = arith.constant 0 : i32
    %c0_i32_1 = arith.constant 0 : i32
    return %c0_i32, %c0_i32_0 : i32, i32
  }
  func.func @transform_14(%arg0: i32) -> (i32, i32) {
    %c0_i32 = arith.constant 0 : i32
    %c0_i32_0 = arith.constant 0 : i32
    %c0_i32_1 = arith.constant 0 : i32
    return %c0_i32, %c0_i32_0 : i32, i32
  }
  func.func @transform_15(%arg0: i32) -> (i32, i32) {
    %c0_i32 = arith.constant 0 : i32
    %c0_i32_0 = arith.constant 0 : i32
    %c0_i32_1 = arith.constant 0 : i32
    return %c0_i32, %c0_i32_0 : i32, i32
  }
  func.func @transform_16(%arg0: i32) -> (i32, i32) {
    %c0_i32 = arith.constant 0 : i32
    %c0_i32_0 = arith.constant 0 : i32
    %c0_i32_1 = arith.constant 0 : i32
    return %c0_i32, %c0_i32_0 : i32, i32
  }
  func.func @transform_17(%arg0: i32) -> (i32, i32) {
    %c0_i32 = arith.constant 0 : i32
    %c0_i32_0 = arith.constant 0 : i32
    %c0_i32_1 = arith.constant 0 : i32
    return %c0_i32, %c0_i32_0 : i32, i32
  }
  func.func @transform_18(%arg0: i32) -> (i32, i32) {
    %c0_i32 = arith.constant 0 : i32
    %c0_i32_0 = arith.constant 0 : i32
    %c0_i32_1 = arith.constant 0 : i32
    return %c0_i32, %c0_i32_0 : i32, i32
  }
  func.func @transform_19(%arg0: i32) -> (i32, i32) {
    %c0_i32 = arith.constant 0 : i32
    %c0_i32_0 = arith.constant 0 : i32
    return %arg0, %c0_i32 : i32, i32
  }
}

</mosaic_0001>

<llo_original>
// kernel: tpu_custom_call.1
$region0: #{tpu_custom_call.1}
  #allocation0 [shape = 'u32[]', space=smem, size = 0x4, offset = 0x4, fixed_abs, tag = 'smem constant byte address 0x4 - core index']
  #allocation1 [shape = 'u32[144,128]{1,0:T(1,128)}', space=vmem, size = 0x12000, scoped, tag = 'internal scratch']
  %s0 = inlined_call_operand.vmem [shape: f32[16,32], index: 0, kind: input, shape index: {}]
  %s1 = inlined_call_operand.vmem [shape: f32[16,32], index: 1, kind: input, shape index: {}]
  %s2 = inlined_call_operand.vmem [shape: f32[2,1,8], index: 2, kind: input, shape index: {}]
  %s3 = inlined_call_operand.vmem [shape: f32[1,32], index: 3, kind: input, shape index: {}]
  %s4 = inlined_call_operand.vmem [shape: f32[1,32], index: 4, kind: input, shape index: {}]
  %s5 = inlined_call_operand.vmem [shape: bf16[4,32,8], index: 5, kind: input, shape index: {}]
  %s6 = inlined_call_operand.vmem [shape: f32[4,8], index: 6, kind: input, shape index: {}]
  %s7 = inlined_call_operand.vmem [shape: bf16[4,32,8], index: 7, kind: input, shape index: {}]
  %s8 = inlined_call_operand.vmem [shape: f32[4,8], index: 8, kind: input, shape index: {}]
  %s9 = inlined_call_operand.vmem [shape: bf16[4,32,8], index: 9, kind: input, shape index: {}]
  %s10 = inlined_call_operand.vmem [shape: f32[4,8], index: 10, kind: input, shape index: {}]
  %s11 = inlined_call_operand.vmem [shape: bf16[4,8,32], index: 11, kind: input, shape index: {}]
  %s12 = inlined_call_operand.vmem [shape: f32[1,32], index: 12, kind: input, shape index: {}]
  %s13 = inlined_call_operand.vmem [shape: f32[1,32], index: 13, kind: input, shape index: {}]
  %s14 = inlined_call_operand.vmem [shape: f32[1,32], index: 14, kind: input, shape index: {}]
  %s15 = inlined_call_operand.vmem [shape: bf16[32,64], index: 15, kind: input, shape index: {}]
  %s16 = inlined_call_operand.vmem [shape: f32[1,64], index: 16, kind: input, shape index: {}]
  %s17 = inlined_call_operand.vmem [shape: bf16[64,32], index: 17, kind: input, shape index: {}]
  %s18 = inlined_call_operand.vmem [shape: f32[1,32], index: 18, kind: input, shape index: {}]
  %s19 = inlined_call_operand.hbm [shape: f32[16,32], index: 19, kind: output, shape index: {}]
  %s20 = sld [smem:[#allocation0]]
  $region86: #{tpu_custom_call.1} parent=0
    _
  %s22 = ssub.s32 1, %s20
  %s23 = scalar_select 0, %s22, %s20
  $region1: #{tpu_custom_call.1} parent=0
    #allocation2 [shape = 'u8[8192]{0}', space=vmem, size = 0x2000, scoped, tag = 'output window, operand 0, single buffered']
    #allocation3 [shape = 's32[1]{0}', space=sflag, size = 0x4, scoped, tag = 'scoped memory for tpu_custom_call.1']
    %24 = vsyncpa [#allocation3], 0
    // Predicated region
    $region2: #{tpu_custom_call.1} parent=1 // pred_check
      _
    $region3: #{tpu_custom_call.1} parent=1 // pred_check_branch
      %26 = sbr.rel (0) target = $region5
    $region4: #{tpu_custom_call.1} parent=1 // pred_region
      _
    $region5: #{tpu_custom_call.1} parent=1 // pred_fallthru
      _
    // Predicated region
    $region6: #{tpu_custom_call.1} parent=1 // pred_check
      _
    $region7: #{tpu_custom_call.1} parent=1 // pred_check_branch
      %28 = sbr.rel (0) target = $region9
    $region8: #{tpu_custom_call.1} parent=1 // pred_region
      _
    $region9: #{tpu_custom_call.1} parent=1 // pred_fallthru
      _
    // Predicated region
    $region10: #{tpu_custom_call.1} parent=1 // pred_check
      _
    $region11: #{tpu_custom_call.1} parent=1 // pred_check_branch
      %30 = sbr.rel (0) target = $region13
    $region12: #{tpu_custom_call.1} parent=1 // pred_region
      _
    $region13: #{tpu_custom_call.1} parent=1 // pred_fallthru
      _
    // Predicated region
    $region14: #{tpu_custom_call.1} parent=1 // pred_check
      _
    $region15: #{tpu_custom_call.1} parent=1 // pred_check_branch
      %32 = sbr.rel (0) target = $region17
    $region16: #{tpu_custom_call.1} parent=1 // pred_region
      _
    $region17: #{tpu_custom_call.1} parent=1 // pred_fallthru
      _
    // Predicated region
    $region18: #{tpu_custom_call.1} parent=1 // pred_check
      _
    $region19: #{tpu_custom_call.1} parent=1 // pred_check_branch
      %34 = sbr.rel (0) target = $region21
    $region20: #{tpu_custom_call.1} parent=1 // pred_region
      _
    $region21: #{tpu_custom_call.1} parent=1 // pred_fallthru
      _
    // Predicated region
    $region22: #{tpu_custom_call.1} parent=1 // pred_check
      _
    $region23: #{tpu_custom_call.1} parent=1 // pred_check_branch
      %36 = sbr.rel (0) target = $region25
    $region24: #{tpu_custom_call.1} parent=1 // pred_region
      _
    $region25: #{tpu_custom_call.1} parent=1 // pred_fallthru
      _
    // Predicated region
    $region26: #{tpu_custom_call.1} parent=1 // pred_check
      _
    $region27: #{tpu_custom_call.1} parent=1 // pred_check_branch
      %38 = sbr.rel (0) target = $region29
    $region28: #{tpu_custom_call.1} parent=1 // pred_region
      _
    $region29: #{tpu_custom_call.1} parent=1 // pred_fallthru
      _
    // Predicated region
    $region30: #{tpu_custom_call.1} parent=1 // pred_check
      _
    $region31: #{tpu_custom_call.1} parent=1 // pred_check_branch
      %40 = sbr.rel (0) target = $region33
    $region32: #{tpu_custom_call.1} parent=1 // pred_region
      _
    $region33: #{tpu_custom_call.1} parent=1 // pred_fallthru
      _
    // Predicated region
    $region34: #{tpu_custom_call.1} parent=1 // pred_check
      _
    $region35: #{tpu_custom_call.1} parent=1 // pred_check_branch
      %42 = sbr.rel (0) target = $region37
    $region36: #{tpu_custom_call.1} parent=1 // pred_region
      _
    $region37: #{tpu_custom_call.1} parent=1 // pred_fallthru
      _
    // Predicated region
    $region38: #{tpu_custom_call.1} parent=1 // pred_check
      _
    $region39: #{tpu_custom_call.1} parent=1 // pred_check_branch
      %44 = sbr.rel (0) target = $region41
    $region40: #{tpu_custom_call.1} parent=1 // pred_region
      _
    $region41: #{tpu_custom_call.1} parent=1 // pred_fallthru
      _
    // Predicated region
    $region42: #{tpu_custom_call.1} parent=1 // pred_check
      _
    $region43: #{tpu_custom_call.1} parent=1 // pred_check_branch
      %46 = sbr.rel (0) target = $region45
    $region44: #{tpu_custom_call.1} parent=1 // pred_region
      _
    $region45: #{tpu_custom_call.1} parent=1 // pred_fallthru
      _
    // Predicated region
    $region46: #{tpu_custom_call.1} parent=1 // pred_check
      _
    $region47: #{tpu_custom_call.1} parent=1 // pred_check_branch
      %48 = sbr.rel (0) target = $region49
    $region48: #{tpu_custom_call.1} parent=1 // pred_region
      _
    $region49: #{tpu_custom_call.1} parent=1 // pred_fallthru
      _
    // Predicated region
    $region50: #{tpu_custom_call.1} parent=1 // pred_check
      _
    $region51: #{tpu_custom_call.1} parent=1 // pred_check_branch
      %50 = sbr.rel (0) target = $region53
    $region52: #{tpu_custom_call.1} parent=1 // pred_region
      _
    $region53: #{tpu_custom_call.1} parent=1 // pred_fallthru
      _
    // Predicated region
    $region54: #{tpu_custom_call.1} parent=1 // pred_check
      _
    $region55: #{tpu_custom_call.1} parent=1 // pred_check_branch
      %52 = sbr.rel (0) target = $region57
    $region56: #{tpu_custom_call.1} parent=1 // pred_region
      _
    $region57: #{tpu_custom_call.1} parent=1 // pred_fallthru
      _
    // Predicated region
    $region58: #{tpu_custom_call.1} parent=1 // pred_check
      _
    $region59: #{tpu_custom_call.1} parent=1 // pred_check_branch
      %54 = sbr.rel (0) target = $region61
    $region60: #{tpu_custom_call.1} parent=1 // pred_region
      _
    $region61: #{tpu_custom_call.1} parent=1 // pred_fallthru
      _
    // Predicated region
    $region62: #{tpu_custom_call.1} parent=1 // pred_check
      _
    $region63: #{tpu_custom_call.1} parent=1 // pred_check_branch
      %56 = sbr.rel (0) target = $region65
    $region64: #{tpu_custom_call.1} parent=1 // pred_region
      _
    $region65: #{tpu_custom_call.1} parent=1 // pred_fallthru
      _
    // Predicated region
    $region66: #{tpu_custom_call.1} parent=1 // pred_check
      _
    $region67: #{tpu_custom_call.1} parent=1 // pred_check_branch
      %58 = sbr.rel (0) target = $region69
    $region68: #{tpu_custom_call.1} parent=1 // pred_region
      _
    $region69: #{tpu_custom_call.1} parent=1 // pred_fallthru
      _
    // Predicated region
    $region70: #{tpu_custom_call.1} parent=1 // pred_check
      _
    $region71: #{tpu_custom_call.1} parent=1 // pred_check_branch
      %60 = sbr.rel (0) target = $region73
    $region72: #{tpu_custom_call.1} parent=1 // pred_region
      _
    $region73: #{tpu_custom_call.1} parent=1 // pred_fallthru
      _
    // Predicated region
    $region74: #{tpu_custom_call.1} parent=1 // pred_check
      _
    $region75: #{tpu_custom_call.1} parent=1 // pred_check_branch
      %62 = sbr.rel (0) target = $region77
    $region76: #{tpu_custom_call.1} parent=1 // pred_region
      _
    $region77: #{tpu_custom_call.1} parent=1 // pred_fallthru
      _
    %v64 = vld [vmem:[%s0] sm:$0xff]
    %v65 = vld [vmem:[%s0 + $0x8] sm:$0xff]
    %v66 = vld [vmem:[%s1] sm:$0xff]
    %v67 = vld [vmem:[%s1 + $0x8] sm:$0xff]
    %v68 = vld [vmem:[%s3] sm:$0x1]
    %v69 = vld [vmem:[%s4] sm:$0x1]
    %vm70 = vcmask 261120
    %v71 = vsel %vm70, %v64, 0.0
    %72 = vadd.xlane.f32.xlu0 %v71
    %v73 = vpop.xlane.xlu0 %72
    %v74 = vsel %vm70, %v65, 0.0
    %75 = vadd.xlane.f32.xlu0 %v74
    %v76 = vpop.xlane.xlu0 %75
    %v77 = vrcp.pop 32.0
    %v78 = vmul.f32 %v73, %v77
    %v79 = vmul.f32 %v76, %v77
    %v80 = vsub.f32 %v64, %v78
    %v81 = vsub.f32 %v65, %v79
    %v82 = vmul.f32 %v80, %v80
    %v83 = vmul.f32 %v81, %v81
    %v84 = vsel %vm70, %v82, 0.0
    %85 = vadd.xlane.f32.xlu0 %v84
    %v86 = vpop.xlane.xlu0 %85
    %v87 = vsel %vm70, %v83, 0.0
    %88 = vadd.xlane.f32.xlu0 %v87
    %v89 = vpop.xlane.xlu0 %88
    %v90 = vrcp.pop 31.0
    %v91 = vmul.f32 %v86, %v90
    %v92 = vmul.f32 %v89, %v90
    %v93 = vrsqrt.pop %v91
    %v94 = vmul.f32 %v91, %v93
    %vm95 = vcmp.eq.f32.partialorder %v91, inf
    %v96 = vsel %vm95, %v91, %v94
    %vm97 = vcmp.eq.f32.partialorder %v91, 0.0
    %v98 = vand.u32 %v91, 2147483648
    %v99 = vsel %vm97, %v98, %v96
    %v100 = vrsqrt.pop %v92
    %v101 = vmul.f32 %v92, %v100
    %vm102 = vcmp.eq.f32.partialorder %v92, inf
    %v103 = vsel %vm102, %v92, %v101
    %vm104 = vcmp.eq.f32.partialorder %v92, 0.0
    %v105 = vand.u32 %v92, 2147483648
    %v106 = vsel %vm104, %v105, %v103
    %v107 = vadd.f32 %v99, 1e-06
    %v108 = vadd.f32 %v106, 1e-06
    %v109 = vrcp.pop %v107
    %v110 = vrcp.pop %v108
    %v112 = vlaneseq
    %v113 = vshrl.u32 %v112, 7
    %v114 = vsub.s32 0, %v113
    %v115 = vrot.slane %v68, %v114
    %v117 = vmul.f32 %v115, %v80
    %v118 = vmul.f32 %v115, %v81
    %v119 = vmul.f32 %v117, %v109
    %v120 = vmul.f32 %v118, %v110
    %v122 = vlaneseq
    %v123 = vshrl.u32 %v122, 7
    %v124 = vsub.s32 0, %v123
    %v125 = vrot.slane %v69, %v124
    %v127 = vadd.f32 %v119, %v125
    %v128 = vadd.f32 %v120, %v125
    %v129 = vpack.c.bf16 %v128, %v127
    %v130 = vpack.c.bf16 %v67, %v66
    %v131 = vld [vmem:[%s5] sm:$0xf]
    %v132 = vld [vmem:[%s5 + $0x4] sm:$0xf]
    %v133 = vld [vmem:[%s5 + $0x8] sm:$0xf]
    %v134 = vld [vmem:[%s5 + $0xc] sm:$0xf]
    %v135 = vld [vmem:[%s6] sm:$0x1]
    %v136 = vlaneseq
    %v137 = vshrl.u32 %v136, 7
    %v138 = vsub.s32 0, %v137
    %v139 = vrot.slane %v135, %v138
    %v144 = vunpack.c.l.b16 %v131
    %v145 = vunpack.c.l.b16 %v132
    %v146 = vunpack.c.l.b16 %v133
    %v147 = vunpack.c.l.b16 %v134
    %v148 = vpack.c.b16 %v145, %v144
    %v149 = vpack.c.b16 %v147, %v146
    %v153 = vsel %vm70, %v129, 0
    %155 = vmatprep.subr.bf16.mxu0 0
    %156 = vmatpush1.bf16.msra.mxu0 %v148
    %157 = vmatprep.subr.bf16.mxu0 0
    %158 = vmatpush1.bf16.msra.mxu0 %v149
    %159 = vmatprep.subr.bf16.mxu0 0
    %160 = vmatpush1.bf16.msra.mxu0 0
    %161 = vmatprep.subr.bf16.mxu0 0
    %162 = vmatpush1.bf16.msra.mxu0 0
    %163 = vmatprep.subr.bf16.mxu0 0
    %164 = vmatpush1.bf16.msra.mxu0 0
    %165 = vmatprep.subr.bf16.mxu0 0
    %166 = vmatpush1.bf16.msra.mxu0 0
    %167 = vmatprep.subr.bf16.mxu0 0
    %168 = vmatpush1.bf16.msra.mxu0 0
    %169 = vmatprep.subr.bf16.mxu0 0
    %170 = vmatpush1.bf16.msra.mxu0 0
    %171 = vmatprep.subr.bf16.mxu0 0
    %172 = vmatpush1.bf16.msra.mxu0 0
    %173 = vmatprep.subr.bf16.mxu0 0
    %174 = vmatpush1.bf16.msra.mxu0 0
    %175 = vmatprep.subr.bf16.mxu0 0
    %176 = vmatpush1.bf16.msra.mxu0 0
    %177 = vmatprep.subr.bf16.mxu0 0
    %178 = vmatpush1.bf16.msra.mxu0 0
    %179 = vmatprep.subr.bf16.mxu0 0
    %180 = vmatpush1.bf16.msra.mxu0 0
    %181 = vmatprep.subr.bf16.mxu0 0
    %182 = vmatpush1.bf16.msra.mxu0 0
    %183 = vmatprep.subr.bf16.mxu0 0
    %184 = vmatpush1.bf16.msra.mxu0 0
    %185 = vmatprep.subr.bf16.mxu0 0
    %186 = vmatpush1.bf16.msra.mxu0 0
    %187 = vmatprep.mubr.bf16.mxu0 0
    %188 = vmatmul.mubr.bf16.gmra.mrb[0].mxu0 %v153
    %v189 = vpop.f32.mrb[0].mxu0
    %v190 = vadd.f32 %v139, %v189
    %v191 = vpop.f32.mrb[0].mxu0
    %v192 = vpop.f32.mrb[0].mxu0
    %v193 = vadd.f32 %v139, %v192
    %v194 = vpop.f32.mrb[0].mxu0
    %195 = vdwg.mxu0
    %v196 = vld [vmem:[%s7] sm:$0xf]
    %v197 = vld [vmem:[%s7 + $0x4] sm:$0xf]
    %v198 = vld [vmem:[%s7 + $0x8] sm:$0xf]
    %v199 = vld [vmem:[%s7 + $0xc] sm:$0xf]
    %v200 = vld [vmem:[%s8] sm:$0x1]
    %v201 = vlaneseq
    %v202 = vshrl.u32 %v201, 7
    %v203 = vsub.s32 0, %v202
    %v204 = vrot.slane %v200, %v203
    %v209 = vunpack.c.l.b16 %v196
    %v210 = vunpack.c.l.b16 %v197
    %v211 = vunpack.c.l.b16 %v198
    %v212 = vunpack.c.l.b16 %v199
    %v213 = vpack.c.b16 %v210, %v209
    %v214 = vpack.c.b16 %v212, %v211
    %v218 = vsel %vm70, %v130, 0
    %220 = vmatprep.subr.bf16.mxu0 0
    %221 = vmatpush1.bf16.msra.mxu0 %v213
    %222 = vmatprep.subr.bf16.mxu0 0
    %223 = vmatpush1.bf16.msra.mxu0 %v214
    %224 = vmatprep.subr.bf16.mxu0 0
    %225 = vmatpush1.bf16.msra.mxu0 0
    %226 = vmatprep.subr.bf16.mxu0 0
    %227 = vmatpush1.bf16.msra.mxu0 0
    %228 = vmatprep.subr.bf16.mxu0 0
    %229 = vmatpush1.bf16.msra.mxu0 0
    %230 = vmatprep.subr.bf16.mxu0 0
    %231 = vmatpush1.bf16.msra.mxu0 0
    %232 = vmatprep.subr.bf16.mxu0 0
    %233 = vmatpush1.bf16.msra.mxu0 0
    %234 = vmatprep.subr.bf16.mxu0 0
    %235 = vmatpush1.bf16.msra.mxu0 0
    %236 = vmatprep.subr.bf16.mxu0 0
    %237 = vmatpush1.bf16.msra.mxu0 0
    %238 = vmatprep.subr.bf16.mxu0 0
    %239 = vmatpush1.bf16.msra.mxu0 0
    %240 = vmatprep.subr.bf16.mxu0 0
    %241 = vmatpush1.bf16.msra.mxu0 0
    %242 = vmatprep.subr.bf16.mxu0 0
    %243 = vmatpush1.bf16.msra.mxu0 0
    %244 = vmatprep.subr.bf16.mxu0 0
    %245 = vmatpush1.bf16.msra.mxu0 0
    %246 = vmatprep.subr.bf16.mxu0 0
    %247 = vmatpush1.bf16.msra.mxu0 0
    %248 = vmatprep.subr.bf16.mxu0 0
    %249 = vmatpush1.bf16.msra.mxu0 0
    %250 = vmatprep.subr.bf16.mxu0 0
    %251 = vmatpush1.bf16.msra.mxu0 0
    %252 = vmatprep.mubr.bf16.mxu0 0
    %253 = vmatmul.mubr.bf16.gmra.mrb[0].mxu0 %v218
    %v254 = vpop.f32.mrb[0].mxu0
    %v255 = vadd.f32 %v204, %v254
    %v256 = vpop.f32.mrb[0].mxu0
    %v257 = vpop.f32.mrb[0].mxu0
    %v258 = vadd.f32 %v204, %v257
    %v259 = vpop.f32.mrb[0].mxu0
    %260 = vdwg.mxu0
    %v261 = vld [vmem:[%s9] sm:$0xf]
    %v262 = vld [vmem:[%s9 + $0x4] sm:$0xf]
    %v263 = vld [vmem:[%s9 + $0x8] sm:$0xf]
    %v264 = vld [vmem:[%s9 + $0xc] sm:$0xf]
    %v265 = vld [vmem:[%s10] sm:$0x1]
    %v266 = vlaneseq
    %v267 = vshrl.u32 %v266, 7
    %v268 = vsub.s32 0, %v267
    %v269 = vrot.slane %v265, %v268
    %v274 = vunpack.c.l.b16 %v261
    %v275 = vunpack.c.l.b16 %v262
    %v276 = vunpack.c.l.b16 %v263
    %v277 = vunpack.c.l.b16 %v264
    %v278 = vpack.c.b16 %v275, %v274
    %v279 = vpack.c.b16 %v277, %v276
    %282 = vmatprep.subr.bf16.mxu0 0
    %283 = vmatpush1.bf16.msra.mxu0 %v278
    %284 = vmatprep.subr.bf16.mxu0 0
    %285 = vmatpush1.bf16.msra.mxu0 %v279
    %286 = vmatprep.subr.bf16.mxu0 0
    %287 = vmatpush1.bf16.msra.mxu0 0
    %288 = vmatprep.subr.bf16.mxu0 0
    %289 = vmatpush1.bf16.msra.mxu0 0
    %290 = vmatprep.subr.bf16.mxu0 0
    %291 = vmatpush1.bf16.msra.mxu0 0
    %292 = vmatprep.subr.bf16.mxu0 0
    %293 = vmatpush1.bf16.msra.mxu0 0
    %294 = vmatprep.subr.bf16.mxu0 0
    %295 = vmatpush1.bf16.msra.mxu0 0
    %296 = vmatprep.subr.bf16.mxu0 0
    %297 = vmatpush1.bf16.msra.mxu0 0
    %298 = vmatprep.subr.bf16.mxu0 0
    %299 = vmatpush1.bf16.msra.mxu0 0
    %300 = vmatprep.subr.bf16.mxu0 0
    %301 = vmatpush1.bf16.msra.mxu0 0
    %302 = vmatprep.subr.bf16.mxu0 0
    %303 = vmatpush1.bf16.msra.mxu0 0
    %304 = vmatprep.subr.bf16.mxu0 0
    %305 = vmatpush1.bf16.msra.mxu0 0
    %306 = vmatprep.subr.bf16.mxu0 0
    %307 = vmatpush1.bf16.msra.mxu0 0
    %308 = vmatprep.subr.bf16.mxu0 0
    %309 = vmatpush1.bf16.msra.mxu0 0
    %310 = vmatprep.subr.bf16.mxu0 0
    %311 = vmatpush1.bf16.msra.mxu0 0
    %312 = vmatprep.subr.bf16.mxu0 0
    %313 = vmatpush1.bf16.msra.mxu0 0
    %314 = vmatprep.mubr.bf16.mxu0 0
    %315 = vmatmul.mubr.bf16.gmra.mrb[0].mxu0 %v218
    %v316 = vpop.f32.mrb[0].mxu0
    %v317 = vadd.f32 %v269, %v316
    %v318 = vpop.f32.mrb[0].mxu0
    %v319 = vpop.f32.mrb[0].mxu0
    %v320 = vadd.f32 %v269, %v319
    %v321 = vpop.f32.mrb[0].mxu0
    %322 = vdwg.mxu0
    %v323 = vpack.c.bf16 %v190, %v190
    %v324 = vpack.c.bf16 %v255, %v255
    %v325 = vpack.c.bf16 %v317, %v317
    %vm326 = vcmask 64512
    %v328 = vsel %vm326, %v323, 0
    %v331 = vsel %vm326, %v324, 0
    %333 = vmatprep.subr.bf16.mxu0 0
    %334 = vmatpush1.bf16.xpose.msra.mxu0 %v331
    %335 = vmatprep.subr.bf16.mxu0 0
    %336 = vmatpush1.bf16.xpose.msra.mxu0 0
    %337 = vmatprep.subr.bf16.mxu0 0
    %338 = vmatpush1.bf16.xpose.msra.mxu0 0
    %339 = vmatprep.subr.bf16.mxu0 0
    %340 = vmatpush1.bf16.xpose.msra.mxu0 0
    %341 = vmatprep.subr.bf16.mxu0 0
    %342 = vmatpush1.bf16.xpose.msra.mxu0 0
    %343 = vmatprep.subr.bf16.mxu0 0
    %344 = vmatpush1.bf16.xpose.msra.mxu0 0
    %345 = vmatprep.subr.bf16.mxu0 0
    %346 = vmatpush1.bf16.xpose.msra.mxu0 0
    %347 = vmatprep.subr.bf16.mxu0 0
    %348 = vmatpush1.bf16.xpose.msra.mxu0 0
    %349 = vmatprep.subr.bf16.mxu0 0
    %350 = vmatpush1.bf16.xpose.msra.mxu0 0
    %351 = vmatprep.subr.bf16.mxu0 0
    %352 = vmatpush1.bf16.xpose.msra.mxu0 0
    %353 = vmatprep.subr.bf16.mxu0 0
    %354 = vmatpush1.bf16.xpose.msra.mxu0 0
    %355 = vmatprep.subr.bf16.mxu0 0
    %356 = vmatpush1.bf16.xpose.msra.mxu0 0
    %357 = vmatprep.subr.bf16.mxu0 0
    %358 = vmatpush1.bf16.xpose.msra.mxu0 0
    %359 = vmatprep.subr.bf16.mxu0 0
    %360 = vmatpush1.bf16.xpose.msra.mxu0 0
    %361 = vmatprep.subr.bf16.mxu0 0
    %362 = vmatpush1.bf16.xpose.msra.mxu0 0
    %363 = vmatprep.subr.bf16.mxu0 0
    %364 = vmatpush1.bf16.xpose.msra.mxu0 0
    %365 = vmatprep.mubr.bf16.mxu0 0
    %366 = vmatmul.mubr.bf16.gmra.mrb[0].mxu0 %v328
    %v367 = vpop.f32.mrb[0].mxu0
    %v368 = vadd.f32 0.0, %v367
    %v369 = vpop.f32.mrb[0].mxu0
    %v370 = vpop.f32.mrb[0].mxu0
    %v371 = vpop.f32.mrb[0].mxu0
    %372 = vdwg.mxu0
    %v373 = vmul.f32 %v368, 0.35355338
    %v374 = vld [vmem:[%s2] sm:$0x1]
    %v376 = vlaneseq
    %v377 = vshrl.u32 %v376, 7
    %v378 = vsub.s32 0, %v377
    %v379 = vrot.slane %v374, %v378
    %v381 = vadd.f32 %v373, %v379
    %v382 = vsel %vm326, %v381, -inf
    %383 = vmax.xlane.f32.xlu0 %v382
    %v384 = vpop.xlane.xlu0 %383
    %v385 = vsub.f32 %v381, %v384
    %v386 = vmul.f32 %v385, 1.442695
    %v387 = vpow.pop %v386
    %v388 = vsel %vm326, %v387, 0.0
    %389 = vadd.xlane.f32.xlu0 %v388
    %v390 = vpop.xlane.xlu0 %389
    %v391 = vrcp.pop %v390
    %v392 = vmul.f32 %v387, %v391
    %v393 = vpack.c.bf16 %v392, %v392
    %v395 = vsel %vm326, %v393, 0
    %vm397 = vcmask 1043456
    %v399 = vsel %vm397, %v325, 0
    %401 = vmatprep.subr.bf16.mxu0 0
    %402 = vmatpush1.bf16.msra.mxu0 %v399
    %403 = vmatprep.subr.bf16.mxu0 0
    %404 = vmatpush1.bf16.msra.mxu0 0
    %405 = vmatprep.subr.bf16.mxu0 0
    %406 = vmatpush1.bf16.msra.mxu0 0
    %407 = vmatprep.subr.bf16.mxu0 0
    %408 = vmatpush1.bf16.msra.mxu0 0
    %409 = vmatprep.subr.bf16.mxu0 0
    %410 = vmatpush1.bf16.msra.mxu0 0
    %411 = vmatprep.subr.bf16.mxu0 0
    %412 = vmatpush1.bf16.msra.mxu0 0
    %413 = vmatprep.subr.bf16.mxu0 0
    %414 = vmatpush1.bf16.msra.mxu0 0
    %415 = vmatprep.subr.bf16.mxu0 0
    %416 = vmatpush1.bf16.msra.mxu0 0
    %417 = vmatprep.subr.bf16.mxu0 0
    %418 = vmatpush1.bf16.msra.mxu0 0
    %419 = vmatprep.subr.bf16.mxu0 0
    %420 = vmatpush1.bf16.msra.mxu0 0
    %421 = vmatprep.subr.bf16.mxu0 0
    %422 = vmatpush1.bf16.msra.mxu0 0
    %423 = vmatprep.subr.bf16.mxu0 0
    %424 = vmatpush1.bf16.msra.mxu0 0
    %425 = vmatprep.subr.bf16.mxu0 0
    %426 = vmatpush1.bf16.msra.mxu0 0
    %427 = vmatprep.subr.bf16.mxu0 0
    %428 = vmatpush1.bf16.msra.mxu0 0
    %429 = vmatprep.subr.bf16.mxu0 0
    %430 = vmatpush1.bf16.msra.mxu0 0
    %431 = vmatprep.subr.bf16.mxu0 0
    %432 = vmatpush1.bf16.msra.mxu0 0
    %433 = vmatprep.mubr.bf16.mxu0 0
    %434 = vmatmul.mubr.bf16.gmra.mrb[0].mxu0 %v395
    %v435 = vpop.f32.mrb[0].mxu0
    %v436 = vadd.f32 0.0, %v435
    %v437 = vpop.f32.mrb[0].mxu0
    %v438 = vpop.f32.mrb[0].mxu0
    %v439 = vpop.f32.mrb[0].mxu0
    %440 = vdwg.mxu0
    %v441 = vpack.c.bf16 %v436, %v436
    %v442 = vld [vmem:[%s11] sm:$0xf]
    %v443 = vpack.c.bf16 %v193, %v193
    %v444 = vpack.c.bf16 %v258, %v258
    %v445 = vpack.c.bf16 %v320, %v320
    %v447 = vsel %vm326, %v443, 0
    %v450 = vsel %vm326, %v444, 0
    %452 = vmatprep.subr.bf16.mxu0 0
    %453 = vmatpush1.bf16.xpose.msra.mxu0 %v450
    %454 = vmatprep.subr.bf16.mxu0 0
    %455 = vmatpush1.bf16.xpose.msra.mxu0 0
    %456 = vmatprep.subr.bf16.mxu0 0
    %457 = vmatpush1.bf16.xpose.msra.mxu0 0
    %458 = vmatprep.subr.bf16.mxu0 0
    %459 = vmatpush1.bf16.xpose.msra.mxu0 0
    %460 = vmatprep.subr.bf16.mxu0 0
    %461 = vmatpush1.bf16.xpose.msra.mxu0 0
    %462 = vmatprep.subr.bf16.mxu0 0
    %463 = vmatpush1.bf16.xpose.msra.mxu0 0
    %464 = vmatprep.subr.bf16.mxu0 0
    %465 = vmatpush1.bf16.xpose.msra.mxu0 0
    %466 = vmatprep.subr.bf16.mxu0 0
    %467 = vmatpush1.bf16.xpose.msra.mxu0 0
    %468 = vmatprep.subr.bf16.mxu0 0
    %469 = vmatpush1.bf16.xpose.msra.mxu0 0
    %470 = vmatprep.subr.bf16.mxu0 0
    %471 = vmatpush1.bf16.xpose.msra.mxu0 0
    %472 = vmatprep.subr.bf16.mxu0 0
    %473 = vmatpush1.bf16.xpose.msra.mxu0 0
    %474 = vmatprep.subr.bf16.mxu0 0
    %475 = vmatpush1.bf16.xpose.msra.mxu0 0
    %476 = vmatprep.subr.bf16.mxu0 0
    %477 = vmatpush1.bf16.xpose.msra.mxu0 0
    %478 = vmatprep.subr.bf16.mxu0 0
    %479 = vmatpush1.bf16.xpose.msra.mxu0 0
    %480 = vmatprep.subr.bf16.mxu0 0
    %481 = vmatpush1.bf16.xpose.msra.mxu0 0
    %482 = vmatprep.subr.bf16.mxu0 0
    %483 = vmatpush1.bf16.xpose.msra.mxu0 0
    %484 = vmatprep.mubr.bf16.mxu0 0
    %485 = vmatmul.mubr.bf16.gmra.mrb[0].mxu0 %v447
    %v486 = vpop.f32.mrb[0].mxu0
    %v487 = vadd.f32 0.0, %v486
    %v488 = vpop.f32.mrb[0].mxu0
    %v489 = vpop.f32.mrb[0].mxu0
    %v490 = vpop.f32.mrb[0].mxu0
    %491 = vdwg.mxu0
    %v492 = vmul.f32 %v487, 0.35355338
    %s493 = scalar_lea.vmem %s2, 1
    %v494 = vld [vmem:[%s493] sm:$0x1]
    %v496 = vlaneseq
    %v497 = vshrl.u32 %v496, 7
    %v498 = vsub.s32 0, %v497
    %v499 = vrot.slane %v494, %v498
    %v501 = vadd.f32 %v492, %v499
    %v502 = vsel %vm326, %v501, -inf
    %503 = vmax.xlane.f32.xlu0 %v502
    %v504 = vpop.xlane.xlu0 %503
    %v505 = vsub.f32 %v501, %v504
    %v506 = vmul.f32 %v505, 1.442695
    %v507 = vpow.pop %v506
    %v508 = vsel %vm326, %v507, 0.0
    %509 = vadd.xlane.f32.xlu0 %v508
    %v510 = vpop.xlane.xlu0 %509
    %v511 = vrcp.pop %v510
    %v512 = vmul.f32 %v507, %v511
    %v513 = vpack.c.bf16 %v512, %v512
    %v515 = vsel %vm326, %v513, 0
    %v518 = vsel %vm397, %v445, 0
    %520 = vmatprep.subr.bf16.mxu0 0
    %521 = vmatpush1.bf16.msra.mxu0 %v518
    %522 = vmatprep.subr.bf16.mxu0 0
    %523 = vmatpush1.bf16.msra.mxu0 0
    %524 = vmatprep.subr.bf16.mxu0 0
    %525 = vmatpush1.bf16.msra.mxu0 0
    %526 = vmatprep.subr.bf16.mxu0 0
    %527 = vmatpush1.bf16.msra.mxu0 0
    %528 = vmatprep.subr.bf16.mxu0 0
    %529 = vmatpush1.bf16.msra.mxu0 0
    %530 = vmatprep.subr.bf16.mxu0 0
    %531 = vmatpush1.bf16.msra.mxu0 0
    %532 = vmatprep.subr.bf16.mxu0 0
    %533 = vmatpush1.bf16.msra.mxu0 0
    %534 = vmatprep.subr.bf16.mxu0 0
    %535 = vmatpush1.bf16.msra.mxu0 0
    %536 = vmatprep.subr.bf16.mxu0 0
    %537 = vmatpush1.bf16.msra.mxu0 0
    %538 = vmatprep.subr.bf16.mxu0 0
    %539 = vmatpush1.bf16.msra.mxu0 0
    %540 = vmatprep.subr.bf16.mxu0 0
    %541 = vmatpush1.bf16.msra.mxu0 0
    %542 = vmatprep.subr.bf16.mxu0 0
    %543 = vmatpush1.bf16.msra.mxu0 0
    %544 = vmatprep.subr.bf16.mxu0 0
    %545 = vmatpush1.bf16.msra.mxu0 0
    %546 = vmatprep.subr.bf16.mxu0 0
    %547 = vmatpush1.bf16.msra.mxu0 0
    %548 = vmatprep.subr.bf16.mxu0 0
    %549 = vmatpush1.bf16.msra.mxu0 0
    %550 = vmatprep.subr.bf16.mxu0 0
    %551 = vmatpush1.bf16.msra.mxu0 0
    %552 = vmatprep.mubr.bf16.mxu0 0
    %553 = vmatmul.mubr.bf16.gmra.mrb[0].mxu0 %v515
    %v554 = vpop.f32.mrb[0].mxu0
    %v555 = vadd.f32 0.0, %v554
    %v556 = vpop.f32.mrb[0].mxu0
    %v557 = vpop.f32.mrb[0].mxu0
    %v558 = vpop.f32.mrb[0].mxu0
    %559 = vdwg.mxu0
    %v560 = vpack.c.bf16 %v555, %v555
    %s561 = scalar_lea.vmem %s5, 16
    %v562 = vld [vmem:[%s561] sm:$0xf]
    %v563 = vld [vmem:[%s561 + $0x4] sm:$0xf]
    %v564 = vld [vmem:[%s561 + $0x8] sm:$0xf]
    %v565 = vld [vmem:[%s561 + $0xc] sm:$0xf]
    %v566 = vld [vmem:[%s6 + $0x1] sm:$0x1]
    %v567 = vlaneseq
    %v568 = vshrl.u32 %v567, 7
    %v569 = vsub.s32 0, %v568
    %v570 = vrot.slane %v566, %v569
    %v575 = vunpack.c.l.b16 %v562
    %v576 = vunpack.c.l.b16 %v563
    %v577 = vunpack.c.l.b16 %v564
    %v578 = vunpack.c.l.b16 %v565
    %v579 = vpack.c.b16 %v576, %v575
    %v580 = vpack.c.b16 %v578, %v577
    %583 = vmatprep.subr.bf16.mxu0 0
    %584 = vmatpush1.bf16.msra.mxu0 %v579
    %585 = vmatprep.subr.bf16.mxu0 0
    %586 = vmatpush1.bf16.msra.mxu0 %v580
    %587 = vmatprep.subr.bf16.mxu0 0
    %588 = vmatpush1.bf16.msra.mxu0 0
    %589 = vmatprep.subr.bf16.mxu0 0
    %590 = vmatpush1.bf16.msra.mxu0 0
    %591 = vmatprep.subr.bf16.mxu0 0
    %592 = vmatpush1.bf16.msra.mxu0 0
    %593 = vmatprep.subr.bf16.mxu0 0
    %594 = vmatpush1.bf16.msra.mxu0 0
    %595 = vmatprep.subr.bf16.mxu0 0
    %596 = vmatpush1.bf16.msra.mxu0 0
    %597 = vmatprep.subr.bf16.mxu0 0
    %598 = vmatpush1.bf16.msra.mxu0 0
    %599 = vmatprep.subr.bf16.mxu0 0
    %600 = vmatpush1.bf16.msra.mxu0 0
    %601 = vmatprep.subr.bf16.mxu0 0
    %602 = vmatpush1.bf16.msra.mxu0 0
    %603 = vmatprep.subr.bf16.mxu0 0
    %604 = vmatpush1.bf16.msra.mxu0 0
    %605 = vmatprep.subr.bf16.mxu0 0
    %606 = vmatpush1.bf16.msra.mxu0 0
    %607 = vmatprep.subr.bf16.mxu0 0
    %608 = vmatpush1.bf16.msra.mxu0 0
    %609 = vmatprep.subr.bf16.mxu0 0
    %610 = vmatpush1.bf16.msra.mxu0 0
    %611 = vmatprep.subr.bf16.mxu0 0
    %612 = vmatpush1.bf16.msra.mxu0 0
    %613 = vmatprep.subr.bf16.mxu0 0
    %614 = vmatpush1.bf16.msra.mxu0 0
    %615 = vmatprep.mubr.bf16.mxu0 0
    %616 = vmatmul.mubr.bf16.gmra.mrb[0].mxu0 %v153
    %v617 = vpop.f32.mrb[0].mxu0
    %v618 = vadd.f32 %v570, %v617
    %v619 = vpop.f32.mrb[0].mxu0
    %v620 = vpop.f32.mrb[0].mxu0
    %v621 = vadd.f32 %v570, %v620
    %v622 = vpop.f32.mrb[0].mxu0
    %623 = vdwg.mxu0
    %s624 = scalar_lea.vmem %s7, 16
    %v625 = vld [vmem:[%s624] sm:$0xf]
    %v626 = vld [vmem:[%s624 + $0x4] sm:$0xf]
    %v627 = vld [vmem:[%s624 + $0x8] sm:$0xf]
    %v628 = vld [vmem:[%s624 + $0xc] sm:$0xf]
    %v629 = vld [vmem:[%s8 + $0x1] sm:$0x1]
    %v630 = vlaneseq
    %v631 = vshrl.u32 %v630, 7
    %v632 = vsub.s32 0, %v631
    %v633 = vrot.slane %v629, %v632
    %v638 = vunpack.c.l.b16 %v625
    %v639 = vunpack.c.l.b16 %v626
    %v640 = vunpack.c.l.b16 %v627
    %v641 = vunpack.c.l.b16 %v628
    %v642 = vpack.c.b16 %v639, %v638
    %v643 = vpack.c.b16 %v641, %v640
    %646 = vmatprep.subr.bf16.mxu0 0
    %647 = vmatpush1.bf16.msra.mxu0 %v642
    %648 = vmatprep.subr.bf16.mxu0 0
    %649 = vmatpush1.bf16.msra.mxu0 %v643
    %650 = vmatprep.subr.bf16.mxu0 0
    %651 = vmatpush1.bf16.msra.mxu0 0
    %652 = vmatprep.subr.bf16.mxu0 0
    %653 = vmatpush1.bf16.msra.mxu0 0
    %654 = vmatprep.subr.bf16.mxu0 0
    %655 = vmatpush1.bf16.msra.mxu0 0
    %656 = vmatprep.subr.bf16.mxu0 0
    %657 = vmatpush1.bf16.msra.mxu0 0
    %658 = vmatprep.subr.bf16.mxu0 0
    %659 = vmatpush1.bf16.msra.mxu0 0
    %660 = vmatprep.subr.bf16.mxu0 0
    %661 = vmatpush1.bf16.msra.mxu0 0
    %662 = vmatprep.subr.bf16.mxu0 0
    %663 = vmatpush1.bf16.msra.mxu0 0
    %664 = vmatprep.subr.bf16.mxu0 0
    %665 = vmatpush1.bf16.msra.mxu0 0
    %666 = vmatprep.subr.bf16.mxu0 0
    %667 = vmatpush1.bf16.msra.mxu0 0
    %668 = vmatprep.subr.bf16.mxu0 0
    %669 = vmatpush1.bf16.msra.mxu0 0
    %670 = vmatprep.subr.bf16.mxu0 0
    %671 = vmatpush1.bf16.msra.mxu0 0
    %672 = vmatprep.subr.bf16.mxu0 0
    %673 = vmatpush1.bf16.msra.mxu0 0
    %674 = vmatprep.subr.bf16.mxu0 0
    %675 = vmatpush1.bf16.msra.mxu0 0
    %676 = vmatprep.subr.bf16.mxu0 0
    %677 = vmatpush1.bf16.msra.mxu0 0
    %678 = vmatprep.mubr.bf16.mxu0 0
    %679 = vmatmul.mubr.bf16.gmra.mrb[0].mxu0 %v218
    %v680 = vpop.f32.mrb[0].mxu0
    %v681 = vadd.f32 %v633, %v680
    %v682 = vpop.f32.mrb[0].mxu0
    %v683 = vpop.f32.mrb[0].mxu0
    %v684 = vadd.f32 %v633, %v683
    %v685 = vpop.f32.mrb[0].mxu0
    %686 = vdwg.mxu0
    %s687 = scalar_lea.vmem %s9, 16
    %v688 = vld [vmem:[%s687] sm:$0xf]
    %v689 = vld [vmem:[%s687 + $0x4] sm:$0xf]
    %v690 = vld [vmem:[%s687 + $0x8] sm:$0xf]
    %v691 = vld [vmem:[%s687 + $0xc] sm:$0xf]
    %v692 = vld [vmem:[%s10 + $0x1] sm:$0x1]
    %v693 = vlaneseq
    %v694 = vshrl.u32 %v693, 7
    %v695 = vsub.s32 0, %v694
    %v696 = vrot.slane %v692, %v695
    %v701 = vunpack.c.l.b16 %v688
    %v702 = vunpack.c.l.b16 %v689
    %v703 = vunpack.c.l.b16 %v690
    %v704 = vunpack.c.l.b16 %v691
    %v705 = vpack.c.b16 %v702, %v701
    %v706 = vpack.c.b16 %v704, %v703
    %709 = vmatprep.subr.bf16.mxu0 0
    %710 = vmatpush1.bf16.msra.mxu0 %v705
    %711 = vmatprep.subr.bf16.mxu0 0
    %712 = vmatpush1.bf16.msra.mxu0 %v706
    %713 = vmatprep.subr.bf16.mxu0 0
    %714 = vmatpush1.bf16.msra.mxu0 0
    %715 = vmatprep.subr.bf16.mxu0 0
    %716 = vmatpush1.bf16.msra.mxu0 0
    %717 = vmatprep.subr.bf16.mxu0 0
    %718 = vmatpush1.bf16.msra.mxu0 0
    %719 = vmatprep.subr.bf16.mxu0 0
    %720 = vmatpush1.bf16.msra.mxu0 0
    %721 = vmatprep.subr.bf16.mxu0 0
    %722 = vmatpush1.bf16.msra.mxu0 0
    %723 = vmatprep.subr.bf16.mxu0 0
    %724 = vmatpush1.bf16.msra.mxu0 0
    %725 = vmatprep.subr.bf16.mxu0 0
    %726 = vmatpush1.bf16.msra.mxu0 0
    %727 = vmatprep.subr.bf16.mxu0 0
    %728 = vmatpush1.bf16.msra.mxu0 0
    %729 = vmatprep.subr.bf16.mxu0 0
    %730 = vmatpush1.bf16.msra.mxu0 0
    %731 = vmatprep.subr.bf16.mxu0 0
    %732 = vmatpush1.bf16.msra.mxu0 0
    %733 = vmatprep.subr.bf16.mxu0 0
    %734 = vmatpush1.bf16.msra.mxu0 0
    %735 = vmatprep.subr.bf16.mxu0 0
    %736 = vmatpush1.bf16.msra.mxu0 0
    %737 = vmatprep.subr.bf16.mxu0 0
    %738 = vmatpush1.bf16.msra.mxu0 0
    %739 = vmatprep.subr.bf16.mxu0 0
    %740 = vmatpush1.bf16.msra.mxu0 0
    %741 = vmatprep.mubr.bf16.mxu0 0
    %742 = vmatmul.mubr.bf16.gmra.mrb[0].mxu0 %v218
    %v743 = vpop.f32.mrb[0].mxu0
    %v744 = vadd.f32 %v696, %v743
    %v745 = vpop.f32.mrb[0].mxu0
    %v746 = vpop.f32.mrb[0].mxu0
    %v747 = vadd.f32 %v696, %v746
    %v748 = vpop.f32.mrb[0].mxu0
    %749 = vdwg.mxu0
    %v750 = vpack.c.bf16 %v618, %v618
    %v751 = vpack.c.bf16 %v681, %v681
    %v752 = vpack.c.bf16 %v744, %v744
    %v754 = vsel %vm326, %v750, 0
    %v757 = vsel %vm326, %v751, 0
    %759 = vmatprep.subr.bf16.mxu0 0
    %760 = vmatpush1.bf16.xpose.msra.mxu0 %v757
    %761 = vmatprep.subr.bf16.mxu0 0
    %762 = vmatpush1.bf16.xpose.msra.mxu0 0
    %763 = vmatprep.subr.bf16.mxu0 0
    %764 = vmatpush1.bf16.xpose.msra.mxu0 0
    %765 = vmatprep.subr.bf16.mxu0 0
    %766 = vmatpush1.bf16.xpose.msra.mxu0 0
    %767 = vmatprep.subr.bf16.mxu0 0
    %768 = vmatpush1.bf16.xpose.msra.mxu0 0
    %769 = vmatprep.subr.bf16.mxu0 0
    %770 = vmatpush1.bf16.xpose.msra.mxu0 0
    %771 = vmatprep.subr.bf16.mxu0 0
    %772 = vmatpush1.bf16.xpose.msra.mxu0 0
    %773 = vmatprep.subr.bf16.mxu0 0
    %774 = vmatpush1.bf16.xpose.msra.mxu0 0
    %775 = vmatprep.subr.bf16.mxu0 0
    %776 = vmatpush1.bf16.xpose.msra.mxu0 0
    %777 = vmatprep.subr.bf16.mxu0 0
    %778 = vmatpush1.bf16.xpose.msra.mxu0 0
    %779 = vmatprep.subr.bf16.mxu0 0
    %780 = vmatpush1.bf16.xpose.msra.mxu0 0
    %781 = vmatprep.subr.bf16.mxu0 0
    %782 = vmatpush1.bf16.xpose.msra.mxu0 0
    %783 = vmatprep.subr.bf16.mxu0 0
    %784 = vmatpush1.bf16.xpose.msra.mxu0 0
    %785 = vmatprep.subr.bf16.mxu0 0
    %786 = vmatpush1.bf16.xpose.msra.mxu0 0
    %787 = vmatprep.subr.bf16.mxu0 0
    %788 = vmatpush1.bf16.xpose.msra.mxu0 0
    %789 = vmatprep.subr.bf16.mxu0 0
    %790 = vmatpush1.bf16.xpose.msra.mxu0 0
    %791 = vmatprep.mubr.bf16.mxu0 0
    %792 = vmatmul.mubr.bf16.gmra.mrb[0].mxu0 %v754
    %v793 = vpop.f32.mrb[0].mxu0
    %v794 = vadd.f32 0.0, %v793
    %v795 = vpop.f32.mrb[0].mxu0
    %v796 = vpop.f32.mrb[0].mxu0
    %v797 = vpop.f32.mrb[0].mxu0
    %798 = vdwg.mxu0
    %v799 = vmul.f32 %v794, 0.35355338
    %v800 = vadd.f32 %v799, %v379
    %v801 = vsel %vm326, %v800, -inf
    %802 = vmax.xlane.f32.xlu0 %v801
    %v803 = vpop.xlane.xlu0 %802
    %v804 = vsub.f32 %v800, %v803
    %v805 = vmul.f32 %v804, 1.442695
    %v806 = vpow.pop %v805
    %v807 = vsel %vm326, %v806, 0.0
    %808 = vadd.xlane.f32.xlu0 %v807
    %v809 = vpop.xlane.xlu0 %808
    %v810 = vrcp.pop %v809
    %v811 = vmul.f32 %v806, %v810
    %v812 = vpack.c.bf16 %v811, %v811
    %v814 = vsel %vm326, %v812, 0
    %v817 = vsel %vm397, %v752, 0
    %819 = vmatprep.subr.bf16.mxu0 0
    %820 = vmatpush1.bf16.msra.mxu0 %v817
    %821 = vmatprep.subr.bf16.mxu0 0
    %822 = vmatpush1.bf16.msra.mxu0 0
    %823 = vmatprep.subr.bf16.mxu0 0
    %824 = vmatpush1.bf16.msra.mxu0 0
    %825 = vmatprep.subr.bf16.mxu0 0
    %826 = vmatpush1.bf16.msra.mxu0 0
    %827 = vmatprep.subr.bf16.mxu0 0
    %828 = vmatpush1.bf16.msra.mxu0 0
    %829 = vmatprep.subr.bf16.mxu0 0
    %830 = vmatpush1.bf16.msra.mxu0 0
    %831 = vmatprep.subr.bf16.mxu0 0
    %832 = vmatpush1.bf16.msra.mxu0 0
    %833 = vmatprep.subr.bf16.mxu0 0
    %834 = vmatpush1.bf16.msra.mxu0 0
    %835 = vmatprep.subr.bf16.mxu0 0
    %836 = vmatpush1.bf16.msra.mxu0 0
    %837 = vmatprep.subr.bf16.mxu0 0
    %838 = vmatpush1.bf16.msra.mxu0 0
    %839 = vmatprep.subr.bf16.mxu0 0
    %840 = vmatpush1.bf16.msra.mxu0 0
    %841 = vmatprep.subr.bf16.mxu0 0
    %842 = vmatpush1.bf16.msra.mxu0 0
    %843 = vmatprep.subr.bf16.mxu0 0
    %844 = vmatpush1.bf16.msra.mxu0 0
    %845 = vmatprep.subr.bf16.mxu0 0
    %846 = vmatpush1.bf16.msra.mxu0 0
    %847 = vmatprep.subr.bf16.mxu0 0
    %848 = vmatpush1.bf16.msra.mxu0 0
    %849 = vmatprep.subr.bf16.mxu0 0
    %850 = vmatpush1.bf16.msra.mxu0 0
    %851 = vmatprep.mubr.bf16.mxu0 0
    %852 = vmatmul.mubr.bf16.gmra.mrb[0].mxu0 %v814
    %v853 = vpop.f32.mrb[0].mxu0
    %v854 = vadd.f32 0.0, %v853
    %v855 = vpop.f32.mrb[0].mxu0
    %v856 = vpop.f32.mrb[0].mxu0
    %v857 = vpop.f32.mrb[0].mxu0
    %858 = vdwg.mxu0
    %v859 = vpack.c.bf16 %v854, %v854
    %s860 = scalar_lea.vmem %s11, 4
    %v861 = vld [vmem:[%s860] sm:$0xf]
    %v863 = vsel %vm326, %v859, 0
    %v866 = vsel %vm397, %v861, 0
    %868 = vmatprep.subr.bf16.mxu0 0
    %869 = vmatpush1.bf16.msra.mxu0 %v866
    %870 = vmatprep.subr.bf16.mxu0 0
    %871 = vmatpush1.bf16.msra.mxu0 0
    %872 = vmatprep.subr.bf16.mxu0 0
    %873 = vmatpush1.bf16.msra.mxu0 0
    %874 = vmatprep.subr.bf16.mxu0 0
    %875 = vmatpush1.bf16.msra.mxu0 0
    %876 = vmatprep.subr.bf16.mxu0 0
    %877 = vmatpush1.bf16.msra.mxu0 0
    %878 = vmatprep.subr.bf16.mxu0 0
    %879 = vmatpush1.bf16.msra.mxu0 0
    %880 = vmatprep.subr.bf16.mxu0 0
    %881 = vmatpush1.bf16.msra.mxu0 0
    %882 = vmatprep.subr.bf16.mxu0 0
    %883 = vmatpush1.bf16.msra.mxu0 0
    %884 = vmatprep.subr.bf16.mxu0 0
    %885 = vmatpush1.bf16.msra.mxu0 0
    %886 = vmatprep.subr.bf16.mxu0 0
    %887 = vmatpush1.bf16.msra.mxu0 0
    %888 = vmatprep.subr.bf16.mxu0 0
    %889 = vmatpush1.bf16.msra.mxu0 0
    %890 = vmatprep.subr.bf16.mxu0 0
    %891 = vmatpush1.bf16.msra.mxu0 0
    %892 = vmatprep.subr.bf16.mxu0 0
    %893 = vmatpush1.bf16.msra.mxu0 0
    %894 = vmatprep.subr.bf16.mxu0 0
    %895 = vmatpush1.bf16.msra.mxu0 0
    %896 = vmatprep.subr.bf16.mxu0 0
    %897 = vmatpush1.bf16.msra.mxu0 0
    %898 = vmatprep.subr.bf16.mxu0 0
    %899 = vmatpush1.bf16.msra.mxu0 0
    %900 = vmatprep.mubr.bf16.mxu0 0
    %901 = vmatmul.mubr.bf16.gmra.mrb[0].mxu0 %v863
    %v902 = vpop.f32.mrb[0].mxu0
    %v903 = vadd.f32 0.0, %v902
    %v904 = vpop.f32.mrb[0].mxu0
    %v905 = vpop.f32.mrb[0].mxu0
    %v906 = vpop.f32.mrb[0].mxu0
    %907 = vdwg.mxu0
    %v909 = vsel %vm326, %v441, 0
    %v912 = vsel %vm397, %v442, 0
    %914 = vmatprep.subr.bf16.mxu0 0
    %915 = vmatpush1.bf16.msra.mxu0 %v912
    %916 = vmatprep.subr.bf16.mxu0 0
    %917 = vmatpush1.bf16.msra.mxu0 0
    %918 = vmatprep.subr.bf16.mxu0 0
    %919 = vmatpush1.bf16.msra.mxu0 0
    %920 = vmatprep.subr.bf16.mxu0 0
    %921 = vmatpush1.bf16.msra.mxu0 0
    %922 = vmatprep.subr.bf16.mxu0 0
    %923 = vmatpush1.bf16.msra.mxu0 0
    %924 = vmatprep.subr.bf16.mxu0 0
    %925 = vmatpush1.bf16.msra.mxu0 0
    %926 = vmatprep.subr.bf16.mxu0 0
    %927 = vmatpush1.bf16.msra.mxu0 0
    %928 = vmatprep.subr.bf16.mxu0 0
    %929 = vmatpush1.bf16.msra.mxu0 0
    %930 = vmatprep.subr.bf16.mxu0 0
    %931 = vmatpush1.bf16.msra.mxu0 0
    %932 = vmatprep.subr.bf16.mxu0 0
    %933 = vmatpush1.bf16.msra.mxu0 0
    %934 = vmatprep.subr.bf16.mxu0 0
    %935 = vmatpush1.bf16.msra.mxu0 0
    %936 = vmatprep.subr.bf16.mxu0 0
    %937 = vmatpush1.bf16.msra.mxu0 0
    %938 = vmatprep.subr.bf16.mxu0 0
    %939 = vmatpush1.bf16.msra.mxu0 0
    %940 = vmatprep.subr.bf16.mxu0 0
    %941 = vmatpush1.bf16.msra.mxu0 0
    %942 = vmatprep.subr.bf16.mxu0 0
    %943 = vmatpush1.bf16.msra.mxu0 0
    %944 = vmatprep.subr.bf16.mxu0 0
    %945 = vmatpush1.bf16.msra.mxu0 0
    %946 = vmatprep.mubr.bf16.mxu0 0
    %947 = vmatmul.mubr.bf16.gmra.mrb[0].mxu0 %v909
    %v948 = vpop.f32.mrb[0].mxu0
    %v949 = vadd.f32 %v903, %v948
    %v950 = vpop.f32.mrb[0].mxu0
    %v951 = vpop.f32.mrb[0].mxu0
    %v952 = vpop.f32.mrb[0].mxu0
    %953 = vdwg.mxu0
    %v954 = vpack.c.bf16 %v621, %v621
    %v955 = vpack.c.bf16 %v684, %v684
    %v956 = vpack.c.bf16 %v747, %v747
    %v958 = vsel %vm326, %v954, 0
    %v961 = vsel %vm326, %v955, 0
    %963 = vmatprep.subr.bf16.mxu0 0
    %964 = vmatpush1.bf16.xpose.msra.mxu0 %v961
    %965 = vmatprep.subr.bf16.mxu0 0
    %966 = vmatpush1.bf16.xpose.msra.mxu0 0
    %967 = vmatprep.subr.bf16.mxu0 0
    %968 = vmatpush1.bf16.xpose.msra.mxu0 0
    %969 = vmatprep.subr.bf16.mxu0 0
    %970 = vmatpush1.bf16.xpose.msra.mxu0 0
    %971 = vmatprep.subr.bf16.mxu0 0
    %972 = vmatpush1.bf16.xpose.msra.mxu0 0
    %973 = vmatprep.subr.bf16.mxu0 0
    %974 = vmatpush1.bf16.xpose.msra.mxu0 0
    %975 = vmatprep.subr.bf16.mxu0 0
    %976 = vmatpush1.bf16.xpose.msra.mxu0 0
    %977 = vmatprep.subr.bf16.mxu0 0
    %978 = vmatpush1.bf16.xpose.msra.mxu0 0
    %979 = vmatprep.subr.bf16.mxu0 0
    %980 = vmatpush1.bf16.xpose.msra.mxu0 0
    %981 = vmatprep.subr.bf16.mxu0 0
    %982 = vmatpush1.bf16.xpose.msra.mxu0 0
    %983 = vmatprep.subr.bf16.mxu0 0
    %984 = vmatpush1.bf16.xpose.msra.mxu0 0
    %985 = vmatprep.subr.bf16.mxu0 0
    %986 = vmatpush1.bf16.xpose.msra.mxu0 0
    %987 = vmatprep.subr.bf16.mxu0 0
    %988 = vmatpush1.bf16.xpose.msra.mxu0 0
    %989 = vmatprep.subr.bf16.mxu0 0
    %990 = vmatpush1.bf16.xpose.msra.mxu0 0
    %991 = vmatprep.subr.bf16.mxu0 0
    %992 = vmatpush1.bf16.xpose.msra.mxu0 0
    %993 = vmatprep.subr.bf16.mxu0 0
    %994 = vmatpush1.bf16.xpose.msra.mxu0 0
    %995 = vmatprep.mubr.bf16.mxu0 0
    %996 = vmatmul.mubr.bf16.gmra.mrb[0].mxu0 %v958
    %v997 = vpop.f32.mrb[0].mxu0
    %v998 = vadd.f32 0.0, %v997
    %v999 = vpop.f32.mrb[0].mxu0
    %v1000 = vpop.f32.mrb[0].mxu0
    %v1001 = vpop.f32.mrb[0].mxu0
    %1002 = vdwg.mxu0
    %v1003 = vmul.f32 %v998, 0.35355338
    %v1004 = vadd.f32 %v1003, %v499
    %v1005 = vsel %vm326, %v1004, -inf
    %1006 = vmax.xlane.f32.xlu0 %v1005
    %v1007 = vpop.xlane.xlu0 %1006
    %v1008 = vsub.f32 %v1004, %v1007
    %v1009 = vmul.f32 %v1008, 1.442695
    %v1010 = vpow.pop %v1009
    %v1011 = vsel %vm326, %v1010, 0.0
    %1012 = vadd.xlane.f32.xlu0 %v1011
    %v1013 = vpop.xlane.xlu0 %1012
    %v1014 = vrcp.pop %v1013
    %v1015 = vmul.f32 %v1010, %v1014
    %v1016 = vpack.c.bf16 %v1015, %v1015
    %v1018 = vsel %vm326, %v1016, 0
    %v1021 = vsel %vm397, %v956, 0
    %1023 = vmatprep.subr.bf16.mxu0 0
    %1024 = vmatpush1.bf16.msra.mxu0 %v1021
    %1025 = vmatprep.subr.bf16.mxu0 0
    %1026 = vmatpush1.bf16.msra.mxu0 0
    %1027 = vmatprep.subr.bf16.mxu0 0
    %1028 = vmatpush1.bf16.msra.mxu0 0
    %1029 = vmatprep.subr.bf16.mxu0 0
    %1030 = vmatpush1.bf16.msra.mxu0 0
    %1031 = vmatprep.subr.bf16.mxu0 0
    %1032 = vmatpush1.bf16.msra.mxu0 0
    %1033 = vmatprep.subr.bf16.mxu0 0
    %1034 = vmatpush1.bf16.msra.mxu0 0
    %1035 = vmatprep.subr.bf16.mxu0 0
    %1036 = vmatpush1.bf16.msra.mxu0 0
    %1037 = vmatprep.subr.bf16.mxu0 0
    %1038 = vmatpush1.bf16.msra.mxu0 0
    %1039 = vmatprep.subr.bf16.mxu0 0
    %1040 = vmatpush1.bf16.msra.mxu0 0
    %1041 = vmatprep.subr.bf16.mxu0 0
    %1042 = vmatpush1.bf16.msra.mxu0 0
    %1043 = vmatprep.subr.bf16.mxu0 0
    %1044 = vmatpush1.bf16.msra.mxu0 0
    %1045 = vmatprep.subr.bf16.mxu0 0
    %1046 = vmatpush1.bf16.msra.mxu0 0
    %1047 = vmatprep.subr.bf16.mxu0 0
    %1048 = vmatpush1.bf16.msra.mxu0 0
    %1049 = vmatprep.subr.bf16.mxu0 0
    %1050 = vmatpush1.bf16.msra.mxu0 0
    %1051 = vmatprep.subr.bf16.mxu0 0
    %1052 = vmatpush1.bf16.msra.mxu0 0
    %1053 = vmatprep.subr.bf16.mxu0 0
    %1054 = vmatpush1.bf16.msra.mxu0 0
    %1055 = vmatprep.mubr.bf16.mxu0 0
    %1056 = vmatmul.mubr.bf16.gmra.mrb[0].mxu0 %v1018
    %v1057 = vpop.f32.mrb[0].mxu0
    %v1058 = vadd.f32 0.0, %v1057
    %v1059 = vpop.f32.mrb[0].mxu0
    %v1060 = vpop.f32.mrb[0].mxu0
    %v1061 = vpop.f32.mrb[0].mxu0
    %1062 = vdwg.mxu0
    %v1063 = vpack.c.bf16 %v1058, %v1058
    %v1065 = vsel %vm326, %v1063, 0
    %1067 = vmatprep.subr.bf16.mxu0 0
    %1068 = vmatpush1.bf16.msra.mxu0 %v866
    %1069 = vmatprep.subr.bf16.mxu0 0
    %1070 = vmatpush1.bf16.msra.mxu0 0
    %1071 = vmatprep.subr.bf16.mxu0 0
    %1072 = vmatpush1.bf16.msra.mxu0 0
    %1073 = vmatprep.subr.bf16.mxu0 0
    %1074 = vmatpush1.bf16.msra.mxu0 0
    %1075 = vmatprep.subr.bf16.mxu0 0
    %1076 = vmatpush1.bf16.msra.mxu0 0
    %1077 = vmatprep.subr.bf16.mxu0 0
    %1078 = vmatpush1.bf16.msra.mxu0 0
    %1079 = vmatprep.subr.bf16.mxu0 0
    %1080 = vmatpush1.bf16.msra.mxu0 0
    %1081 = vmatprep.subr.bf16.mxu0 0
    %1082 = vmatpush1.bf16.msra.mxu0 0
    %1083 = vmatprep.subr.bf16.mxu0 0
    %1084 = vmatpush1.bf16.msra.mxu0 0
    %1085 = vmatprep.subr.bf16.mxu0 0
    %1086 = vmatpush1.bf16.msra.mxu0 0
    %1087 = vmatprep.subr.bf16.mxu0 0
    %1088 = vmatpush1.bf16.msra.mxu0 0
    %1089 = vmatprep.subr.bf16.mxu0 0
    %1090 = vmatpush1.bf16.msra.mxu0 0
    %1091 = vmatprep.subr.bf16.mxu0 0
    %1092 = vmatpush1.bf16.msra.mxu0 0
    %1093 = vmatprep.subr.bf16.mxu0 0
    %1094 = vmatpush1.bf16.msra.mxu0 0
    %1095 = vmatprep.subr.bf16.mxu0 0
    %1096 = vmatpush1.bf16.msra.mxu0 0
    %1097 = vmatprep.subr.bf16.mxu0 0
    %1098 = vmatpush1.bf16.msra.mxu0 0
    %1099 = vmatprep.mubr.bf16.mxu0 0
    %1100 = vmatmul.mubr.bf16.gmra.mrb[0].mxu0 %v1065
    %v1101 = vpop.f32.mrb[0].mxu0
    %v1102 = vadd.f32 0.0, %v1101
    %v1103 = vpop.f32.mrb[0].mxu0
    %v1104 = vpop.f32.mrb[0].mxu0
    %v1105 = vpop.f32.mrb[0].mxu0
    %1106 = vdwg.mxu0
    %v1108 = vsel %vm326, %v560, 0
    %1110 = vmatprep.subr.bf16.mxu0 0
    %1111 = vmatpush1.bf16.msra.mxu0 %v912
    %1112 = vmatprep.subr.bf16.mxu0 0
    %1113 = vmatpush1.bf16.msra.mxu0 0
    %1114 = vmatprep.subr.bf16.mxu0 0
    %1115 = vmatpush1.bf16.msra.mxu0 0
    %1116 = vmatprep.subr.bf16.mxu0 0
    %1117 = vmatpush1.bf16.msra.mxu0 0
    %1118 = vmatprep.subr.bf16.mxu0 0
    %1119 = vmatpush1.bf16.msra.mxu0 0
    %1120 = vmatprep.subr.bf16.mxu0 0
    %1121 = vmatpush1.bf16.msra.mxu0 0
    %1122 = vmatprep.subr.bf16.mxu0 0
    %1123 = vmatpush1.bf16.msra.mxu0 0
    %1124 = vmatprep.subr.bf16.mxu0 0
    %1125 = vmatpush1.bf16.msra.mxu0 0
    %1126 = vmatprep.subr.bf16.mxu0 0
    %1127 = vmatpush1.bf16.msra.mxu0 0
    %1128 = vmatprep.subr.bf16.mxu0 0
    %1129 = vmatpush1.bf16.msra.mxu0 0
    %1130 = vmatprep.subr.bf16.mxu0 0
    %1131 = vmatpush1.bf16.msra.mxu0 0
    %1132 = vmatprep.subr.bf16.mxu0 0
    %1133 = vmatpush1.bf16.msra.mxu0 0
    %1134 = vmatprep.subr.bf16.mxu0 0
    %1135 = vmatpush1.bf16.msra.mxu0 0
    %1136 = vmatprep.subr.bf16.mxu0 0
    %1137 = vmatpush1.bf16.msra.mxu0 0
    %1138 = vmatprep.subr.bf16.mxu0 0
    %1139 = vmatpush1.bf16.msra.mxu0 0
    %1140 = vmatprep.subr.bf16.mxu0 0
    %1141 = vmatpush1.bf16.msra.mxu0 0
    %1142 = vmatprep.mubr.bf16.mxu0 0
    %1143 = vmatmul.mubr.bf16.gmra.mrb[0].mxu0 %v1108
    %v1144 = vpop.f32.mrb[0].mxu0
    %v1145 = vadd.f32 %v1102, %v1144
    %v1146 = vpop.f32.mrb[0].mxu0
    %v1147 = vpop.f32.mrb[0].mxu0
    %v1148 = vpop.f32.mrb[0].mxu0
    %1149 = vdwg.mxu0
    %s1150 = scalar_lea.vmem %s5, 32
    %v1151 = vld [vmem:[%s1150] sm:$0xf]
    %v1152 = vld [vmem:[%s1150 + $0x4] sm:$0xf]
    %v1153 = vld [vmem:[%s1150 + $0x8] sm:$0xf]
    %v1154 = vld [vmem:[%s1150 + $0xc] sm:$0xf]
    %v1155 = vld [vmem:[%s6 + $0x2] sm:$0x1]
    %v1156 = vlaneseq
    %v1157 = vshrl.u32 %v1156, 7
    %v1158 = vsub.s32 0, %v1157
    %v1159 = vrot.slane %v1155, %v1158
    %v1164 = vunpack.c.l.b16 %v1151
    %v1165 = vunpack.c.l.b16 %v1152
    %v1166 = vunpack.c.l.b16 %v1153
    %v1167 = vunpack.c.l.b16 %v1154
    %v1168 = vpack.c.b16 %v1165, %v1164
    %v1169 = vpack.c.b16 %v1167, %v1166
    %1172 = vmatprep.subr.bf16.mxu0 0
    %1173 = vmatpush1.bf16.msra.mxu0 %v1168
    %1174 = vmatprep.subr.bf16.mxu0 0
    %1175 = vmatpush1.bf16.msra.mxu0 %v1169
    %1176 = vmatprep.subr.bf16.mxu0 0
    %1177 = vmatpush1.bf16.msra.mxu0 0
    %1178 = vmatprep.subr.bf16.mxu0 0
    %1179 = vmatpush1.bf16.msra.mxu0 0
    %1180 = vmatprep.subr.bf16.mxu0 0
    %1181 = vmatpush1.bf16.msra.mxu0 0
    %1182 = vmatprep.subr.bf16.mxu0 0
    %1183 = vmatpush1.bf16.msra.mxu0 0
    %1184 = vmatprep.subr.bf16.mxu0 0
    %1185 = vmatpush1.bf16.msra.mxu0 0
    %1186 = vmatprep.subr.bf16.mxu0 0
    %1187 = vmatpush1.bf16.msra.mxu0 0
    %1188 = vmatprep.subr.bf16.mxu0 0
    %1189 = vmatpush1.bf16.msra.mxu0 0
    %1190 = vmatprep.subr.bf16.mxu0 0
    %1191 = vmatpush1.bf16.msra.mxu0 0
    %1192 = vmatprep.subr.bf16.mxu0 0
    %1193 = vmatpush1.bf16.msra.mxu0 0
    %1194 = vmatprep.subr.bf16.mxu0 0
    %1195 = vmatpush1.bf16.msra.mxu0 0
    %1196 = vmatprep.subr.bf16.mxu0 0
    %1197 = vmatpush1.bf16.msra.mxu0 0
    %1198 = vmatprep.subr.bf16.mxu0 0
    %1199 = vmatpush1.bf16.msra.mxu0 0
    %1200 = vmatprep.subr.bf16.mxu0 0
    %1201 = vmatpush1.bf16.msra.mxu0 0
    %1202 = vmatprep.subr.bf16.mxu0 0
    %1203 = vmatpush1.bf16.msra.mxu0 0
    %1204 = vmatprep.mubr.bf16.mxu0 0
    %1205 = vmatmul.mubr.bf16.gmra.mrb[0].mxu0 %v153
    %v1206 = vpop.f32.mrb[0].mxu0
    %v1207 = vadd.f32 %v1159, %v1206
    %v1208 = vpop.f32.mrb[0].mxu0
    %v1209 = vpop.f32.mrb[0].mxu0
    %v1210 = vadd.f32 %v1159, %v1209
    %v1211 = vpop.f32.mrb[0].mxu0
    %1212 = vdwg.mxu0
    %s1213 = scalar_lea.vmem %s7, 32
    %v1214 = vld [vmem:[%s1213] sm:$0xf]
    %v1215 = vld [vmem:[%s1213 + $0x4] sm:$0xf]
    %v1216 = vld [vmem:[%s1213 + $0x8] sm:$0xf]
    %v1217 = vld [vmem:[%s1213 + $0xc] sm:$0xf]
    %v1218 = vld [vmem:[%s8 + $0x2] sm:$0x1]
    %v1219 = vlaneseq
    %v1220 = vshrl.u32 %v1219, 7
    %v1221 = vsub.s32 0, %v1220
    %v1222 = vrot.slane %v1218, %v1221
    %v1227 = vunpack.c.l.b16 %v1214
    %v1228 = vunpack.c.l.b16 %v1215
    %v1229 = vunpack.c.l.b16 %v1216
    %v1230 = vunpack.c.l.b16 %v1217
    %v1231 = vpack.c.b16 %v1228, %v1227
    %v1232 = vpack.c.b16 %v1230, %v1229
    %1235 = vmatprep.subr.bf16.mxu0 0
    %1236 = vmatpush1.bf16.msra.mxu0 %v1231
    %1237 = vmatprep.subr.bf16.mxu0 0
    %1238 = vmatpush1.bf16.msra.mxu0 %v1232
    %1239 = vmatprep.subr.bf16.mxu0 0
    %1240 = vmatpush1.bf16.msra.mxu0 0
    %1241 = vmatprep.subr.bf16.mxu0 0
    %1242 = vmatpush1.bf16.msra.mxu0 0
    %1243 = vmatprep.subr.bf16.mxu0 0
    %1244 = vmatpush1.bf16.msra.mxu0 0
    %1245 = vmatprep.subr.bf16.mxu0 0
    %1246 = vmatpush1.bf16.msra.mxu0 0
    %1247 = vmatprep.subr.bf16.mxu0 0
    %1248 = vmatpush1.bf16.msra.mxu0 0
    %1249 = vmatprep.subr.bf16.mxu0 0
    %1250 = vmatpush1.bf16.msra.mxu0 0
    %1251 = vmatprep.subr.bf16.mxu0 0
    %1252 = vmatpush1.bf16.msra.mxu0 0
    %1253 = vmatprep.subr.bf16.mxu0 0
    %1254 = vmatpush1.bf16.msra.mxu0 0
    %1255 = vmatprep.subr.bf16.mxu0 0
    %1256 = vmatpush1.bf16.msra.mxu0 0
    %1257 = vmatprep.subr.bf16.mxu0 0
    %1258 = vmatpush1.bf16.msra.mxu0 0
    %1259 = vmatprep.subr.bf16.mxu0 0
    %1260 = vmatpush1.bf16.msra.mxu0 0
    %1261 = vmatprep.subr.bf16.mxu0 0
    %1262 = vmatpush1.bf16.msra.mxu0 0
    %1263 = vmatprep.subr.bf16.mxu0 0
    %1264 = vmatpush1.bf16.msra.mxu0 0
    %1265 = vmatprep.subr.bf16.mxu0 0
    %1266 = vmatpush1.bf16.msra.mxu0 0
    %1267 = vmatprep.mubr.bf16.mxu0 0
    %1268 = vmatmul.mubr.bf16.gmra.mrb[0].mxu0 %v218
    %v1269 = vpop.f32.mrb[0].mxu0
    %v1270 = vadd.f32 %v1222, %v1269
    %v1271 = vpop.f32.mrb[0].mxu0
    %v1272 = vpop.f32.mrb[0].mxu0
    %v1273 = vadd.f32 %v1222, %v1272
    %v1274 = vpop.f32.mrb[0].mxu0
    %1275 = vdwg.mxu0
    %s1276 = scalar_lea.vmem %s9, 32
    %v1277 = vld [vmem:[%s1276] sm:$0xf]
    %v1278 = vld [vmem:[%s1276 + $0x4] sm:$0xf]
    %v1279 = vld [vmem:[%s1276 + $0x8] sm:$0xf]
    %v1280 = vld [vmem:[%s1276 + $0xc] sm:$0xf]
    %v1281 = vld [vmem:[%s10 + $0x2] sm:$0x1]
    %v1282 = vlaneseq
    %v1283 = vshrl.u32 %v1282, 7
    %v1284 = vsub.s32 0, %v1283
    %v1285 = vrot.slane %v1281, %v1284
    %v1290 = vunpack.c.l.b16 %v1277
    %v1291 = vunpack.c.l.b16 %v1278
    %v1292 = vunpack.c.l.b16 %v1279
    %v1293 = vunpack.c.l.b16 %v1280
    %v1294 = vpack.c.b16 %v1291, %v1290
    %v1295 = vpack.c.b16 %v1293, %v1292
    %1298 = vmatprep.subr.bf16.mxu0 0
    %1299 = vmatpush1.bf16.msra.mxu0 %v1294
    %1300 = vmatprep.subr.bf16.mxu0 0
    %1301 = vmatpush1.bf16.msra.mxu0 %v1295
    %1302 = vmatprep.subr.bf16.mxu0 0
    %1303 = vmatpush1.bf16.msra.mxu0 0
    %1304 = vmatprep.subr.bf16.mxu0 0
    %1305 = vmatpush1.bf16.msra.mxu0 0
    %1306 = vmatprep.subr.bf16.mxu0 0
    %1307 = vmatpush1.bf16.msra.mxu0 0
    %1308 = vmatprep.subr.bf16.mxu0 0
    %1309 = vmatpush1.bf16.msra.mxu0 0
    %1310 = vmatprep.subr.bf16.mxu0 0
    %1311 = vmatpush1.bf16.msra.mxu0 0
    %1312 = vmatprep.subr.bf16.mxu0 0
    %1313 = vmatpush1.bf16.msra.mxu0 0
    %1314 = vmatprep.subr.bf16.mxu0 0
    %1315 = vmatpush1.bf16.msra.mxu0 0
    %1316 = vmatprep.subr.bf16.mxu0 0
    %1317 = vmatpush1.bf16.msra.mxu0 0
    %1318 = vmatprep.subr.bf16.mxu0 0
    %1319 = vmatpush1.bf16.msra.mxu0 0
    %1320 = vmatprep.subr.bf16.mxu0 0
    %1321 = vmatpush1.bf16.msra.mxu0 0
    %1322 = vmatprep.subr.bf16.mxu0 0
    %1323 = vmatpush1.bf16.msra.mxu0 0
    %1324 = vmatprep.subr.bf16.mxu0 0
    %1325 = vmatpush1.bf16.msra.mxu0 0
    %1326 = vmatprep.subr.bf16.mxu0 0
    %1327 = vmatpush1.bf16.msra.mxu0 0
    %1328 = vmatprep.subr.bf16.mxu0 0
    %1329 = vmatpush1.bf16.msra.mxu0 0
    %1330 = vmatprep.mubr.bf16.mxu0 0
    %1331 = vmatmul.mubr.bf16.gmra.mrb[0].mxu0 %v218
    %v1332 = vpop.f32.mrb[0].mxu0
    %v1333 = vadd.f32 %v1285, %v1332
    %v1334 = vpop.f32.mrb[0].mxu0
    %v1335 = vpop.f32.mrb[0].mxu0
    %v1336 = vadd.f32 %v1285, %v1335
    %v1337 = vpop.f32.mrb[0].mxu0
    %1338 = vdwg.mxu0
    %v1339 = vpack.c.bf16 %v1207, %v1207
    %v1340 = vpack.c.bf16 %v1270, %v1270
    %v1341 = vpack.c.bf16 %v1333, %v1333
    %v1343 = vsel %vm326, %v1339, 0
    %v1346 = vsel %vm326, %v1340, 0
    %1348 = vmatprep.subr.bf16.mxu0 0
    %1349 = vmatpush1.bf16.xpose.msra.mxu0 %v1346
    %1350 = vmatprep.subr.bf16.mxu0 0
    %1351 = vmatpush1.bf16.xpose.msra.mxu0 0
    %1352 = vmatprep.subr.bf16.mxu0 0
    %1353 = vmatpush1.bf16.xpose.msra.mxu0 0
    %1354 = vmatprep.subr.bf16.mxu0 0
    %1355 = vmatpush1.bf16.xpose.msra.mxu0 0
    %1356 = vmatprep.subr.bf16.mxu0 0
    %1357 = vmatpush1.bf16.xpose.msra.mxu0 0
    %1358 = vmatprep.subr.bf16.mxu0 0
    %1359 = vmatpush1.bf16.xpose.msra.mxu0 0
    %1360 = vmatprep.subr.bf16.mxu0 0
    %1361 = vmatpush1.bf16.xpose.msra.mxu0 0
    %1362 = vmatprep.subr.bf16.mxu0 0
    %1363 = vmatpush1.bf16.xpose.msra.mxu0 0
    %1364 = vmatprep.subr.bf16.mxu0 0
    %1365 = vmatpush1.bf16.xpose.msra.mxu0 0
    %1366 = vmatprep.subr.bf16.mxu0 0
    %1367 = vmatpush1.bf16.xpose.msra.mxu0 0
    %1368 = vmatprep.subr.bf16.mxu0 0
    %1369 = vmatpush1.bf16.xpose.msra.mxu0 0
    %1370 = vmatprep.subr.bf16.mxu0 0
    %1371 = vmatpush1.bf16.xpose.msra.mxu0 0
    %1372 = vmatprep.subr.bf16.mxu0 0
    %1373 = vmatpush1.bf16.xpose.msra.mxu0 0
    %1374 = vmatprep.subr.bf16.mxu0 0
    %1375 = vmatpush1.bf16.xpose.msra.mxu0 0
    %1376 = vmatprep.subr.bf16.mxu0 0
    %1377 = vmatpush1.bf16.xpose.msra.mxu0 0
    %1378 = vmatprep.subr.bf16.mxu0 0
    %1379 = vmatpush1.bf16.xpose.msra.mxu0 0
    %1380 = vmatprep.mubr.bf16.mxu0 0
    %1381 = vmatmul.mubr.bf16.gmra.mrb[0].mxu0 %v1343
    %v1382 = vpop.f32.mrb[0].mxu0
    %v1383 = vadd.f32 0.0, %v1382
    %v1384 = vpop.f32.mrb[0].mxu0
    %v1385 = vpop.f32.mrb[0].mxu0
    %v1386 = vpop.f32.mrb[0].mxu0
    %1387 = vdwg.mxu0
    %v1388 = vmul.f32 %v1383, 0.35355338
    %v1389 = vadd.f32 %v1388, %v379
    %v1390 = vsel %vm326, %v1389, -inf
    %1391 = vmax.xlane.f32.xlu0 %v1390
    %v1392 = vpop.xlane.xlu0 %1391
    %v1393 = vsub.f32 %v1389, %v1392
    %v1394 = vmul.f32 %v1393, 1.442695
    %v1395 = vpow.pop %v1394
    %v1396 = vsel %vm326, %v1395, 0.0
    %1397 = vadd.xlane.f32.xlu0 %v1396
    %v1398 = vpop.xlane.xlu0 %1397
    %v1399 = vrcp.pop %v1398
    %v1400 = vmul.f32 %v1395, %v1399
    %v1401 = vpack.c.bf16 %v1400, %v1400
    %v1403 = vsel %vm326, %v1401, 0
    %v1406 = vsel %vm397, %v1341, 0
    %1408 = vmatprep.subr.bf16.mxu0 0
    %1409 = vmatpush1.bf16.msra.mxu0 %v1406
    %1410 = vmatprep.subr.bf16.mxu0 0
    %1411 = vmatpush1.bf16.msra.mxu0 0
    %1412 = vmatprep.subr.bf16.mxu0 0
    %1413 = vmatpush1.bf16.msra.mxu0 0
    %1414 = vmatprep.subr.bf16.mxu0 0
    %1415 = vmatpush1.bf16.msra.mxu0 0
    %1416 = vmatprep.subr.bf16.mxu0 0
    %1417 = vmatpush1.bf16.msra.mxu0 0
    %1418 = vmatprep.subr.bf16.mxu0 0
    %1419 = vmatpush1.bf16.msra.mxu0 0
    %1420 = vmatprep.subr.bf16.mxu0 0
    %1421 = vmatpush1.bf16.msra.mxu0 0
    %1422 = vmatprep.subr.bf16.mxu0 0
    %1423 = vmatpush1.bf16.msra.mxu0 0
    %1424 = vmatprep.subr.bf16.mxu0 0
    %1425 = vmatpush1.bf16.msra.mxu0 0
    %1426 = vmatprep.subr.bf16.mxu0 0
    %1427 = vmatpush1.bf16.msra.mxu0 0
    %1428 = vmatprep.subr.bf16.mxu0 0
    %1429 = vmatpush1.bf16.msra.mxu0 0
    %1430 = vmatprep.subr.bf16.mxu0 0
    %1431 = vmatpush1.bf16.msra.mxu0 0
    %1432 = vmatprep.subr.bf16.mxu0 0
    %1433 = vmatpush1.bf16.msra.mxu0 0
    %1434 = vmatprep.subr.bf16.mxu0 0
    %1435 = vmatpush1.bf16.msra.mxu0 0
    %1436 = vmatprep.subr.bf16.mxu0 0
    %1437 = vmatpush1.bf16.msra.mxu0 0
    %1438 = vmatprep.subr.bf16.mxu0 0
    %1439 = vmatpush1.bf16.msra.mxu0 0
    %1440 = vmatprep.mubr.bf16.mxu0 0
    %1441 = vmatmul.mubr.bf16.gmra.mrb[0].mxu0 %v1403
    %v1442 = vpop.f32.mrb[0].mxu0
    %v1443 = vadd.f32 0.0, %v1442
    %v1444 = vpop.f32.mrb[0].mxu0
    %v1445 = vpop.f32.mrb[0].mxu0
    %v1446 = vpop.f32.mrb[0].mxu0
    %1447 = vdwg.mxu0
    %v1448 = vpack.c.bf16 %v1443, %v1443
    %s1449 = scalar_lea.vmem %s11, 8
    %v1450 = vld [vmem:[%s1449] sm:$0xf]
    %v1452 = vsel %vm326, %v1448, 0
    %v1455 = vsel %vm397, %v1450, 0
    %1457 = vmatprep.subr.bf16.mxu0 0
    %1458 = vmatpush1.bf16.msra.mxu0 %v1455
    %1459 = vmatprep.subr.bf16.mxu0 0
    %1460 = vmatpush1.bf16.msra.mxu0 0
    %1461 = vmatprep.subr.bf16.mxu0 0
    %1462 = vmatpush1.bf16.msra.mxu0 0
    %1463 = vmatprep.subr.bf16.mxu0 0
    %1464 = vmatpush1.bf16.msra.mxu0 0
    %1465 = vmatprep.subr.bf16.mxu0 0
    %1466 = vmatpush1.bf16.msra.mxu0 0
    %1467 = vmatprep.subr.bf16.mxu0 0
    %1468 = vmatpush1.bf16.msra.mxu0 0
    %1469 = vmatprep.subr.bf16.mxu0 0
    %1470 = vmatpush1.bf16.msra.mxu0 0
    %1471 = vmatprep.subr.bf16.mxu0 0
    %1472 = vmatpush1.bf16.msra.mxu0 0
    %1473 = vmatprep.subr.bf16.mxu0 0
    %1474 = vmatpush1.bf16.msra.mxu0 0
    %1475 = vmatprep.subr.bf16.mxu0 0
    %1476 = vmatpush1.bf16.msra.mxu0 0
    %1477 = vmatprep.subr.bf16.mxu0 0
    %1478 = vmatpush1.bf16.msra.mxu0 0
    %1479 = vmatprep.subr.bf16.mxu0 0
    %1480 = vmatpush1.bf16.msra.mxu0 0
    %1481 = vmatprep.subr.bf16.mxu0 0
    %1482 = vmatpush1.bf16.msra.mxu0 0
    %1483 = vmatprep.subr.bf16.mxu0 0
    %1484 = vmatpush1.bf16.msra.mxu0 0
    %1485 = vmatprep.subr.bf16.mxu0 0
    %1486 = vmatpush1.bf16.msra.mxu0 0
    %1487 = vmatprep.subr.bf16.mxu0 0
    %1488 = vmatpush1.bf16.msra.mxu0 0
    %1489 = vmatprep.mubr.bf16.mxu0 0
    %1490 = vmatmul.mubr.bf16.gmra.mrb[0].mxu0 %v1452
    %v1491 = vpop.f32.mrb[0].mxu0
    %v1492 = vadd.f32 0.0, %v1491
    %v1493 = vpop.f32.mrb[0].mxu0
    %v1494 = vpop.f32.mrb[0].mxu0
    %v1495 = vpop.f32.mrb[0].mxu0
    %1496 = vdwg.mxu0
    %v1497 = vadd.f32 %v949, %v1492
    %v1498 = vpack.c.bf16 %v1210, %v1210
    %v1499 = vpack.c.bf16 %v1273, %v1273
    %v1500 = vpack.c.bf16 %v1336, %v1336
    %v1502 = vsel %vm326, %v1498, 0
    %v1505 = vsel %vm326, %v1499, 0
    %1507 = vmatprep.subr.bf16.mxu0 0
    %1508 = vmatpush1.bf16.xpose.msra.mxu0 %v1505
    %1509 = vmatprep.subr.bf16.mxu0 0
    %1510 = vmatpush1.bf16.xpose.msra.mxu0 0
    %1511 = vmatprep.subr.bf16.mxu0 0
    %1512 = vmatpush1.bf16.xpose.msra.mxu0 0
    %1513 = vmatprep.subr.bf16.mxu0 0
    %1514 = vmatpush1.bf16.xpose.msra.mxu0 0
    %1515 = vmatprep.subr.bf16.mxu0 0
    %1516 = vmatpush1.bf16.xpose.msra.mxu0 0
    %1517 = vmatprep.subr.bf16.mxu0 0
    %1518 = vmatpush1.bf16.xpose.msra.mxu0 0
    %1519 = vmatprep.subr.bf16.mxu0 0
    %1520 = vmatpush1.bf16.xpose.msra.mxu0 0
    %1521 = vmatprep.subr.bf16.mxu0 0
    %1522 = vmatpush1.bf16.xpose.msra.mxu0 0
    %1523 = vmatprep.subr.bf16.mxu0 0
    %1524 = vmatpush1.bf16.xpose.msra.mxu0 0
    %1525 = vmatprep.subr.bf16.mxu0 0
    %1526 = vmatpush1.bf16.xpose.msra.mxu0 0
    %1527 = vmatprep.subr.bf16.mxu0 0
    %1528 = vmatpush1.bf16.xpose.msra.mxu0 0
    %1529 = vmatprep.subr.bf16.mxu0 0
    %1530 = vmatpush1.bf16.xpose.msra.mxu0 0
    %1531 = vmatprep.subr.bf16.mxu0 0
    %1532 = vmatpush1.bf16.xpose.msra.mxu0 0
    %1533 = vmatprep.subr.bf16.mxu0 0
    %1534 = vmatpush1.bf16.xpose.msra.mxu0 0
    %1535 = vmatprep.subr.bf16.mxu0 0
    %1536 = vmatpush1.bf16.xpose.msra.mxu0 0
    %1537 = vmatprep.subr.bf16.mxu0 0
    %1538 = vmatpush1.bf16.xpose.msra.mxu0 0
    %1539 = vmatprep.mubr.bf16.mxu0 0
    %1540 = vmatmul.mubr.bf16.gmra.mrb[0].mxu0 %v1502
    %v1541 = vpop.f32.mrb[0].mxu0
    %v1542 = vadd.f32 0.0, %v1541
    %v1543 = vpop.f32.mrb[0].mxu0
    %v1544 = vpop.f32.mrb[0].mxu0
    %v1545 = vpop.f32.mrb[0].mxu0
    %1546 = vdwg.mxu0
    %v1547 = vmul.f32 %v1542, 0.35355338
    %v1548 = vadd.f32 %v1547, %v499
    %v1549 = vsel %vm326, %v1548, -inf
    %1550 = vmax.xlane.f32.xlu0 %v1549
    %v1551 = vpop.xlane.xlu0 %1550
    %v1552 = vsub.f32 %v1548, %v1551
    %v1553 = vmul.f32 %v1552, 1.442695
    %v1554 = vpow.pop %v1553
    %v1555 = vsel %vm326, %v1554, 0.0
    %1556 = vadd.xlane.f32.xlu0 %v1555
    %v1557 = vpop.xlane.xlu0 %1556
    %v1558 = vrcp.pop %v1557
    %v1559 = vmul.f32 %v1554, %v1558
    %v1560 = vpack.c.bf16 %v1559, %v1559
    %v1562 = vsel %vm326, %v1560, 0
    %v1565 = vsel %vm397, %v1500, 0
    %1567 = vmatprep.subr.bf16.mxu0 0
    %1568 = vmatpush1.bf16.msra.mxu0 %v1565
    %1569 = vmatprep.subr.bf16.mxu0 0
    %1570 = vmatpush1.bf16.msra.mxu0 0
    %1571 = vmatprep.subr.bf16.mxu0 0
    %1572 = vmatpush1.bf16.msra.mxu0 0
    %1573 = vmatprep.subr.bf16.mxu0 0
    %1574 = vmatpush1.bf16.msra.mxu0 0
    %1575 = vmatprep.subr.bf16.mxu0 0
    %1576 = vmatpush1.bf16.msra.mxu0 0
    %1577 = vmatprep.subr.bf16.mxu0 0
    %1578 = vmatpush1.bf16.msra.mxu0 0
    %1579 = vmatprep.subr.bf16.mxu0 0
    %1580 = vmatpush1.bf16.msra.mxu0 0
    %1581 = vmatprep.subr.bf16.mxu0 0
    %1582 = vmatpush1.bf16.msra.mxu0 0
    %1583 = vmatprep.subr.bf16.mxu0 0
    %1584 = vmatpush1.bf16.msra.mxu0 0
    %1585 = vmatprep.subr.bf16.mxu0 0
    %1586 = vmatpush1.bf16.msra.mxu0 0
    %1587 = vmatprep.subr.bf16.mxu0 0
    %1588 = vmatpush1.bf16.msra.mxu0 0
    %1589 = vmatprep.subr.bf16.mxu0 0
    %1590 = vmatpush1.bf16.msra.mxu0 0
    %1591 = vmatprep.subr.bf16.mxu0 0
    %1592 = vmatpush1.bf16.msra.mxu0 0
    %1593 = vmatprep.subr.bf16.mxu0 0
    %1594 = vmatpush1.bf16.msra.mxu0 0
    %1595 = vmatprep.subr.bf16.mxu0 0
    %1596 = vmatpush1.bf16.msra.mxu0 0
    %1597 = vmatprep.subr.bf16.mxu0 0
    %1598 = vmatpush1.bf16.msra.mxu0 0
    %1599 = vmatprep.mubr.bf16.mxu0 0
    %1600 = vmatmul.mubr.bf16.gmra.mrb[0].mxu0 %v1562
    %v1601 = vpop.f32.mrb[0].mxu0
    %v1602 = vadd.f32 0.0, %v1601
    %v1603 = vpop.f32.mrb[0].mxu0
    %v1604 = vpop.f32.mrb[0].mxu0
    %v1605 = vpop.f32.mrb[0].mxu0
    %1606 = vdwg.mxu0
    %v1607 = vpack.c.bf16 %v1602, %v1602
    %v1609 = vsel %vm326, %v1607, 0
    %1611 = vmatprep.subr.bf16.mxu0 0
    %1612 = vmatpush1.bf16.msra.mxu0 %v1455
    %1613 = vmatprep.subr.bf16.mxu0 0
    %1614 = vmatpush1.bf16.msra.mxu0 0
    %1615 = vmatprep.subr.bf16.mxu0 0
    %1616 = vmatpush1.bf16.msra.mxu0 0
    %1617 = vmatprep.subr.bf16.mxu0 0
    %1618 = vmatpush1.bf16.msra.mxu0 0
    %1619 = vmatprep.subr.bf16.mxu0 0
    %1620 = vmatpush1.bf16.msra.mxu0 0
    %1621 = vmatprep.subr.bf16.mxu0 0
    %1622 = vmatpush1.bf16.msra.mxu0 0
    %1623 = vmatprep.subr.bf16.mxu0 0
    %1624 = vmatpush1.bf16.msra.mxu0 0
    %1625 = vmatprep.subr.bf16.mxu0 0
    %1626 = vmatpush1.bf16.msra.mxu0 0
    %1627 = vmatprep.subr.bf16.mxu0 0
    %1628 = vmatpush1.bf16.msra.mxu0 0
    %1629 = vmatprep.subr.bf16.mxu0 0
    %1630 = vmatpush1.bf16.msra.mxu0 0
    %1631 = vmatprep.subr.bf16.mxu0 0
    %1632 = vmatpush1.bf16.msra.mxu0 0
    %1633 = vmatprep.subr.bf16.mxu0 0
    %1634 = vmatpush1.bf16.msra.mxu0 0
    %1635 = vmatprep.subr.bf16.mxu0 0
    %1636 = vmatpush1.bf16.msra.mxu0 0
    %1637 = vmatprep.subr.bf16.mxu0 0
    %1638 = vmatpush1.bf16.msra.mxu0 0
    %1639 = vmatprep.subr.bf16.mxu0 0
    %1640 = vmatpush1.bf16.msra.mxu0 0
    %1641 = vmatprep.subr.bf16.mxu0 0
    %1642 = vmatpush1.bf16.msra.mxu0 0
    %1643 = vmatprep.mubr.bf16.mxu0 0
    %1644 = vmatmul.mubr.bf16.gmra.mrb[0].mxu0 %v1609
    %v1645 = vpop.f32.mrb[0].mxu0
    %v1646 = vadd.f32 0.0, %v1645
    %v1647 = vpop.f32.mrb[0].mxu0
    %v1648 = vpop.f32.mrb[0].mxu0
    %v1649 = vpop.f32.mrb[0].mxu0
    %1650 = vdwg.mxu0
    %v1651 = vadd.f32 %v1145, %v1646
    %s1652 = scalar_lea.vmem %s5, 48
    %v1653 = vld [vmem:[%s1652] sm:$0xf]
    %v1654 = vld [vmem:[%s1652 + $0x4] sm:$0xf]
    %v1655 = vld [vmem:[%s1652 + $0x8] sm:$0xf]
    %v1656 = vld [vmem:[%s1652 + $0xc] sm:$0xf]
    %v1657 = vld [vmem:[%s6 + $0x3] sm:$0x1]
    %v1658 = vlaneseq
    %v1659 = vshrl.u32 %v1658, 7
    %v1660 = vsub.s32 0, %v1659
    %v1661 = vrot.slane %v1657, %v1660
    %v1666 = vunpack.c.l.b16 %v1653
    %v1667 = vunpack.c.l.b16 %v1654
    %v1668 = vunpack.c.l.b16 %v1655
    %v1669 = vunpack.c.l.b16 %v1656
    %v1670 = vpack.c.b16 %v1667, %v1666
    %v1671 = vpack.c.b16 %v1669, %v1668
    %1674 = vmatprep.subr.bf16.mxu0 0
    %1675 = vmatpush1.bf16.msra.mxu0 %v1670
    %1676 = vmatprep.subr.bf16.mxu0 0
    %1677 = vmatpush1.bf16.msra.mxu0 %v1671
    %1678 = vmatprep.subr.bf16.mxu0 0
    %1679 = vmatpush1.bf16.msra.mxu0 0
    %1680 = vmatprep.subr.bf16.mxu0 0
    %1681 = vmatpush1.bf16.msra.mxu0 0
    %1682 = vmatprep.subr.bf16.mxu0 0
    %1683 = vmatpush1.bf16.msra.mxu0 0
    %1684 = vmatprep.subr.bf16.mxu0 0
    %1685 = vmatpush1.bf16.msra.mxu0 0
    %1686 = vmatprep.subr.bf16.mxu0 0
    %1687 = vmatpush1.bf16.msra.mxu0 0
    %1688 = vmatprep.subr.bf16.mxu0 0
    %1689 = vmatpush1.bf16.msra.mxu0 0
    %1690 = vmatprep.subr.bf16.mxu0 0
    %1691 = vmatpush1.bf16.msra.mxu0 0
    %1692 = vmatprep.subr.bf16.mxu0 0
    %1693 = vmatpush1.bf16.msra.mxu0 0
    %1694 = vmatprep.subr.bf16.mxu0 0
    %1695 = vmatpush1.bf16.msra.mxu0 0
    %1696 = vmatprep.subr.bf16.mxu0 0
    %1697 = vmatpush1.bf16.msra.mxu0 0
    %1698 = vmatprep.subr.bf16.mxu0 0
    %1699 = vmatpush1.bf16.msra.mxu0 0
    %1700 = vmatprep.subr.bf16.mxu0 0
    %1701 = vmatpush1.bf16.msra.mxu0 0
    %1702 = vmatprep.subr.bf16.mxu0 0
    %1703 = vmatpush1.bf16.msra.mxu0 0
    %1704 = vmatprep.subr.bf16.mxu0 0
    %1705 = vmatpush1.bf16.msra.mxu0 0
    %1706 = vmatprep.mubr.bf16.mxu0 0
    %1707 = vmatmul.mubr.bf16.gmra.mrb[0].mxu0 %v153
    %v1708 = vpop.f32.mrb[0].mxu0
    %v1709 = vadd.f32 %v1661, %v1708
    %v1710 = vpop.f32.mrb[0].mxu0
    %v1711 = vpop.f32.mrb[0].mxu0
    %v1712 = vadd.f32 %v1661, %v1711
    %v1713 = vpop.f32.mrb[0].mxu0
    %1714 = vdwg.mxu0
    %s1715 = scalar_lea.vmem %s7, 48
    %v1716 = vld [vmem:[%s1715] sm:$0xf]
    %v1717 = vld [vmem:[%s1715 + $0x4] sm:$0xf]
    %v1718 = vld [vmem:[%s1715 + $0x8] sm:$0xf]
    %v1719 = vld [vmem:[%s1715 + $0xc] sm:$0xf]
    %v1720 = vld [vmem:[%s8 + $0x3] sm:$0x1]
    %v1721 = vlaneseq
    %v1722 = vshrl.u32 %v1721, 7
    %v1723 = vsub.s32 0, %v1722
    %v1724 = vrot.slane %v1720, %v1723
    %v1729 = vunpack.c.l.b16 %v1716
    %v1730 = vunpack.c.l.b16 %v1717
    %v1731 = vunpack.c.l.b16 %v1718
    %v1732 = vunpack.c.l.b16 %v1719
    %v1733 = vpack.c.b16 %v1730, %v1729
    %v1734 = vpack.c.b16 %v1732, %v1731
    %1737 = vmatprep.subr.bf16.mxu0 0
    %1738 = vmatpush1.bf16.msra.mxu0 %v1733
    %1739 = vmatprep.subr.bf16.mxu0 0
    %1740 = vmatpush1.bf16.msra.mxu0 %v1734
    %1741 = vmatprep.subr.bf16.mxu0 0
    %1742 = vmatpush1.bf16.msra.mxu0 0
    %1743 = vmatprep.subr.bf16.mxu0 0
    %1744 = vmatpush1.bf16.msra.mxu0 0
    %1745 = vmatprep.subr.bf16.mxu0 0
    %1746 = vmatpush1.bf16.msra.mxu0 0
    %1747 = vmatprep.subr.bf16.mxu0 0
    %1748 = vmatpush1.bf16.msra.mxu0 0
    %1749 = vmatprep.subr.bf16.mxu0 0
    %1750 = vmatpush1.bf16.msra.mxu0 0
    %1751 = vmatprep.subr.bf16.mxu0 0
    %1752 = vmatpush1.bf16.msra.mxu0 0
    %1753 = vmatprep.subr.bf16.mxu0 0
    %1754 = vmatpush1.bf16.msra.mxu0 0
    %1755 = vmatprep.subr.bf16.mxu0 0
    %1756 = vmatpush1.bf16.msra.mxu0 0
    %1757 = vmatprep.subr.bf16.mxu0 0
    %1758 = vmatpush1.bf16.msra.mxu0 0
    %1759 = vmatprep.subr.bf16.mxu0 0
    %1760 = vmatpush1.bf16.msra.mxu0 0
    %1761 = vmatprep.subr.bf16.mxu0 0
    %1762 = vmatpush1.bf16.msra.mxu0 0
    %1763 = vmatprep.subr.bf16.mxu0 0
    %1764 = vmatpush1.bf16.msra.mxu0 0
    %1765 = vmatprep.subr.bf16.mxu0 0
    %1766 = vmatpush1.bf16.msra.mxu0 0
    %1767 = vmatprep.subr.bf16.mxu0 0
    %1768 = vmatpush1.bf16.msra.mxu0 0
    %1769 = vmatprep.mubr.bf16.mxu0 0
    %1770 = vmatmul.mubr.bf16.gmra.mrb[0].mxu0 %v218
    %v1771 = vpop.f32.mrb[0].mxu0
    %v1772 = vadd.f32 %v1724, %v1771
    %v1773 = vpop.f32.mrb[0].mxu0
    %v1774 = vpop.f32.mrb[0].mxu0
    %v1775 = vadd.f32 %v1724, %v1774
    %v1776 = vpop.f32.mrb[0].mxu0
    %1777 = vdwg.mxu0
    %s1778 = scalar_lea.vmem %s9, 48
    %v1779 = vld [vmem:[%s1778] sm:$0xf]
    %v1780 = vld [vmem:[%s1778 + $0x4] sm:$0xf]
    %v1781 = vld [vmem:[%s1778 + $0x8] sm:$0xf]
    %v1782 = vld [vmem:[%s1778 + $0xc] sm:$0xf]
    %v1783 = vld [vmem:[%s10 + $0x3] sm:$0x1]
    %v1784 = vlaneseq
    %v1785 = vshrl.u32 %v1784, 7
    %v1786 = vsub.s32 0, %v1785
    %v1787 = vrot.slane %v1783, %v1786
    %v1792 = vunpack.c.l.b16 %v1779
    %v1793 = vunpack.c.l.b16 %v1780
    %v1794 = vunpack.c.l.b16 %v1781
    %v1795 = vunpack.c.l.b16 %v1782
    %v1796 = vpack.c.b16 %v1793, %v1792
    %v1797 = vpack.c.b16 %v1795, %v1794
    %1800 = vmatprep.subr.bf16.mxu0 0
    %1801 = vmatpush1.bf16.msra.mxu0 %v1796
    %1802 = vmatprep.subr.bf16.mxu0 0
    %1803 = vmatpush1.bf16.msra.mxu0 %v1797
    %1804 = vmatprep.subr.bf16.mxu0 0
    %1805 = vmatpush1.bf16.msra.mxu0 0
    %1806 = vmatprep.subr.bf16.mxu0 0
    %1807 = vmatpush1.bf16.msra.mxu0 0
    %1808 = vmatprep.subr.bf16.mxu0 0
    %1809 = vmatpush1.bf16.msra.mxu0 0
    %1810 = vmatprep.subr.bf16.mxu0 0
    %1811 = vmatpush1.bf16.msra.mxu0 0
    %1812 = vmatprep.subr.bf16.mxu0 0
    %1813 = vmatpush1.bf16.msra.mxu0 0
    %1814 = vmatprep.subr.bf16.mxu0 0
    %1815 = vmatpush1.bf16.msra.mxu0 0
    %1816 = vmatprep.subr.bf16.mxu0 0
    %1817 = vmatpush1.bf16.msra.mxu0 0
    %1818 = vmatprep.subr.bf16.mxu0 0
    %1819 = vmatpush1.bf16.msra.mxu0 0
    %1820 = vmatprep.subr.bf16.mxu0 0
    %1821 = vmatpush1.bf16.msra.mxu0 0
    %1822 = vmatprep.subr.bf16.mxu0 0
    %1823 = vmatpush1.bf16.msra.mxu0 0
    %1824 = vmatprep.subr.bf16.mxu0 0
    %1825 = vmatpush1.bf16.msra.mxu0 0
    %1826 = vmatprep.subr.bf16.mxu0 0
    %1827 = vmatpush1.bf16.msra.mxu0 0
    %1828 = vmatprep.subr.bf16.mxu0 0
    %1829 = vmatpush1.bf16.msra.mxu0 0
    %1830 = vmatprep.subr.bf16.mxu0 0
    %1831 = vmatpush1.bf16.msra.mxu0 0
    %1832 = vmatprep.mubr.bf16.mxu0 0
    %1833 = vmatmul.mubr.bf16.gmra.mrb[0].mxu0 %v218
    %v1834 = vpop.f32.mrb[0].mxu0
    %v1835 = vadd.f32 %v1787, %v1834
    %v1836 = vpop.f32.mrb[0].mxu0
    %v1837 = vpop.f32.mrb[0].mxu0
    %v1838 = vadd.f32 %v1787, %v1837
    %v1839 = vpop.f32.mrb[0].mxu0
    %1840 = vdwg.mxu0
    %v1841 = vpack.c.bf16 %v1709, %v1709
    %v1842 = vpack.c.bf16 %v1772, %v1772
    %v1843 = vpack.c.bf16 %v1835, %v1835
    %v1845 = vsel %vm326, %v1841, 0
    %v1848 = vsel %vm326, %v1842, 0
    %1850 = vmatprep.subr.bf16.mxu0 0
    %1851 = vmatpush1.bf16.xpose.msra.mxu0 %v1848
    %1852 = vmatprep.subr.bf16.mxu0 0
    %1853 = vmatpush1.bf16.xpose.msra.mxu0 0
    %1854 = vmatprep.subr.bf16.mxu0 0
    %1855 = vmatpush1.bf16.xpose.msra.mxu0 0
    %1856 = vmatprep.subr.bf16.mxu0 0
    %1857 = vmatpush1.bf16.xpose.msra.mxu0 0
    %1858 = vmatprep.subr.bf16.mxu0 0
    %1859 = vmatpush1.bf16.xpose.msra.mxu0 0
    %1860 = vmatprep.subr.bf16.mxu0 0
    %1861 = vmatpush1.bf16.xpose.msra.mxu0 0
    %1862 = vmatprep.subr.bf16.mxu0 0
    %1863 = vmatpush1.bf16.xpose.msra.mxu0 0
    %1864 = vmatprep.subr.bf16.mxu0 0
    %1865 = vmatpush1.bf16.xpose.msra.mxu0 0
    %1866 = vmatprep.subr.bf16.mxu0 0
    %1867 = vmatpush1.bf16.xpose.msra.mxu0 0
    %1868 = vmatprep.subr.bf16.mxu0 0
    %1869 = vmatpush1.bf16.xpose.msra.mxu0 0
    %1870 = vmatprep.subr.bf16.mxu0 0
    %1871 = vmatpush1.bf16.xpose.msra.mxu0 0
    %1872 = vmatprep.subr.bf16.mxu0 0
    %1873 = vmatpush1.bf16.xpose.msra.mxu0 0
    %1874 = vmatprep.subr.bf16.mxu0 0
    %1875 = vmatpush1.bf16.xpose.msra.mxu0 0
    %1876 = vmatprep.subr.bf16.mxu0 0
    %1877 = vmatpush1.bf16.xpose.msra.mxu0 0
    %1878 = vmatprep.subr.bf16.mxu0 0
    %1879 = vmatpush1.bf16.xpose.msra.mxu0 0
    %1880 = vmatprep.subr.bf16.mxu0 0
    %1881 = vmatpush1.bf16.xpose.msra.mxu0 0
    %1882 = vmatprep.mubr.bf16.mxu0 0
    %1883 = vmatmul.mubr.bf16.gmra.mrb[0].mxu0 %v1845
    %v1884 = vpop.f32.mrb[0].mxu0
    %v1885 = vadd.f32 0.0, %v1884
    %v1886 = vpop.f32.mrb[0].mxu0
    %v1887 = vpop.f32.mrb[0].mxu0
    %v1888 = vpop.f32.mrb[0].mxu0
    %1889 = vdwg.mxu0
    %v1890 = vmul.f32 %v1885, 0.35355338
    %v1891 = vadd.f32 %v1890, %v379
    %v1892 = vsel %vm326, %v1891, -inf
    %1893 = vmax.xlane.f32.xlu0 %v1892
    %v1894 = vpop.xlane.xlu0 %1893
    %v1895 = vsub.f32 %v1891, %v1894
    %v1896 = vmul.f32 %v1895, 1.442695
    %v1897 = vpow.pop %v1896
    %v1898 = vsel %vm326, %v1897, 0.0
    %1899 = vadd.xlane.f32.xlu0 %v1898
    %v1900 = vpop.xlane.xlu0 %1899
    %v1901 = vrcp.pop %v1900
    %v1902 = vmul.f32 %v1897, %v1901
    %v1903 = vpack.c.bf16 %v1902, %v1902
    %v1905 = vsel %vm326, %v1903, 0
    %v1908 = vsel %vm397, %v1843, 0
    %1910 = vmatprep.subr.bf16.mxu0 0
    %1911 = vmatpush1.bf16.msra.mxu0 %v1908
    %1912 = vmatprep.subr.bf16.mxu0 0
    %1913 = vmatpush1.bf16.msra.mxu0 0
    %1914 = vmatprep.subr.bf16.mxu0 0
    %1915 = vmatpush1.bf16.msra.mxu0 0
    %1916 = vmatprep.subr.bf16.mxu0 0
    %1917 = vmatpush1.bf16.msra.mxu0 0
    %1918 = vmatprep.subr.bf16.mxu0 0
    %1919 = vmatpush1.bf16.msra.mxu0 0
    %1920 = vmatprep.subr.bf16.mxu0 0
    %1921 = vmatpush1.bf16.msra.mxu0 0
    %1922 = vmatprep.subr.bf16.mxu0 0
    %1923 = vmatpush1.bf16.msra.mxu0 0
    %1924 = vmatprep.subr.bf16.mxu0 0
    %1925 = vmatpush1.bf16.msra.mxu0 0
    %1926 = vmatprep.subr.bf16.mxu0 0
    %1927 = vmatpush1.bf16.msra.mxu0 0
    %1928 = vmatprep.subr.bf16.mxu0 0
    %1929 = vmatpush1.bf16.msra.mxu0 0
    %1930 = vmatprep.subr.bf16.mxu0 0
    %1931 = vmatpush1.bf16.msra.mxu0 0
    %1932 = vmatprep.subr.bf16.mxu0 0
    %1933 = vmatpush1.bf16.msra.mxu0 0
    %1934 = vmatprep.subr.bf16.mxu0 0
    %1935 = vmatpush1.bf16.msra.mxu0 0
    %1936 = vmatprep.subr.bf16.mxu0 0
    %1937 = vmatpush1.bf16.msra.mxu0 0
    %1938 = vmatprep.subr.bf16.mxu0 0
    %1939 = vmatpush1.bf16.msra.mxu0 0
    %1940 = vmatprep.subr.bf16.mxu0 0
    %1941 = vmatpush1.bf16.msra.mxu0 0
    %1942 = vmatprep.mubr.bf16.mxu0 0
    %1943 = vmatmul.mubr.bf16.gmra.mrb[0].mxu0 %v1905
    %v1944 = vpop.f32.mrb[0].mxu0
    %v1945 = vadd.f32 0.0, %v1944
    %v1946 = vpop.f32.mrb[0].mxu0
    %v1947 = vpop.f32.mrb[0].mxu0
    %v1948 = vpop.f32.mrb[0].mxu0
    %1949 = vdwg.mxu0
    %v1950 = vpack.c.bf16 %v1945, %v1945
    %s1951 = scalar_lea.vmem %s11, 12
    %v1952 = vld [vmem:[%s1951] sm:$0xf]
    %v1954 = vsel %vm326, %v1950, 0
    %v1957 = vsel %vm397, %v1952, 0
    %1959 = vmatprep.subr.bf16.mxu0 0
    %1960 = vmatpush1.bf16.msra.mxu0 %v1957
    %1961 = vmatprep.subr.bf16.mxu0 0
    %1962 = vmatpush1.bf16.msra.mxu0 0
    %1963 = vmatprep.subr.bf16.mxu0 0
    %1964 = vmatpush1.bf16.msra.mxu0 0
    %1965 = vmatprep.subr.bf16.mxu0 0
    %1966 = vmatpush1.bf16.msra.mxu0 0
    %1967 = vmatprep.subr.bf16.mxu0 0
    %1968 = vmatpush1.bf16.msra.mxu0 0
    %1969 = vmatprep.subr.bf16.mxu0 0
    %1970 = vmatpush1.bf16.msra.mxu0 0
    %1971 = vmatprep.subr.bf16.mxu0 0
    %1972 = vmatpush1.bf16.msra.mxu0 0
    %1973 = vmatprep.subr.bf16.mxu0 0
    %1974 = vmatpush1.bf16.msra.mxu0 0
    %1975 = vmatprep.subr.bf16.mxu0 0
    %1976 = vmatpush1.bf16.msra.mxu0 0
    %1977 = vmatprep.subr.bf16.mxu0 0
    %1978 = vmatpush1.bf16.msra.mxu0 0
    %1979 = vmatprep.subr.bf16.mxu0 0
    %1980 = vmatpush1.bf16.msra.mxu0 0
    %1981 = vmatprep.subr.bf16.mxu0 0
    %1982 = vmatpush1.bf16.msra.mxu0 0
    %1983 = vmatprep.subr.bf16.mxu0 0
    %1984 = vmatpush1.bf16.msra.mxu0 0
    %1985 = vmatprep.subr.bf16.mxu0 0
    %1986 = vmatpush1.bf16.msra.mxu0 0
    %1987 = vmatprep.subr.bf16.mxu0 0
    %1988 = vmatpush1.bf16.msra.mxu0 0
    %1989 = vmatprep.subr.bf16.mxu0 0
    %1990 = vmatpush1.bf16.msra.mxu0 0
    %1991 = vmatprep.mubr.bf16.mxu0 0
    %1992 = vmatmul.mubr.bf16.gmra.mrb[0].mxu0 %v1954
    %v1993 = vpop.f32.mrb[0].mxu0
    %v1994 = vadd.f32 0.0, %v1993
    %v1995 = vpop.f32.mrb[0].mxu0
    %v1996 = vpop.f32.mrb[0].mxu0
    %v1997 = vpop.f32.mrb[0].mxu0
    %1998 = vdwg.mxu0
    %v1999 = vadd.f32 %v1497, %v1994
    %v2000 = vpack.c.bf16 %v1712, %v1712
    %v2001 = vpack.c.bf16 %v1775, %v1775
    %v2002 = vpack.c.bf16 %v1838, %v1838
    %v2004 = vsel %vm326, %v2000, 0
    %v2007 = vsel %vm326, %v2001, 0
    %2009 = vmatprep.subr.bf16.mxu0 0
    %2010 = vmatpush1.bf16.xpose.msra.mxu0 %v2007
    %2011 = vmatprep.subr.bf16.mxu0 0
    %2012 = vmatpush1.bf16.xpose.msra.mxu0 0
    %2013 = vmatprep.subr.bf16.mxu0 0
    %2014 = vmatpush1.bf16.xpose.msra.mxu0 0
    %2015 = vmatprep.subr.bf16.mxu0 0
    %2016 = vmatpush1.bf16.xpose.msra.mxu0 0
    %2017 = vmatprep.subr.bf16.mxu0 0
    %2018 = vmatpush1.bf16.xpose.msra.mxu0 0
    %2019 = vmatprep.subr.bf16.mxu0 0
    %2020 = vmatpush1.bf16.xpose.msra.mxu0 0
    %2021 = vmatprep.subr.bf16.mxu0 0
    %2022 = vmatpush1.bf16.xpose.msra.mxu0 0
    %2023 = vmatprep.subr.bf16.mxu0 0
    %2024 = vmatpush1.bf16.xpose.msra.mxu0 0
    %2025 = vmatprep.subr.bf16.mxu0 0
    %2026 = vmatpush1.bf16.xpose.msra.mxu0 0
    %2027 = vmatprep.subr.bf16.mxu0 0
    %2028 = vmatpush1.bf16.xpose.msra.mxu0 0
    %2029 = vmatprep.subr.bf16.mxu0 0
    %2030 = vmatpush1.bf16.xpose.msra.mxu0 0
    %2031 = vmatprep.subr.bf16.mxu0 0
    %2032 = vmatpush1.bf16.xpose.msra.mxu0 0
    %2033 = vmatprep.subr.bf16.mxu0 0
    %2034 = vmatpush1.bf16.xpose.msra.mxu0 0
    %2035 = vmatprep.subr.bf16.mxu0 0
    %2036 = vmatpush1.bf16.xpose.msra.mxu0 0
    %2037 = vmatprep.subr.bf16.mxu0 0
    %2038 = vmatpush1.bf16.xpose.msra.mxu0 0
    %2039 = vmatprep.subr.bf16.mxu0 0
    %2040 = vmatpush1.bf16.xpose.msra.mxu0 0
    %2041 = vmatprep.mubr.bf16.mxu0 0
    %2042 = vmatmul.mubr.bf16.gmra.mrb[0].mxu0 %v2004
    %v2043 = vpop.f32.mrb[0].mxu0
    %v2044 = vadd.f32 0.0, %v2043
    %v2045 = vpop.f32.mrb[0].mxu0
    %v2046 = vpop.f32.mrb[0].mxu0
    %v2047 = vpop.f32.mrb[0].mxu0
    %2048 = vdwg.mxu0
    %v2049 = vmul.f32 %v2044, 0.35355338
    %v2050 = vadd.f32 %v2049, %v499
    %v2051 = vsel %vm326, %v2050, -inf
    %2052 = vmax.xlane.f32.xlu0 %v2051
    %v2053 = vpop.xlane.xlu0 %2052
    %v2054 = vsub.f32 %v2050, %v2053
    %v2055 = vmul.f32 %v2054, 1.442695
    %v2056 = vpow.pop %v2055
    %v2057 = vsel %vm326, %v2056, 0.0
    %2058 = vadd.xlane.f32.xlu0 %v2057
    %v2059 = vpop.xlane.xlu0 %2058
    %v2060 = vrcp.pop %v2059
    %v2061 = vmul.f32 %v2056, %v2060
    %v2062 = vpack.c.bf16 %v2061, %v2061
    %v2064 = vsel %vm326, %v2062, 0
    %v2067 = vsel %vm397, %v2002, 0
    %2069 = vmatprep.subr.bf16.mxu0 0
    %2070 = vmatpush1.bf16.msra.mxu0 %v2067
    %2071 = vmatprep.subr.bf16.mxu0 0
    %2072 = vmatpush1.bf16.msra.mxu0 0
    %2073 = vmatprep.subr.bf16.mxu0 0
    %2074 = vmatpush1.bf16.msra.mxu0 0
    %2075 = vmatprep.subr.bf16.mxu0 0
    %2076 = vmatpush1.bf16.msra.mxu0 0
    %2077 = vmatprep.subr.bf16.mxu0 0
    %2078 = vmatpush1.bf16.msra.mxu0 0
    %2079 = vmatprep.subr.bf16.mxu0 0
    %2080 = vmatpush1.bf16.msra.mxu0 0
    %2081 = vmatprep.subr.bf16.mxu0 0
    %2082 = vmatpush1.bf16.msra.mxu0 0
    %2083 = vmatprep.subr.bf16.mxu0 0
    %2084 = vmatpush1.bf16.msra.mxu0 0
    %2085 = vmatprep.subr.bf16.mxu0 0
    %2086 = vmatpush1.bf16.msra.mxu0 0
    %2087 = vmatprep.subr.bf16.mxu0 0
    %2088 = vmatpush1.bf16.msra.mxu0 0
    %2089 = vmatprep.subr.bf16.mxu0 0
    %2090 = vmatpush1.bf16.msra.mxu0 0
    %2091 = vmatprep.subr.bf16.mxu0 0
    %2092 = vmatpush1.bf16.msra.mxu0 0
    %2093 = vmatprep.subr.bf16.mxu0 0
    %2094 = vmatpush1.bf16.msra.mxu0 0
    %2095 = vmatprep.subr.bf16.mxu0 0
    %2096 = vmatpush1.bf16.msra.mxu0 0
    %2097 = vmatprep.subr.bf16.mxu0 0
    %2098 = vmatpush1.bf16.msra.mxu0 0
    %2099 = vmatprep.subr.bf16.mxu0 0
    %2100 = vmatpush1.bf16.msra.mxu0 0
    %2101 = vmatprep.mubr.bf16.mxu0 0
    %2102 = vmatmul.mubr.bf16.gmra.mrb[0].mxu0 %v2064
    %v2103 = vpop.f32.mrb[0].mxu0
    %v2104 = vadd.f32 0.0, %v2103
    %v2105 = vpop.f32.mrb[0].mxu0
    %v2106 = vpop.f32.mrb[0].mxu0
    %v2107 = vpop.f32.mrb[0].mxu0
    %2108 = vdwg.mxu0
    %v2109 = vpack.c.bf16 %v2104, %v2104
    %v2111 = vsel %vm326, %v2109, 0
    %2113 = vmatprep.subr.bf16.mxu0 0
    %2114 = vmatpush1.bf16.msra.mxu0 %v1957
    %2115 = vmatprep.subr.bf16.mxu0 0
    %2116 = vmatpush1.bf16.msra.mxu0 0
    %2117 = vmatprep.subr.bf16.mxu0 0
    %2118 = vmatpush1.bf16.msra.mxu0 0
    %2119 = vmatprep.subr.bf16.mxu0 0
    %2120 = vmatpush1.bf16.msra.mxu0 0
    %2121 = vmatprep.subr.bf16.mxu0 0
    %2122 = vmatpush1.bf16.msra.mxu0 0
    %2123 = vmatprep.subr.bf16.mxu0 0
    %2124 = vmatpush1.bf16.msra.mxu0 0
    %2125 = vmatprep.subr.bf16.mxu0 0
    %2126 = vmatpush1.bf16.msra.mxu0 0
    %2127 = vmatprep.subr.bf16.mxu0 0
    %2128 = vmatpush1.bf16.msra.mxu0 0
    %2129 = vmatprep.subr.bf16.mxu0 0
    %2130 = vmatpush1.bf16.msra.mxu0 0
    %2131 = vmatprep.subr.bf16.mxu0 0
    %2132 = vmatpush1.bf16.msra.mxu0 0
    %2133 = vmatprep.subr.bf16.mxu0 0
    %2134 = vmatpush1.bf16.msra.mxu0 0
    %2135 = vmatprep.subr.bf16.mxu0 0
    %2136 = vmatpush1.bf16.msra.mxu0 0
    %2137 = vmatprep.subr.bf16.mxu0 0
    %2138 = vmatpush1.bf16.msra.mxu0 0
    %2139 = vmatprep.subr.bf16.mxu0 0
    %2140 = vmatpush1.bf16.msra.mxu0 0
    %2141 = vmatprep.subr.bf16.mxu0 0
    %2142 = vmatpush1.bf16.msra.mxu0 0
    %2143 = vmatprep.subr.bf16.mxu0 0
    %2144 = vmatpush1.bf16.msra.mxu0 0
    %2145 = vmatprep.mubr.bf16.mxu0 0
    %2146 = vmatmul.mubr.bf16.gmra.mrb[0].mxu0 %v2111
    %v2147 = vpop.f32.mrb[0].mxu0
    %v2148 = vadd.f32 0.0, %v2147
    %v2149 = vpop.f32.mrb[0].mxu0
    %v2150 = vpop.f32.mrb[0].mxu0
    %v2151 = vpop.f32.mrb[0].mxu0
    %2152 = vdwg.mxu0
    %v2153 = vadd.f32 %v1651, %v2148
    %v2154 = vld [vmem:[%s12] sm:$0x1]
    %v2155 = vadd.f32 %v64, %v1999
    %v2157 = vlaneseq
    %v2158 = vshrl.u32 %v2157, 7
    %v2159 = vsub.s32 0, %v2158
    %v2160 = vrot.slane %v2154, %v2159
    %v2162 = vadd.f32 %v2155, %v2160
    %v2163 = vadd.f32 %v65, %v2153
    %v2164 = vadd.f32 %v2163, %v2160
    %v2165 = vld [vmem:[%s13] sm:$0x1]
    %v2166 = vld [vmem:[%s14] sm:$0x1]
    %v2167 = vsel %vm70, %v2162, 0.0
    %2168 = vadd.xlane.f32.xlu0 %v2167
    %v2169 = vpop.xlane.xlu0 %2168
    %v2170 = vsel %vm70, %v2164, 0.0
    %2171 = vadd.xlane.f32.xlu0 %v2170
    %v2172 = vpop.xlane.xlu0 %2171
    %v2173 = vmul.f32 %v2169, %v77
    %v2174 = vmul.f32 %v2172, %v77
    %v2175 = vsub.f32 %v2162, %v2173
    %v2176 = vsub.f32 %v2164, %v2174
    %v2177 = vmul.f32 %v2175, %v2175
    %v2178 = vmul.f32 %v2176, %v2176
    %v2179 = vsel %vm70, %v2177, 0.0
    %2180 = vadd.xlane.f32.xlu0 %v2179
    %v2181 = vpop.xlane.xlu0 %2180
    %v2182 = vsel %vm70, %v2178, 0.0
    %2183 = vadd.xlane.f32.xlu0 %v2182
    %v2184 = vpop.xlane.xlu0 %2183
    %v2185 = vmul.f32 %v2181, %v90
    %v2186 = vmul.f32 %v2184, %v90
    %v2187 = vrsqrt.pop %v2185
    %v2188 = vmul.f32 %v2185, %v2187
    %vm2189 = vcmp.eq.f32.partialorder %v2185, inf
    %v2190 = vsel %vm2189, %v2185, %v2188
    %vm2191 = vcmp.eq.f32.partialorder %v2185, 0.0
    %v2192 = vand.u32 %v2185, 2147483648
    %v2193 = vsel %vm2191, %v2192, %v2190
    %v2194 = vrsqrt.pop %v2186
    %v2195 = vmul.f32 %v2186, %v2194
    %vm2196 = vcmp.eq.f32.partialorder %v2186, inf
    %v2197 = vsel %vm2196, %v2186, %v2195
    %vm2198 = vcmp.eq.f32.partialorder %v2186, 0.0
    %v2199 = vand.u32 %v2186, 2147483648
    %v2200 = vsel %vm2198, %v2199, %v2197
    %v2201 = vadd.f32 %v2193, 1e-06
    %v2202 = vadd.f32 %v2200, 1e-06
    %v2203 = vrcp.pop %v2201
    %v2204 = vrcp.pop %v2202
    %v2206 = vlaneseq
    %v2207 = vshrl.u32 %v2206, 7
    %v2208 = vsub.s32 0, %v2207
    %v2209 = vrot.slane %v2165, %v2208
    %v2211 = vmul.f32 %v2209, %v2175
    %v2212 = vmul.f32 %v2209, %v2176
    %v2213 = vmul.f32 %v2211, %v2203
    %v2214 = vmul.f32 %v2212, %v2204
    %v2216 = vlaneseq
    %v2217 = vshrl.u32 %v2216, 7
    %v2218 = vsub.s32 0, %v2217
    %v2219 = vrot.slane %v2166, %v2218
    %v2221 = vadd.f32 %v2213, %v2219
    %v2222 = vadd.f32 %v2214, %v2219
    %v2223 = vpack.c.bf16 %v2222, %v2221
    %v2224 = vld [vmem:[%s15] sm:$0xf]
    %v2225 = vld [vmem:[%s15 + $0x4] sm:$0xf]
    %v2226 = vld [vmem:[%s15 + $0x8] sm:$0xf]
    %v2227 = vld [vmem:[%s15 + $0xc] sm:$0xf]
    %v2228 = vld [vmem:[%s16] sm:$0x1]
    %v2230 = vlaneseq
    %v2231 = vshrl.u32 %v2230, 7
    %v2232 = vsub.s32 0, %v2231
    %v2233 = vrot.slane %v2228, %v2232
    %v2239 = vunpack.c.l.b16 %v2224
    %v2240 = vunpack.c.l.b16 %v2225
    %v2241 = vunpack.c.l.b16 %v2226
    %v2242 = vunpack.c.l.b16 %v2227
    %v2243 = vpack.c.b16 %v2240, %v2239
    %v2244 = vpack.c.b16 %v2242, %v2241
    %v2248 = vsel %vm70, %v2223, 0
    %2250 = vmatprep.subr.bf16.mxu0 0
    %2251 = vmatpush1.bf16.msra.mxu0 %v2243
    %2252 = vmatprep.subr.bf16.mxu0 0
    %2253 = vmatpush1.bf16.msra.mxu0 %v2244
    %2254 = vmatprep.subr.bf16.mxu0 0
    %2255 = vmatpush1.bf16.msra.mxu0 0
    %2256 = vmatprep.subr.bf16.mxu0 0
    %2257 = vmatpush1.bf16.msra.mxu0 0
    %2258 = vmatprep.subr.bf16.mxu0 0
    %2259 = vmatpush1.bf16.msra.mxu0 0
    %2260 = vmatprep.subr.bf16.mxu0 0
    %2261 = vmatpush1.bf16.msra.mxu0 0
    %2262 = vmatprep.subr.bf16.mxu0 0
    %2263 = vmatpush1.bf16.msra.mxu0 0
    %2264 = vmatprep.subr.bf16.mxu0 0
    %2265 = vmatpush1.bf16.msra.mxu0 0
    %2266 = vmatprep.subr.bf16.mxu0 0
    %2267 = vmatpush1.bf16.msra.mxu0 0
    %2268 = vmatprep.subr.bf16.mxu0 0
    %2269 = vmatpush1.bf16.msra.mxu0 0
    %2270 = vmatprep.subr.bf16.mxu0 0
    %2271 = vmatpush1.bf16.msra.mxu0 0
    %2272 = vmatprep.subr.bf16.mxu0 0
    %2273 = vmatpush1.bf16.msra.mxu0 0
    %2274 = vmatprep.subr.bf16.mxu0 0
    %2275 = vmatpush1.bf16.msra.mxu0 0
    %2276 = vmatprep.subr.bf16.mxu0 0
    %2277 = vmatpush1.bf16.msra.mxu0 0
    %2278 = vmatprep.subr.bf16.mxu0 0
    %2279 = vmatpush1.bf16.msra.mxu0 0
    %2280 = vmatprep.subr.bf16.mxu0 0
    %2281 = vmatpush1.bf16.msra.mxu0 0
    %2282 = vmatprep.mubr.bf16.mxu0 0
    %2283 = vmatmul.mubr.bf16.gmra.mrb[0].mxu0 %v2248
    %v2284 = vpop.f32.mrb[0].mxu0
    %v2285 = vadd.f32 %v2233, %v2284
    %v2286 = vpop.f32.mrb[0].mxu0
    %v2287 = vpop.f32.mrb[0].mxu0
    %v2288 = vadd.f32 %v2233, %v2287
    %v2289 = vpop.f32.mrb[0].mxu0
    %2290 = vdwg.mxu0
    %v2291 = vmax.f32 %v2285, 0.0
    %v2292 = vmax.f32 %v2288, 0.0
    %v2293 = vpack.c.bf16 %v2292, %v2291
    %v2294 = vld [vmem:[%s17] sm:$0xf]
    %v2295 = vld [vmem:[%s17 + $0x4] sm:$0xf]
    %v2296 = vld [vmem:[%s17 + $0x8] sm:$0xf]
    %v2297 = vld [vmem:[%s17 + $0xc] sm:$0xf]
    %v2298 = vld [vmem:[%s17 + $0x10] sm:$0xf]
    %v2299 = vld [vmem:[%s17 + $0x14] sm:$0xf]
    %v2300 = vld [vmem:[%s17 + $0x18] sm:$0xf]
    %v2301 = vld [vmem:[%s17 + $0x1c] sm:$0xf]
    %v2302 = vld [vmem:[%s18] sm:$0x1]
    %v2304 = vlaneseq
    %v2305 = vshrl.u32 %v2304, 7
    %v2306 = vsub.s32 0, %v2305
    %v2307 = vrot.slane %v2302, %v2306
    %v2317 = vunpack.c.l.b16 %v2294
    %v2318 = vunpack.c.l.b16 %v2295
    %v2319 = vunpack.c.l.b16 %v2296
    %v2320 = vunpack.c.l.b16 %v2297
    %v2321 = vunpack.c.l.b16 %v2298
    %v2322 = vunpack.c.l.b16 %v2299
    %v2323 = vunpack.c.l.b16 %v2300
    %v2324 = vunpack.c.l.b16 %v2301
    %v2325 = vpack.c.b16 %v2318, %v2317
    %v2326 = vpack.c.b16 %v2320, %v2319
    %v2327 = vpack.c.b16 %v2322, %v2321
    %v2328 = vpack.c.b16 %v2324, %v2323
    %vm2333 = vcmask 523264
    %v2335 = vsel %vm2333, %v2293, 0
    %2337 = vmatprep.subr.bf16.mxu0 0
    %2338 = vmatpush1.bf16.msra.mxu0 %v2325
    %2339 = vmatprep.subr.bf16.mxu0 0
    %2340 = vmatpush1.bf16.msra.mxu0 %v2326
    %2341 = vmatprep.subr.bf16.mxu0 0
    %2342 = vmatpush1.bf16.msra.mxu0 %v2327
    %2343 = vmatprep.subr.bf16.mxu0 0
    %2344 = vmatpush1.bf16.msra.mxu0 %v2328
    %2345 = vmatprep.subr.bf16.mxu0 0
    %2346 = vmatpush1.bf16.msra.mxu0 0
    %2347 = vmatprep.subr.bf16.mxu0 0
    %2348 = vmatpush1.bf16.msra.mxu0 0
    %2349 = vmatprep.subr.bf16.mxu0 0
    %2350 = vmatpush1.bf16.msra.mxu0 0
    %2351 = vmatprep.subr.bf16.mxu0 0
    %2352 = vmatpush1.bf16.msra.mxu0 0
    %2353 = vmatprep.subr.bf16.mxu0 0
    %2354 = vmatpush1.bf16.msra.mxu0 0
    %2355 = vmatprep.subr.bf16.mxu0 0
    %2356 = vmatpush1.bf16.msra.mxu0 0
    %2357 = vmatprep.subr.bf16.mxu0 0
    %2358 = vmatpush1.bf16.msra.mxu0 0
    %2359 = vmatprep.subr.bf16.mxu0 0
    %2360 = vmatpush1.bf16.msra.mxu0 0
    %2361 = vmatprep.subr.bf16.mxu0 0
    %2362 = vmatpush1.bf16.msra.mxu0 0
    %2363 = vmatprep.subr.bf16.mxu0 0
    %2364 = vmatpush1.bf16.msra.mxu0 0
    %2365 = vmatprep.subr.bf16.mxu0 0
    %2366 = vmatpush1.bf16.msra.mxu0 0
    %2367 = vmatprep.subr.bf16.mxu0 0
    %2368 = vmatpush1.bf16.msra.mxu0 0
    %2369 = vmatprep.mubr.bf16.mxu0 0
    %2370 = vmatmul.mubr.bf16.gmra.mrb[0].mxu0 %v2335
    %v2371 = vpop.f32.mrb[0].mxu0
    %v2372 = vadd.f32 %v2307, %v2371
    %v2373 = vpop.f32.mrb[0].mxu0
    %v2374 = vpop.f32.mrb[0].mxu0
    %v2375 = vadd.f32 %v2307, %v2374
    %v2376 = vpop.f32.mrb[0].mxu0
    %2377 = vdwg.mxu0
    %v2378 = vadd.f32 %v2162, %v2372
    %v2379 = vadd.f32 %v2164, %v2375
    %2380 = vst.msk [vmem:[#allocation2] sm:$0xff] %vm70, %v2378
    %2381 = vst.msk [vmem:[#allocation2 + $0x8] sm:$0xff] %vm70, %v2379
    // Predicated region
    $region78: #{tpu_custom_call.1} parent=1 // pred_check
      _
    $region79: #{tpu_custom_call.1} parent=1 // pred_check_branch
      %2383 = sbr.rel (0) target = $region81
    $region80: #{tpu_custom_call.1} parent=1 // pred_region
      %s2385 = ssub.s32 256, 256
      %2386 = vsyncadd [#allocation3], %s2385
      %s2387 = sshll.u32 [#allocation2], 4
      %s2388 = int_to_ptr.vmem [resolvable:$true] %s2387
      %2393 = dma.vmem_to_hbm [thread:$0]  %s2388, 256, %s19, [#allocation3], 128, 128, 8
    $region81: #{tpu_custom_call.1} parent=1 // pred_fallthru
      _
    // Predicated region
    $region82: #{tpu_custom_call.1} parent=1 // pred_check
      _
    $region83: #{tpu_custom_call.1} parent=1 // pred_check_branch
      %2395 = sbr.rel (0) target = $region85
    $region84: #{tpu_custom_call.1} parent=1 // pred_region
      %2396 = dma.done [#allocation3], 256
    $region85: #{tpu_custom_call.1} parent=1 // pred_fallthru
      _
    %2397 = vsyncpa [#allocation3], 1

</llo_original>
